<compile_context>
chip_gen: v6e
topology: v6e:2x2x1
jax: 0.10.0
libtpu: 0.0.40
codegen_flags: <defaults>
</compile_context>

<pallas_src>
import functools

import jax
import jax.numpy as jnp
from jax.experimental import pallas as pl
from jax.experimental.pallas import tpu as pltpu


def _round_up(x, m):
    return (x + m - 1) // m * m


# ----------------------------------------------------------------------------
# Generic tiled matmul + bias (+ optional fused residual add)
# ----------------------------------------------------------------------------

def _mm_bias_kernel(x_ref, w_ref, b_ref, o_ref, acc_ref):
    k = pl.program_id(2)

    @pl.when(k == 0)
    def _():
        acc_ref[...] = jnp.zeros_like(acc_ref)

    acc_ref[...] += jnp.dot(x_ref[...].astype(jnp.bfloat16), w_ref[...],
                            preferred_element_type=jnp.float32)

    @pl.when(k == pl.num_programs(2) - 1)
    def _():
        o_ref[...] = acc_ref[...] + b_ref[...]


def _mm_bias_res_kernel(x_ref, w_ref, b_ref, r_ref, o_ref, acc_ref):
    k = pl.program_id(2)

    @pl.when(k == 0)
    def _():
        acc_ref[...] = jnp.zeros_like(acc_ref)

    acc_ref[...] += jnp.dot(x_ref[...].astype(jnp.bfloat16), w_ref[...],
                            preferred_element_type=jnp.float32)

    @pl.when(k == pl.num_programs(2) - 1)
    def _():
        o_ref[...] = acc_ref[...] + b_ref[...] + r_ref[...]


def matmul_bias(x, w, b, residual=None, tm=256, tn=256, tk=512):
    """x:(M,K) @ w:(K,N) + b (+ residual:(M,N)); tiled, bf16 MXU, f32 accumulate."""
    M, K = x.shape
    N = w.shape[1]
    tm = min(tm, _round_up(M, 8))
    tn = min(tn, _round_up(N, 128))
    tk = min(tk, _round_up(K, 128))
    Mp, Np, Kp = _round_up(M, tm), _round_up(N, tn), _round_up(K, tk)

    xp = jnp.pad(x, ((0, Mp - M), (0, Kp - K)))
    wp = jnp.pad(w, ((0, Kp - K), (0, Np - N))).astype(jnp.bfloat16)
    bp = jnp.pad(b, (0, Np - N)).reshape(1, Np)

    in_specs = [
        pl.BlockSpec((tm, tk), lambda i, j, k: (i, k)),
        pl.BlockSpec((tk, tn), lambda i, j, k: (k, j)),
        pl.BlockSpec((1, tn), lambda i, j, k: (0, j)),
    ]
    args = [xp, wp, bp]
    kernel = _mm_bias_kernel
    if residual is not None:
        rp = jnp.pad(residual, ((0, Mp - M), (0, Np - N)))
        in_specs.append(pl.BlockSpec((tm, tn), lambda i, j, k: (i, j)))
        args.append(rp)
        kernel = _mm_bias_res_kernel

    out = pl.pallas_call(
        kernel,
        grid=(Mp // tm, Np // tn, Kp // tk),
        in_specs=in_specs,
        out_specs=pl.BlockSpec((tm, tn), lambda i, j, k: (i, j)),
        out_shape=jax.ShapeDtypeStruct((Mp, Np), jnp.float32),
        scratch_shapes=[pltpu.VMEM((tm, tn), jnp.float32)],
        compiler_params=pltpu.CompilerParams(
            dimension_semantics=("parallel", "parallel", "arbitrary")),
    )(*args)
    return out[:M, :N]


# ----------------------------------------------------------------------------
# Fused LayerNorm + matmul + bias (K = D, not tiled; LN stats in f32)
# ----------------------------------------------------------------------------

def _ln_mm_kernel(x_ref, g_ref, bt_ref, w_ref, b_ref, o_ref):
    x = x_ref[...]
    mu = jnp.mean(x, axis=-1, keepdims=True)
    var = jnp.mean(jnp.square(x - mu), axis=-1, keepdims=True)
    h = (x - mu) * jax.lax.rsqrt(var + 1e-5) * g_ref[...] + bt_ref[...]
    o_ref[...] = (
        jnp.dot(h.astype(jnp.bfloat16), w_ref[...],
                preferred_element_type=jnp.float32)
        + b_ref[...]
    )


def ln_matmul_bias(x, gamma, beta, w, b, tm=256, tn=256):
    M, D = x.shape
    N = w.shape[1]
    tm = min(tm, _round_up(M, 8))
    tn = min(tn, _round_up(N, 128))
    Mp, Np = _round_up(M, tm), _round_up(N, tn)

    xp = jnp.pad(x, ((0, Mp - M), (0, 0)))
    wp = jnp.pad(w, ((0, 0), (0, Np - N))).astype(jnp.bfloat16)
    bp = jnp.pad(b, (0, Np - N)).reshape(1, Np)

    out = pl.pallas_call(
        _ln_mm_kernel,
        grid=(Mp // tm, Np // tn),
        in_specs=[
            pl.BlockSpec((tm, D), lambda i, j: (i, 0)),
            pl.BlockSpec((1, D), lambda i, j: (0, 0)),
            pl.BlockSpec((1, D), lambda i, j: (0, 0)),
            pl.BlockSpec((D, tn), lambda i, j: (0, j)),
            pl.BlockSpec((1, tn), lambda i, j: (0, j)),
        ],
        out_specs=pl.BlockSpec((tm, tn), lambda i, j: (i, j)),
        out_shape=jax.ShapeDtypeStruct((Mp, Np), jnp.float32),
        compiler_params=pltpu.CompilerParams(
            dimension_semantics=("parallel", "parallel")),
    )(xp, gamma.reshape(1, D), beta.reshape(1, D), wp, bp)
    return out[:M, :N]


# ----------------------------------------------------------------------------
# Standalone LayerNorm (final norm of pooled cls tokens only)
# ----------------------------------------------------------------------------

def _ln_kernel(x_ref, g_ref, b_ref, o_ref):
    x = x_ref[...]
    mu = jnp.mean(x, axis=-1, keepdims=True)
    var = jnp.mean(jnp.square(x - mu), axis=-1, keepdims=True)
    o_ref[...] = (x - mu) * jax.lax.rsqrt(var + 1e-5) * g_ref[...] + b_ref[...]


def layernorm(x, gamma, beta, tm=512):
    M, D = x.shape
    tm = min(tm, _round_up(M, 8))
    Mp = _round_up(M, tm)
    xp = jnp.pad(x, ((0, Mp - M), (0, 0)))
    out = pl.pallas_call(
        _ln_kernel,
        grid=(Mp // tm,),
        in_specs=[
            pl.BlockSpec((tm, D), lambda i: (i, 0)),
            pl.BlockSpec((1, D), lambda i: (0, 0)),
            pl.BlockSpec((1, D), lambda i: (0, 0)),
        ],
        out_specs=pl.BlockSpec((tm, D), lambda i: (i, 0)),
        out_shape=jax.ShapeDtypeStruct((Mp, D), jnp.float32),
        compiler_params=pltpu.CompilerParams(dimension_semantics=("parallel",)),
    )(xp, gamma.reshape(1, D), beta.reshape(1, D))
    return out[:M]


# ----------------------------------------------------------------------------
# Attention: all heads of one batch per grid step, batched einsum, f32 softmax
# ----------------------------------------------------------------------------

def _attention_kernel(q_ref, k_ref, v_ref, o_ref, *, scale):
    q = q_ref[0].astype(jnp.bfloat16)     # (H, S, dh)
    k = k_ref[0].astype(jnp.bfloat16)
    v = v_ref[0].astype(jnp.bfloat16)
    s = jnp.einsum('hqd,hkd->hqk', q, k,
                   preferred_element_type=jnp.float32) * scale
    s = s - jnp.max(s, axis=-1, keepdims=True)
    p = jnp.exp(s)
    p = p * pl.reciprocal(jnp.sum(p, axis=-1, keepdims=True), approx=True)
    o_ref[0] = jnp.einsum('hqk,hkd->hqd', p.astype(jnp.bfloat16), v,
                          preferred_element_type=jnp.float32)


def attention(q, k, v):
    """q,k,v: (B, H, S, dh) -> softmax(QK^T/sqrt(dh)) V.
    TODO(synk): switch to a flash-style (q_tile, kv_tile) online-softmax kernel
    with a lane-dense (S, D) output layout for long sequences."""
    B, H, S, dh = q.shape
    scale = 1.0 / (dh ** 0.5)
    spec = pl.BlockSpec((1, H, S, dh), lambda b: (b, 0, 0, 0))
    return pl.pallas_call(
        functools.partial(_attention_kernel, scale=scale),
        grid=(B,),
        in_specs=[spec, spec, spec],
        out_specs=spec,
        out_shape=jax.ShapeDtypeStruct((B, H, S, dh), jnp.float32),
        compiler_params=pltpu.CompilerParams(dimension_semantics=("parallel",)),
    )(q, k, v)


# ----------------------------------------------------------------------------
# Fused LN2 + router GEMM + softmax + top-k gates + router loss (KL + z-loss)
# ----------------------------------------------------------------------------

def _ln_router_kernel(x_ref, g_ref, bt_ref, wr_ref, br_ref, mask_ref,
                      h_ref, gates_ref, logits_ref, loss_ref,
                      usage_acc, z_acc, *, top_k, n_valid):
    i = pl.program_id(0)

    # LayerNorm (f32)
    x = x_ref[...]
    mu = jnp.mean(x, axis=-1, keepdims=True)
    var = jnp.mean(jnp.square(x - mu), axis=-1, keepdims=True)
    h = (x - mu) * jax.lax.rsqrt(var + 1e-5) * g_ref[...] + bt_ref[...]
    h_ref[...] = h

    # Router logits (tiny GEMM, kept in f32 for routing/loss stability)
    logits = jnp.dot(h, wr_ref[...], preferred_element_type=jnp.float32) + br_ref[...]
    logits_ref[...] = logits
    E = logits.shape[-1]

    # Softmax (f32), computed once and reused for gates + loss
    m = jnp.max(logits, axis=-1, keepdims=True)
    ex = jnp.exp(logits - m)
    denom = jnp.sum(ex, axis=-1, keepdims=True)
    probs = ex / denom

    # Top-k selection (static loop, first-occurrence tie break), renormalized gates
    colf = jax.lax.broadcasted_iota(jnp.int32, probs.shape, 1).astype(jnp.float32)
    remaining = probs
    sel = jnp.zeros_like(probs)
    for _ in range(top_k):
        mx = jnp.max(remaining, axis=-1, keepdims=True)
        is_mx = remaining >= mx
        first_idx = jnp.min(jnp.where(is_mx, colf, float(E)),
                            axis=-1, keepdims=True)
        pick = colf == first_idx
        sel = jnp.where(pick, probs, sel)
        remaining = jnp.where(pick, -jnp.inf, remaining)
    gates_ref[...] = sel / jnp.sum(sel, axis=-1, keepdims=True)

    # Router loss accumulation over token tiles (masked against padding rows)
    mask = mask_ref[...]                                   # (tm, 1)

    @pl.when(i == 0)
    def _():
        usage_acc[...] = jnp.zeros_like(usage_acc)
        z_acc[...] = jnp.zeros_like(z_acc)

    usage_acc[...] += jnp.sum(probs * mask, axis=0, keepdims=True)
    lse = m + jnp.log(denom)                               # (tm, 1) logsumexp
    z_acc[...] += jnp.sum(jnp.square(lse) * mask, axis=0, keepdims=True)

    @pl.when(i == pl.num_programs(0) - 1)
    def _():
        usage = usage_acc[...] / n_valid                   # (1, E) expert usage
        target = 1.0 / E
        # F.kl_div(usage.log(), uniform, reduction='batchmean') with batch = E
        kl = jnp.sum(target * (jnp.log(target) - jnp.log(usage + 1e-20)),
                     axis=1, keepdims=True) / E
        loss_ref[...] = kl + 0.001 * (z_acc[...] / n_valid)


def ln_router_gates_loss(x, gamma, beta, wr, br, mask, top_k, n_valid, tm=512):
    M, D = x.shape
    E = wr.shape[1]
    tm = min(tm, _round_up(M, 8))
    Mp = _round_up(M, tm)
    xp = jnp.pad(x, ((0, Mp - M), (0, 0)))
    maskp = jnp.pad(mask, ((0, Mp - M), (0, 0)))

    h, gates, logits, loss = pl.pallas_call(
        functools.partial(_ln_router_kernel, top_k=top_k, n_valid=float(n_valid)),
        grid=(Mp // tm,),
        in_specs=[
            pl.BlockSpec((tm, D), lambda i: (i, 0)),
            pl.BlockSpec((1, D), lambda i: (0, 0)),
            pl.BlockSpec((1, D), lambda i: (0, 0)),
            pl.BlockSpec((D, E), lambda i: (0, 0)),
            pl.BlockSpec((1, E), lambda i: (0, 0)),
            pl.BlockSpec((tm, 1), lambda i: (i, 0)),
        ],
        out_specs=(
            pl.BlockSpec((tm, D), lambda i: (i, 0)),
            pl.BlockSpec((tm, E), lambda i: (i, 0)),
            pl.BlockSpec((tm, E), lambda i: (i, 0)),
            pl.BlockSpec((1, 1), lambda i: (0, 0)),
        ),
        out_shape=(
            jax.ShapeDtypeStruct((Mp, D), jnp.float32),
            jax.ShapeDtypeStruct((Mp, E), jnp.float32),
            jax.ShapeDtypeStruct((Mp, E), jnp.float32),
            jax.ShapeDtypeStruct((1, 1), jnp.float32),
        ),
        scratch_shapes=[pltpu.VMEM((1, E), jnp.float32),
                        pltpu.VMEM((1, 1), jnp.float32)],
        compiler_params=pltpu.CompilerParams(dimension_semantics=("arbitrary",)),
    )(xp, gamma.reshape(1, D), beta.reshape(1, D), wr, br.reshape(1, E), maskp)
    return h[:M], gates[:M], logits[:M], loss[0, 0]


# ----------------------------------------------------------------------------
# MoE FFN: grid over (token_tile, expert); per-expert weights streamed via
# BlockSpec; bias+GELU fused into the w1 GEMM epilogue; residual + gated
# combine accumulated directly in the resident output block.
# ----------------------------------------------------------------------------

def _moe_kernel(h_ref, g_ref, r_ref, w1_ref, b1_ref, w2_ref, b2_ref, o_ref):
    e = pl.program_id(1)

    @pl.when(e == 0)
    def _():
        o_ref[...] = r_ref[...]            # fused residual init

    h = h_ref[...].astype(jnp.bfloat16)
    a = jnp.dot(h, w1_ref[0], preferred_element_type=jnp.float32) + b1_ref[0]
    a = jax.nn.gelu(a)
    y = jnp.dot(a.astype(jnp.bfloat16), w2_ref[0],
                preferred_element_type=jnp.float32) + b2_ref[0]

    g = g_ref[...]                          # (tm, E) dense top-k gates
    eid = jax.lax.broadcasted_iota(jnp.int32, g.shape, 1)
    gcol = jnp.sum(jnp.where(eid == e, g, 0.0), axis=1, keepdims=True)
    o_ref[...] = o_ref[...] + gcol * y


def moe_ffn(h, gates, residual, w1, b1, w2, b2, tm=256):
    """TODO(synk): replace the dense all-experts loop with a grouped GEMM over
    expert-sorted tokens via PrefetchScalarGridSpec for large expert counts."""
    T, D = h.shape
    E, _, Hf = w1.shape
    tm = min(tm, _round_up(T, 8))
    Tp = _round_up(T, tm)
    hp = jnp.pad(h, ((0, Tp - T), (0, 0)))
    gp = jnp.pad(gates, ((0, Tp - T), (0, 0)))
    rp = jnp.pad(residual, ((0, Tp - T), (0, 0)))

    out = pl.pallas_call(
        _moe_kernel,
        grid=(Tp // tm, E),
        in_specs=[
            pl.BlockSpec((tm, D), lambda i, e: (i, 0)),
            pl.BlockSpec((tm, E), lambda i, e: (i, 0)),
            pl.BlockSpec((tm, D), lambda i, e: (i, 0)),
            pl.BlockSpec((1, D, Hf), lambda i, e: (e, 0, 0)),
            pl.BlockSpec((1, 1, Hf), lambda i, e: (e, 0, 0)),
            pl.BlockSpec((1, Hf, D), lambda i, e: (e, 0, 0)),
            pl.BlockSpec((1, 1, D), lambda i, e: (e, 0, 0)),
        ],
        out_specs=pl.BlockSpec((tm, D), lambda i, e: (i, 0)),
        out_shape=jax.ShapeDtypeStruct((Tp, D), jnp.float32),
        compiler_params=pltpu.CompilerParams(
            dimension_semantics=("parallel", "arbitrary")),
    )(hp, gp, rp, w1.astype(jnp.bfloat16), b1, w2.astype(jnp.bfloat16), b2)
    return out[:T]


# ----------------------------------------------------------------------------
# Parameter init (deterministic, matches module's __init__ shapes)
# ----------------------------------------------------------------------------

def init_params(key, cfg):
    D = cfg["embed_dim"]
    p = cfg["patch_size"]
    C = cfg["in_channels"]
    E = cfg["num_general_experts"]
    Hf = 4 * D
    ncls = cfg["num_classes"]
    num_patches = (cfg["img_size"] // p) ** 2
    S = num_patches + 1  # +1 for cls token

    keys = iter(jax.random.split(key, 256))

    def nrm(shape, std=0.02):
        return std * jax.random.normal(next(keys), shape, jnp.float32)

    params = {
        # Conv2d(D, C, p, p) expressed as (C*p*p, D) matmul weight.
        # TODO(synk): to load PyTorch conv weights, reshape (D,C,p,p)->(D,C*p*p).T
        "patch_w": nrm((C * p * p, D)),
        "patch_b": jnp.zeros((D,), jnp.float32),
        "cls_token": nrm((1, 1, D)),
        "pos_embed": nrm((1, S, D)),
        "norm_g": jnp.ones((D,), jnp.float32),
        "norm_b": jnp.zeros((D,), jnp.float32),
        "cls_w": nrm((D, ncls)),
        "cls_b": jnp.zeros((ncls,), jnp.float32),
        "layers": [],
    }
    for _ in range(cfg["img_encoder_layers"]):
        lyr = {
            "ln1_g": jnp.ones((D,), jnp.float32),
            "ln1_b": jnp.zeros((D,), jnp.float32),
            "wqkv": nrm((D, 3 * D)), "bqkv": jnp.zeros((3 * D,), jnp.float32),
            "wo": nrm((D, D)), "bo": jnp.zeros((D,), jnp.float32),
            "ln2_g": jnp.ones((D,), jnp.float32),
            "ln2_b": jnp.zeros((D,), jnp.float32),
            "wr": nrm((D, E)), "br": jnp.zeros((E,), jnp.float32),
            "w1": nrm((E, D, Hf)), "b1": jnp.zeros((E, 1, Hf), jnp.float32),
            "w2": nrm((E, Hf, D)), "b2": jnp.zeros((E, 1, D), jnp.float32),
        }
        params["layers"].append(lyr)
    return params


# ----------------------------------------------------------------------------
# Forward pass
# ----------------------------------------------------------------------------

def forward(params, images, cfg):
    B, C, H, W = images.shape
    p = cfg["patch_size"]
    D = cfg["embed_dim"]
    nH = cfg["num_heads"]
    dh = D // nH
    top_k = cfg["top_k"]

    # ---- patch embedding (conv k=p, stride=p == patch extract + matmul) ----
    gh, gw = H // p, W // p
    xp = images.reshape(B, C, gh, p, gw, p)
    xp = xp.transpose(0, 2, 4, 1, 3, 5).reshape(B * gh * gw, C * p * p)
    x = matmul_bias(xp, params["patch_w"], params["patch_b"])
    x = x.reshape(B, gh * gw, D)

    # ---- cls token + positional embedding (dropout == identity at eval) ----
    cls = jnp.broadcast_to(params["cls_token"], (B, 1, D))
    x = jnp.concatenate([cls, x], axis=1) + params["pos_embed"]
    S = x.shape[1]
    T = B * S
    x2 = x.reshape(T, D)
    valid = jnp.ones((T, 1), jnp.float32)      # mask for internal tile padding

    router_loss = jnp.float32(0.0)
    expert_activations = {}

    # ---- transformer MoE encoder (pre-norm) ----
    # TODO(synk): ImageEncoder internals are not given in the reference file; a
    # standard pre-norm MHA + top-k MoE-FFN block is used here.
    for li, lyr in enumerate(params["layers"]):
        # fused LN1 + QKV projection (single (D, 3D) GEMM)
        qkv = ln_matmul_bias(x2, lyr["ln1_g"], lyr["ln1_b"],
                             lyr["wqkv"], lyr["bqkv"])         # (T, 3D)
        q, k, v = jnp.split(qkv, 3, axis=1)

        def heads(t):
            return t.reshape(B, S, nH, dh).transpose(0, 2, 1, 3)

        attn = attention(heads(q), heads(k), heads(v))          # (B, nH, S, dh)
        attn = attn.transpose(0, 2, 1, 3).reshape(T, D)
        # output projection with fused residual add
        x2 = matmul_bias(attn, lyr["wo"], lyr["bo"], residual=x2)

        # fused LN2 + router + softmax + top-k gates + router loss
        h, gates, rlogits, loss_l = ln_router_gates_loss(
            x2, lyr["ln2_g"], lyr["ln2_b"], lyr["wr"], lyr["br"],
            valid, top_k, T)
        # MoE FFN with fused residual
        x2 = moe_ffn(h, gates, x2, lyr["w1"], lyr["b1"], lyr["w2"], lyr["b2"])

        router_loss = router_loss + loss_l
        expert_activations[li] = {"router_logits": rlogits}

    # ---- final norm on pooled cls token, classifier ----
    pooled_pre = x2.reshape(B, S, D)[:, 0]                      # pool_type='cls'
    embeddings = layernorm(pooled_pre, params["norm_g"], params["norm_b"])
    logits = matmul_bias(embeddings, params["cls_w"], params["cls_b"])

    return {
        "logits": logits,
        "embeddings": embeddings,
        "router_loss": router_loss,
        "expert_activations": expert_activations,
    }


# ----------------------------------------------------------------------------
# Main
# ----------------------------------------------------------------------------

if __name__ == "__main__":
    cfg = dict(
        img_size=16,
        patch_size=4,
        in_channels=4,
        num_classes=10,
        embed_dim=32,
        num_general_experts=4,
        top_k=2,
        num_heads=4,
        img_encoder_layers=2,
        pool_type="cls",
    )
    key = jax.random.PRNGKey(0)
    params = init_params(key, cfg)
    images = jax.random.normal(
        jax.random.fold_in(key, 999),
        (2, cfg["in_channels"], cfg["img_size"], cfg["img_size"]),
        jnp.float32)

    fwd = jax.jit(functools.partial(forward, cfg=cfg))
    out = fwd(params, images)
    jax.block_until_ready(out)

    assert out["logits"].shape == (2, cfg["num_classes"])
    assert out["embeddings"].shape == (2, cfg["embed_dim"])
    assert out["router_loss"].shape == ()
    assert bool(jnp.isfinite(out["router_loss"]))
    print("KERNEL_OK")
</pallas_src>

<mosaic_0001>
module attributes {stable_mosaic.version = 11 : i64} {
  func.func @_mm_bias_kernel(%arg0: i32, %arg1: i32, %arg2: i32, %arg3: memref<32x128xf32, #tpu.memory_space<vmem>>, %arg4: memref<128x128xbf16, #tpu.memory_space<vmem>>, %arg5: memref<1x128xf32, #tpu.memory_space<vmem>>, %arg6: memref<32x128xf32, #tpu.memory_space<vmem>>, %arg7: memref<32x128xf32, #tpu.memory_space<vmem>>) attributes {dimension_semantics = [#tpu.dimension_semantics<parallel>, #tpu.dimension_semantics<parallel>, #tpu.dimension_semantics<arbitrary>], iteration_bounds = array<i64: 1, 1, 1>, scalar_prefetch = 0 : i64, scratch_operands = 1 : i64, tpu.core_type = #tpu.core_type<tc>, window_params = [{transform_indices = @transform_0, window_bounds = array<i64: 32, 128>}, {transform_indices = @transform_1, window_bounds = array<i64: 128, 128>}, {transform_indices = @transform_2, window_bounds = array<i64: 1, 128>}, {transform_indices = @transform_3, window_bounds = array<i64: 32, 128>}]} {
    %c0_i32 = arith.constant 0 : i32
    %0 = arith.cmpi eq, %arg2, %c0_i32 : i32
    %1 = arith.extui %0 : i1 to i32
    %c0_i32_0 = arith.constant 0 : i32
    %2 = arith.cmpi ne, %1, %c0_i32_0 : i32
    scf.if %2 {
      %cst_10 = arith.constant 0.000000e+00 : f32
      %13 = vector.broadcast %cst_10 : f32 to vector<32x128xf32>
      %c0_11 = arith.constant 0 : index
      %c0_12 = arith.constant 0 : index
      %14 = vector.load %arg7[%c0_11, %c0_12] : memref<32x128xf32, #tpu.memory_space<vmem>>, vector<32x128xf32>
      tpu.vector_store %arg7[%c0_11, %c0_12], %13 {strides = array<i32>} : memref<32x128xf32, #tpu.memory_space<vmem>>, vector<32x128xf32>,
    } else {
    }
    %c0 = arith.constant 0 : index
    %c0_1 = arith.constant 0 : index
    %3 = vector.load %arg7[%c0, %c0_1] : memref<32x128xf32, #tpu.memory_space<vmem>>, vector<32x128xf32>
    %c0_2 = arith.constant 0 : index
    %c0_3 = arith.constant 0 : index
    %4 = vector.load %arg3[%c0_2, %c0_3] : memref<32x128xf32, #tpu.memory_space<vmem>>, vector<32x128xf32>
    %5 = arith.truncf %4 : vector<32x128xf32> to vector<32x128xbf16>
    %c0_4 = arith.constant 0 : index
    %c0_5 = arith.constant 0 : index
    %6 = vector.load %arg4[%c0_4, %c0_5] : memref<128x128xbf16, #tpu.memory_space<vmem>>, vector<128x128xbf16>
    %cst = arith.constant dense<0.000000e+00> : vector<32x128xf32>
    %7 = tpu.matmul %5, %6, %cst {dimension_numbers = #tpu.dot_dimension_numbers<[1], [0], [0], [1], [0, 0, 1, 1], [], []>} : vector<32x128xbf16>, vector<128x128xbf16>, vector<32x128xf32> -> vector<32x128xf32>
    %8 = arith.addf %3, %7 : vector<32x128xf32>
    %c0_6 = arith.constant 0 : index
    %c0_7 = arith.constant 0 : index
    %9 = vector.load %arg7[%c0_6, %c0_7] : memref<32x128xf32, #tpu.memory_space<vmem>>, vector<32x128xf32>
    tpu.vector_store %arg7[%c0_6, %c0_7], %8 {strides = array<i32>} : memref<32x128xf32, #tpu.memory_space<vmem>>, vector<32x128xf32>,
    %c0_i32_8 = arith.constant 0 : i32
    %10 = arith.cmpi eq, %arg2, %c0_i32_8 : i32
    %11 = arith.extui %10 : i1 to i32
    %c0_i32_9 = arith.constant 0 : i32
    %12 = arith.cmpi ne, %11, %c0_i32_9 : i32
    scf.if %12 {
      %c0_10 = arith.constant 0 : index
      %c0_11 = arith.constant 0 : index
      %13 = vector.load %arg7[%c0_10, %c0_11] : memref<32x128xf32, #tpu.memory_space<vmem>>, vector<32x128xf32>
      %c0_12 = arith.constant 0 : index
      %c0_13 = arith.constant 0 : index
      %14 = vector.load %arg5[%c0_12, %c0_13] : memref<1x128xf32, #tpu.memory_space<vmem>>, vector<1x128xf32>
      %15 = vector.broadcast %14 : vector<1x128xf32> to vector<32x128xf32>
      %16 = arith.addf %13, %15 : vector<32x128xf32>
      %c0_14 = arith.constant 0 : index
      %c0_15 = arith.constant 0 : index
      %17 = vector.load %arg6[%c0_14, %c0_15] : memref<32x128xf32, #tpu.memory_space<vmem>>, vector<32x128xf32>
      tpu.vector_store %arg6[%c0_14, %c0_15], %16 {strides = array<i32>} : memref<32x128xf32, #tpu.memory_space<vmem>>, vector<32x128xf32>,
    } else {
    }
    return
  }
  func.func @transform_0(%arg0: i32, %arg1: i32, %arg2: i32) -> (i32, i32) {
    %c0_i32 = arith.constant 0 : i32
    return %arg0, %arg2 : i32, i32
  }
  func.func @transform_1(%arg0: i32, %arg1: i32, %arg2: i32) -> (i32, i32) {
    %c0_i32 = arith.constant 0 : i32
    return %arg2, %arg1 : i32, i32
  }
  func.func @transform_2(%arg0: i32, %arg1: i32, %arg2: i32) -> (i32, i32) {
    %c0_i32 = arith.constant 0 : i32
    %c0_i32_0 = arith.constant 0 : i32
    return %c0_i32, %arg1 : i32, i32
  }
  func.func @transform_3(%arg0: i32, %arg1: i32, %arg2: i32) -> (i32, i32) {
    %c0_i32 = arith.constant 0 : i32
    return %arg0, %arg1 : i32, i32
  }
}

module attributes {stable_mosaic.version = 11 : i64} {
  func.func @_ln_mm_kernel(%arg0: i32, %arg1: i32, %arg2: memref<40x32xf32, #tpu.memory_space<vmem>>, %arg3: memref<1x32xf32, #tpu.memory_space<vmem>>, %arg4: memref<1x32xf32, #tpu.memory_space<vmem>>, %arg5: memref<32x128xbf16, #tpu.memory_space<vmem>>, %arg6: memref<1x128xf32, #tpu.memory_space<vmem>>, %arg7: memref<40x128xf32, #tpu.memory_space<vmem>>) attributes {dimension_semantics = [#tpu.dimension_semantics<parallel>, #tpu.dimension_semantics<parallel>], iteration_bounds = array<i64: 1, 1>, scalar_prefetch = 0 : i64, scratch_operands = 0 : i64, tpu.core_type = #tpu.core_type<tc>, window_params = [{transform_indices = @transform_0, window_bounds = array<i64: 40, 32>}, {pipeline_mode = #tpu.pipeline_mode<synchronous>, transform_indices = @transform_1, window_bounds = array<i64: 1, 32>}, {pipeline_mode = #tpu.pipeline_mode<synchronous>, transform_indices = @transform_2, window_bounds = array<i64: 1, 32>}, {transform_indices = @transform_3, window_bounds = array<i64: 32, 128>}, {transform_indices = @transform_4, window_bounds = array<i64: 1, 128>}, {transform_indices = @transform_5, window_bounds = array<i64: 40, 128>}]} {
    %c0 = arith.constant 0 : index
    %c0_0 = arith.constant 0 : index
    %0 = vector.load %arg2[%c0, %c0_0] : memref<40x32xf32, #tpu.memory_space<vmem>>, vector<40x32xf32>
    %cst = arith.constant dense<0.000000e+00> : vector<40xf32>
    %1 = vector.multi_reduction <add>, %0, %cst [1] : vector<40x32xf32> to vector<40xf32>
    %2 = vector.shape_cast %1 : vector<40xf32> to vector<40x1xf32>
    %cst_1 = arith.constant 3.200000e+01 : f32
    %3 = vector.broadcast %cst_1 : f32 to vector<40x1xf32>
    %4 = arith.divf %2, %3 : vector<40x1xf32>
    %5 = vector.broadcast %4 : vector<40x1xf32> to vector<40x32xf32>
    %6 = arith.subf %0, %5 : vector<40x32xf32>
    %7 = arith.mulf %6, %6 : vector<40x32xf32>
    %cst_2 = arith.constant dense<0.000000e+00> : vector<40xf32>
    %8 = vector.multi_reduction <add>, %7, %cst_2 [1] : vector<40x32xf32> to vector<40xf32>
    %9 = vector.shape_cast %8 : vector<40xf32> to vector<40x1xf32>
    %cst_3 = arith.constant 3.200000e+01 : f32
    %10 = vector.broadcast %cst_3 : f32 to vector<40x1xf32>
    %11 = arith.divf %9, %10 : vector<40x1xf32>
    %12 = vector.broadcast %4 : vector<40x1xf32> to vector<40x32xf32>
    %13 = arith.subf %0, %12 : vector<40x32xf32>
    %cst_4 = arith.constant 9.99999974E-6 : f32
    %14 = vector.broadcast %cst_4 : f32 to vector<40x1xf32>
    %15 = arith.addf %11, %14 : vector<40x1xf32>
    %16 = math.rsqrt %15 : vector<40x1xf32>
    %17 = vector.broadcast %16 : vector<40x1xf32> to vector<40x32xf32>
    %18 = arith.mulf %13, %17 : vector<40x32xf32>
    %c0_5 = arith.constant 0 : index
    %c0_6 = arith.constant 0 : index
    %19 = vector.load %arg3[%c0_5, %c0_6] : memref<1x32xf32, #tpu.memory_space<vmem>>, vector<1x32xf32>
    %20 = vector.broadcast %19 : vector<1x32xf32> to vector<40x32xf32>
    %21 = arith.mulf %18, %20 : vector<40x32xf32>
    %c0_7 = arith.constant 0 : index
    %c0_8 = arith.constant 0 : index
    %22 = vector.load %arg4[%c0_7, %c0_8] : memref<1x32xf32, #tpu.memory_space<vmem>>, vector<1x32xf32>
    %23 = vector.broadcast %22 : vector<1x32xf32> to vector<40x32xf32>
    %24 = arith.addf %21, %23 : vector<40x32xf32>
    %25 = arith.truncf %24 : vector<40x32xf32> to vector<40x32xbf16>
    %c0_9 = arith.constant 0 : index
    %c0_10 = arith.constant 0 : index
    %26 = vector.load %arg5[%c0_9, %c0_10] : memref<32x128xbf16, #tpu.memory_space<vmem>>, vector<32x128xbf16>
    %cst_11 = arith.constant dense<0.000000e+00> : vector<40x128xf32>
    %27 = tpu.matmul %25, %26, %cst_11 {dimension_numbers = #tpu.dot_dimension_numbers<[1], [0], [0], [1], [0, 0, 1, 1], [], []>} : vector<40x32xbf16>, vector<32x128xbf16>, vector<40x128xf32> -> vector<40x128xf32>
    %c0_12 = arith.constant 0 : index
    %c0_13 = arith.constant 0 : index
    %28 = vector.load %arg6[%c0_12, %c0_13] : memref<1x128xf32, #tpu.memory_space<vmem>>, vector<1x128xf32>
    %29 = vector.broadcast %28 : vector<1x128xf32> to vector<40x128xf32>
    %30 = arith.addf %27, %29 : vector<40x128xf32>
    %c0_14 = arith.constant 0 : index
    %c0_15 = arith.constant 0 : index
    %31 = vector.load %arg7[%c0_14, %c0_15] : memref<40x128xf32, #tpu.memory_space<vmem>>, vector<40x128xf32>
    tpu.vector_store %arg7[%c0_14, %c0_15], %30 {strides = array<i32>} : memref<40x128xf32, #tpu.memory_space<vmem>>, vector<40x128xf32>,
    return
  }
  func.func @transform_0(%arg0: i32, %arg1: i32) -> (i32, i32) {
    %c0_i32 = arith.constant 0 : i32
    %c0_i32_0 = arith.constant 0 : i32
    return %arg0, %c0_i32 : i32, i32
  }
  func.func @transform_1(%arg0: i32, %arg1: i32) -> (i32, i32) {
    %c0_i32 = arith.constant 0 : i32
    %c0_i32_0 = arith.constant 0 : i32
    %c0_i32_1 = arith.constant 0 : i32
    return %c0_i32, %c0_i32_0 : i32, i32
  }
  func.func @transform_2(%arg0: i32, %arg1: i32) -> (i32, i32) {
    %c0_i32 = arith.constant 0 : i32
    %c0_i32_0 = arith.constant 0 : i32
    %c0_i32_1 = arith.constant 0 : i32
    return %c0_i32, %c0_i32_0 : i32, i32
  }
  func.func @transform_3(%arg0: i32, %arg1: i32) -> (i32, i32) {
    %c0_i32 = arith.constant 0 : i32
    %c0_i32_0 = arith.constant 0 : i32
    return %c0_i32, %arg1 : i32, i32
  }
  func.func @transform_4(%arg0: i32, %arg1: i32) -> (i32, i32) {
    %c0_i32 = arith.constant 0 : i32
    %c0_i32_0 = arith.constant 0 : i32
    return %c0_i32, %arg1 : i32, i32
  }
  func.func @transform_5(%arg0: i32, %arg1: i32) -> (i32, i32) {
    %c0_i32 = arith.constant 0 : i32
    return %arg0, %arg1 : i32, i32
  }
}

module attributes {stable_mosaic.version = 11 : i64} {
  func.func @_attention_kernel(%arg0: i32, %arg1: memref<1x4x17x8xf32, #tpu.memory_space<vmem>>, %arg2: memref<1x4x17x8xf32, #tpu.memory_space<vmem>>, %arg3: memref<1x4x17x8xf32, #tpu.memory_space<vmem>>, %arg4: memref<1x4x17x8xf32, #tpu.memory_space<vmem>>) attributes {dimension_semantics = [#tpu.dimension_semantics<parallel>], iteration_bounds = array<i64: 2>, scalar_prefetch = 0 : i64, scratch_operands = 0 : i64, tpu.core_type = #tpu.core_type<tc>, window_params = [{transform_indices = @transform_0, window_bounds = array<i64: 1, 4, 17, 8>}, {transform_indices = @transform_1, window_bounds = array<i64: 1, 4, 17, 8>}, {transform_indices = @transform_2, window_bounds = array<i64: 1, 4, 17, 8>}, {transform_indices = @transform_3, window_bounds = array<i64: 1, 4, 17, 8>}]} {
    %c0 = arith.constant 0 : index
    %c0_0 = arith.constant 0 : index
    %c0_1 = arith.constant 0 : index
    %c0_2 = arith.constant 0 : index
    %0 = vector.load %arg1[%c0, %c0_0, %c0_1, %c0_2] : memref<1x4x17x8xf32, #tpu.memory_space<vmem>>, vector<1x4x17x8xf32>
    %1 = vector.shape_cast %0 : vector<1x4x17x8xf32> to vector<4x17x8xf32>
    %2 = arith.truncf %1 : vector<4x17x8xf32> to vector<4x17x8xbf16>
    %c0_3 = arith.constant 0 : index
    %c0_4 = arith.constant 0 : index
    %c0_5 = arith.constant 0 : index
    %c0_6 = arith.constant 0 : index
    %3 = vector.load %arg2[%c0_3, %c0_4, %c0_5, %c0_6] : memref<1x4x17x8xf32, #tpu.memory_space<vmem>>, vector<1x4x17x8xf32>
    %4 = vector.shape_cast %3 : vector<1x4x17x8xf32> to vector<4x17x8xf32>
    %5 = arith.truncf %4 : vector<4x17x8xf32> to vector<4x17x8xbf16>
    %c0_7 = arith.constant 0 : index
    %c0_8 = arith.constant 0 : index
    %c0_9 = arith.constant 0 : index
    %c0_10 = arith.constant 0 : index
    %6 = vector.load %arg3[%c0_7, %c0_8, %c0_9, %c0_10] : memref<1x4x17x8xf32, #tpu.memory_space<vmem>>, vector<1x4x17x8xf32>
    %7 = vector.shape_cast %6 : vector<1x4x17x8xf32> to vector<4x17x8xf32>
    %8 = arith.truncf %7 : vector<4x17x8xf32> to vector<4x17x8xbf16>
    "tpu.trace_start"() <{level = 10 : i32, message = "hqd,hkd->hqk"}> : () -> ()
    %cst = arith.constant dense<0.000000e+00> : vector<4x17x17xf32>
    %9 = tpu.matmul %2, %5, %cst {dimension_numbers = #tpu.dot_dimension_numbers<[2], [2], [1], [1], [0, 0, 0, 1, 1, 1], [0], [0]>} : vector<4x17x8xbf16>, vector<4x17x8xbf16>, vector<4x17x17xf32> -> vector<4x17x17xf32>
    "tpu.trace_stop"() : () -> ()
    %cst_11 = arith.constant 0.353553385 : f32
    %10 = vector.broadcast %cst_11 : f32 to vector<4x17x17xf32>
    %11 = arith.mulf %9, %10 : vector<4x17x17xf32>
    %cst_12 = arith.constant dense<0xFF800000> : vector<4x17xf32>
    %12 = vector.multi_reduction <maximumf>, %11, %cst_12 [2] : vector<4x17x17xf32> to vector<4x17xf32>
    %13 = vector.shape_cast %12 : vector<4x17xf32> to vector<4x17x1xf32>
    %14 = vector.broadcast %13 : vector<4x17x1xf32> to vector<4x17x17xf32>
    %15 = arith.subf %11, %14 : vector<4x17x17xf32>
    %16 = math.exp %15 : vector<4x17x17xf32>
    %cst_13 = arith.constant dense<0.000000e+00> : vector<4x17xf32>
    %17 = vector.multi_reduction <add>, %16, %cst_13 [2] : vector<4x17x17xf32> to vector<4x17xf32>
    %18 = vector.shape_cast %17 : vector<4x17xf32> to vector<4x17x1xf32>
    %19 = tpu.reciprocal %18 {approx = true} : vector<4x17x1xf32> -> vector<4x17x1xf32>
    %20 = vector.broadcast %19 : vector<4x17x1xf32> to vector<4x17x17xf32>
    %21 = arith.mulf %16, %20 : vector<4x17x17xf32>
    %22 = arith.truncf %21 : vector<4x17x17xf32> to vector<4x17x17xbf16>
    "tpu.trace_start"() <{level = 10 : i32, message = "hqk,hkd->hqd"}> : () -> ()
    %cst_14 = arith.constant dense<0.000000e+00> : vector<4x17x8xf32>
    %23 = tpu.matmul %22, %8, %cst_14 {dimension_numbers = #tpu.dot_dimension_numbers<[2], [1], [1], [2], [0, 0, 0, 1, 1, 2], [0], [0]>} : vector<4x17x17xbf16>, vector<4x17x8xbf16>, vector<4x17x8xf32> -> vector<4x17x8xf32>
    "tpu.trace_stop"() : () -> ()
    %c0_15 = arith.constant 0 : index
    %c0_16 = arith.constant 0 : index
    %c0_17 = arith.constant 0 : index
    %c0_18 = arith.constant 0 : index
    %24 = vector.load %arg4[%c0_15, %c0_16, %c0_17, %c0_18] : memref<1x4x17x8xf32, #tpu.memory_space<vmem>>, vector<1x4x17x8xf32>
    %25 = vector.shape_cast %24 : vector<1x4x17x8xf32> to vector<4x17x8xf32>
    %26 = vector.shape_cast %23 : vector<4x17x8xf32> to vector<1x4x17x8xf32>
    tpu.vector_store %arg4[%c0_15, %c0_16, %c0_17, %c0_18], %26 {strides = array<i32>} : memref<1x4x17x8xf32, #tpu.memory_space<vmem>>, vector<1x4x17x8xf32>,
    return
  }
  func.func @transform_0(%arg0: i32) -> (i32, i32, i32, i32) {
    %c0_i32 = arith.constant 0 : i32
    %c0_i32_0 = arith.constant 0 : i32
    %c0_i32_1 = arith.constant 0 : i32
    %c0_i32_2 = arith.constant 0 : i32
    return %arg0, %c0_i32, %c0_i32_0, %c0_i32_1 : i32, i32, i32, i32
  }
  func.func @transform_1(%arg0: i32) -> (i32, i32, i32, i32) {
    %c0_i32 = arith.constant 0 : i32
    %c0_i32_0 = arith.constant 0 : i32
    %c0_i32_1 = arith.constant 0 : i32
    %c0_i32_2 = arith.constant 0 : i32
    return %arg0, %c0_i32, %c0_i32_0, %c0_i32_1 : i32, i32, i32, i32
  }
  func.func @transform_2(%arg0: i32) -> (i32, i32, i32, i32) {
    %c0_i32 = arith.constant 0 : i32
    %c0_i32_0 = arith.constant 0 : i32
    %c0_i32_1 = arith.constant 0 : i32
    %c0_i32_2 = arith.constant 0 : i32
    return %arg0, %c0_i32, %c0_i32_0, %c0_i32_1 : i32, i32, i32, i32
  }
  func.func @transform_3(%arg0: i32) -> (i32, i32, i32, i32) {
    %c0_i32 = arith.constant 0 : i32
    %c0_i32_0 = arith.constant 0 : i32
    %c0_i32_1 = arith.constant 0 : i32
    %c0_i32_2 = arith.constant 0 : i32
    return %arg0, %c0_i32, %c0_i32_0, %c0_i32_1 : i32, i32, i32, i32
  }
}

module attributes {stable_mosaic.version = 11 : i64} {
  func.func @_mm_bias_res_kernel(%arg0: i32, %arg1: i32, %arg2: i32, %arg3: memref<40x128xf32, #tpu.memory_space<vmem>>, %arg4: memref<128x128xbf16, #tpu.memory_space<vmem>>, %arg5: memref<1x128xf32, #tpu.memory_space<vmem>>, %arg6: memref<40x128xf32, #tpu.memory_space<vmem>>, %arg7: memref<40x128xf32, #tpu.memory_space<vmem>>, %arg8: memref<40x128xf32, #tpu.memory_space<vmem>>) attributes {dimension_semantics = [#tpu.dimension_semantics<parallel>, #tpu.dimension_semantics<parallel>, #tpu.dimension_semantics<arbitrary>], iteration_bounds = array<i64: 1, 1, 1>, scalar_prefetch = 0 : i64, scratch_operands = 1 : i64, tpu.core_type = #tpu.core_type<tc>, window_params = [{transform_indices = @transform_0, window_bounds = array<i64: 40, 128>}, {transform_indices = @transform_1, window_bounds = array<i64: 128, 128>}, {transform_indices = @transform_2, window_bounds = array<i64: 1, 128>}, {transform_indices = @transform_3, window_bounds = array<i64: 40, 128>}, {transform_indices = @transform_4, window_bounds = array<i64: 40, 128>}]} {
    %c0_i32 = arith.constant 0 : i32
    %0 = arith.cmpi eq, %arg2, %c0_i32 : i32
    %1 = arith.extui %0 : i1 to i32
    %c0_i32_0 = arith.constant 0 : i32
    %2 = arith.cmpi ne, %1, %c0_i32_0 : i32
    scf.if %2 {
      %cst_10 = arith.constant 0.000000e+00 : f32
      %13 = vector.broadcast %cst_10 : f32 to vector<40x128xf32>
      %c0_11 = arith.constant 0 : index
      %c0_12 = arith.constant 0 : index
      %14 = vector.load %arg8[%c0_11, %c0_12] : memref<40x128xf32, #tpu.memory_space<vmem>>, vector<40x128xf32>
      tpu.vector_store %arg8[%c0_11, %c0_12], %13 {strides = array<i32>} : memref<40x128xf32, #tpu.memory_space<vmem>>, vector<40x128xf32>,
    } else {
    }
    %c0 = arith.constant 0 : index
    %c0_1 = arith.constant 0 : index
    %3 = vector.load %arg8[%c0, %c0_1] : memref<40x128xf32, #tpu.memory_space<vmem>>, vector<40x128xf32>
    %c0_2 = arith.constant 0 : index
    %c0_3 = arith.constant 0 : index
    %4 = vector.load %arg3[%c0_2, %c0_3] : memref<40x128xf32, #tpu.memory_space<vmem>>, vector<40x128xf32>
    %5 = arith.truncf %4 : vector<40x128xf32> to vector<40x128xbf16>
    %c0_4 = arith.constant 0 : index
    %c0_5 = arith.constant 0 : index
    %6 = vector.load %arg4[%c0_4, %c0_5] : memref<128x128xbf16, #tpu.memory_space<vmem>>, vector<128x128xbf16>
    %cst = arith.constant dense<0.000000e+00> : vector<40x128xf32>
    %7 = tpu.matmul %5, %6, %cst {dimension_numbers = #tpu.dot_dimension_numbers<[1], [0], [0], [1], [0, 0, 1, 1], [], []>} : vector<40x128xbf16>, vector<128x128xbf16>, vector<40x128xf32> -> vector<40x128xf32>
    %8 = arith.addf %3, %7 : vector<40x128xf32>
    %c0_6 = arith.constant 0 : index
    %c0_7 = arith.constant 0 : index
    %9 = vector.load %arg8[%c0_6, %c0_7] : memref<40x128xf32, #tpu.memory_space<vmem>>, vector<40x128xf32>
    tpu.vector_store %arg8[%c0_6, %c0_7], %8 {strides = array<i32>} : memref<40x128xf32, #tpu.memory_space<vmem>>, vector<40x128xf32>,
    %c0_i32_8 = arith.constant 0 : i32
    %10 = arith.cmpi eq, %arg2, %c0_i32_8 : i32
    %11 = arith.extui %10 : i1 to i32
    %c0_i32_9 = arith.constant 0 : i32
    %12 = arith.cmpi ne, %11, %c0_i32_9 : i32
    scf.if %12 {
      %c0_10 = arith.constant 0 : index
      %c0_11 = arith.constant 0 : index
      %13 = vector.load %arg8[%c0_10, %c0_11] : memref<40x128xf32, #tpu.memory_space<vmem>>, vector<40x128xf32>
      %c0_12 = arith.constant 0 : index
      %c0_13 = arith.constant 0 : index
      %14 = vector.load %arg5[%c0_12, %c0_13] : memref<1x128xf32, #tpu.memory_space<vmem>>, vector<1x128xf32>
      %15 = vector.broadcast %14 : vector<1x128xf32> to vector<40x128xf32>
      %16 = arith.addf %13, %15 : vector<40x128xf32>
      %c0_14 = arith.constant 0 : index
      %c0_15 = arith.constant 0 : index
      %17 = vector.load %arg6[%c0_14, %c0_15] : memref<40x128xf32, #tpu.memory_space<vmem>>, vector<40x128xf32>
      %18 = arith.addf %16, %17 : vector<40x128xf32>
      %c0_16 = arith.constant 0 : index
      %c0_17 = arith.constant 0 : index
      %19 = vector.load %arg7[%c0_16, %c0_17] : memref<40x128xf32, #tpu.memory_space<vmem>>, vector<40x128xf32>
      tpu.vector_store %arg7[%c0_16, %c0_17], %18 {strides = array<i32>} : memref<40x128xf32, #tpu.memory_space<vmem>>, vector<40x128xf32>,
    } else {
    }
    return
  }
  func.func @transform_0(%arg0: i32, %arg1: i32, %arg2: i32) -> (i32, i32) {
    %c0_i32 = arith.constant 0 : i32
    return %arg0, %arg2 : i32, i32
  }
  func.func @transform_1(%arg0: i32, %arg1: i32, %arg2: i32) -> (i32, i32) {
    %c0_i32 = arith.constant 0 : i32
    return %arg2, %arg1 : i32, i32
  }
  func.func @transform_2(%arg0: i32, %arg1: i32, %arg2: i32) -> (i32, i32) {
    %c0_i32 = arith.constant 0 : i32
    %c0_i32_0 = arith.constant 0 : i32
    return %c0_i32, %arg1 : i32, i32
  }
  func.func @transform_3(%arg0: i32, %arg1: i32, %arg2: i32) -> (i32, i32) {
    %c0_i32 = arith.constant 0 : i32
    return %arg0, %arg1 : i32, i32
  }
  func.func @transform_4(%arg0: i32, %arg1: i32, %arg2: i32) -> (i32, i32) {
    %c0_i32 = arith.constant 0 : i32
    return %arg0, %arg1 : i32, i32
  }
}

module attributes {stable_mosaic.version = 11 : i64} {
  func.func @_ln_router_kernel(%arg0: i32, %arg1: memref<40x32xf32, #tpu.memory_space<vmem>>, %arg2: memref<1x32xf32, #tpu.memory_space<vmem>>, %arg3: memref<1x32xf32, #tpu.memory_space<vmem>>, %arg4: memref<32x4xf32, #tpu.memory_space<vmem>>, %arg5: memref<1x4xf32, #tpu.memory_space<vmem>>, %arg6: memref<40x1xf32, #tpu.memory_space<vmem>>, %arg7: memref<40x32xf32, #tpu.memory_space<vmem>>, %arg8: memref<40x4xf32, #tpu.memory_space<vmem>>, %arg9: memref<40x4xf32, #tpu.memory_space<vmem>>, %arg10: memref<1x1xf32, #tpu.memory_space<vmem>>, %arg11: memref<1x4xf32, #tpu.memory_space<vmem>>, %arg12: memref<1x1xf32, #tpu.memory_space<vmem>>) attributes {dimension_semantics = [#tpu.dimension_semantics<arbitrary>], iteration_bounds = array<i64: 1>, scalar_prefetch = 0 : i64, scratch_operands = 2 : i64, tpu.core_type = #tpu.core_type<tc>, window_params = [{transform_indices = @transform_0, window_bounds = array<i64: 40, 32>}, {pipeline_mode = #tpu.pipeline_mode<synchronous>, transform_indices = @transform_1, window_bounds = array<i64: 1, 32>}, {pipeline_mode = #tpu.pipeline_mode<synchronous>, transform_indices = @transform_2, window_bounds = array<i64: 1, 32>}, {pipeline_mode = #tpu.pipeline_mode<synchronous>, transform_indices = @transform_3, window_bounds = array<i64: 32, 4>}, {pipeline_mode = #tpu.pipeline_mode<synchronous>, transform_indices = @transform_4, window_bounds = array<i64: 1, 4>}, {transform_indices = @transform_5, window_bounds = array<i64: 40, 1>}, {transform_indices = @transform_6, window_bounds = array<i64: 40, 32>}, {transform_indices = @transform_7, window_bounds = array<i64: 40, 4>}, {transform_indices = @transform_8, window_bounds = array<i64: 40, 4>}, {pipeline_mode = #tpu.pipeline_mode<synchronous>, transform_indices = @transform_9, window_bounds = array<i64: 1, 1>}]} {
    %c0 = arith.constant 0 : index
    %c0_0 = arith.constant 0 : index
    %0 = vector.load %arg1[%c0, %c0_0] : memref<40x32xf32, #tpu.memory_space<vmem>>, vector<40x32xf32>
    %cst = arith.constant dense<0.000000e+00> : vector<40xf32>
    %1 = vector.multi_reduction <add>, %0, %cst [1] : vector<40x32xf32> to vector<40xf32>
    %2 = vector.shape_cast %1 : vector<40xf32> to vector<40x1xf32>
    %cst_1 = arith.constant 3.200000e+01 : f32
    %3 = vector.broadcast %cst_1 : f32 to vector<40x1xf32>
    %4 = arith.divf %2, %3 : vector<40x1xf32>
    %5 = vector.broadcast %4 : vector<40x1xf32> to vector<40x32xf32>
    %6 = arith.subf %0, %5 : vector<40x32xf32>
    %7 = arith.mulf %6, %6 : vector<40x32xf32>
    %cst_2 = arith.constant dense<0.000000e+00> : vector<40xf32>
    %8 = vector.multi_reduction <add>, %7, %cst_2 [1] : vector<40x32xf32> to vector<40xf32>
    %9 = vector.shape_cast %8 : vector<40xf32> to vector<40x1xf32>
    %cst_3 = arith.constant 3.200000e+01 : f32
    %10 = vector.broadcast %cst_3 : f32 to vector<40x1xf32>
    %11 = arith.divf %9, %10 : vector<40x1xf32>
    %12 = vector.broadcast %4 : vector<40x1xf32> to vector<40x32xf32>
    %13 = arith.subf %0, %12 : vector<40x32xf32>
    %cst_4 = arith.constant 9.99999974E-6 : f32
    %14 = vector.broadcast %cst_4 : f32 to vector<40x1xf32>
    %15 = arith.addf %11, %14 : vector<40x1xf32>
    %16 = math.rsqrt %15 : vector<40x1xf32>
    %17 = vector.broadcast %16 : vector<40x1xf32> to vector<40x32xf32>
    %18 = arith.mulf %13, %17 : vector<40x32xf32>
    %c0_5 = arith.constant 0 : index
    %c0_6 = arith.constant 0 : index
    %19 = vector.load %arg2[%c0_5, %c0_6] : memref<1x32xf32, #tpu.memory_space<vmem>>, vector<1x32xf32>
    %20 = vector.broadcast %19 : vector<1x32xf32> to vector<40x32xf32>
    %21 = arith.mulf %18, %20 : vector<40x32xf32>
    %c0_7 = arith.constant 0 : index
    %c0_8 = arith.constant 0 : index
    %22 = vector.load %arg3[%c0_7, %c0_8] : memref<1x32xf32, #tpu.memory_space<vmem>>, vector<1x32xf32>
    %23 = vector.broadcast %22 : vector<1x32xf32> to vector<40x32xf32>
    %24 = arith.addf %21, %23 : vector<40x32xf32>
    %c0_9 = arith.constant 0 : index
    %c0_10 = arith.constant 0 : index
    %25 = vector.load %arg7[%c0_9, %c0_10] : memref<40x32xf32, #tpu.memory_space<vmem>>, vector<40x32xf32>
    tpu.vector_store %arg7[%c0_9, %c0_10], %24 {strides = array<i32>} : memref<40x32xf32, #tpu.memory_space<vmem>>, vector<40x32xf32>,
    %c0_11 = arith.constant 0 : index
    %c0_12 = arith.constant 0 : index
    %26 = vector.load %arg4[%c0_11, %c0_12] : memref<32x4xf32, #tpu.memory_space<vmem>>, vector<32x4xf32>
    %cst_13 = arith.constant dense<0.000000e+00> : vector<40x4xf32>
    %27 = tpu.matmul %24, %26, %cst_13 {dimension_numbers = #tpu.dot_dimension_numbers<[1], [0], [0], [1], [0, 0, 1, 1], [], []>} : vector<40x32xf32>, vector<32x4xf32>, vector<40x4xf32> -> vector<40x4xf32>
    %c0_14 = arith.constant 0 : index
    %c0_15 = arith.constant 0 : index
    %28 = vector.load %arg5[%c0_14, %c0_15] : memref<1x4xf32, #tpu.memory_space<vmem>>, vector<1x4xf32>
    %29 = vector.broadcast %28 : vector<1x4xf32> to vector<40x4xf32>
    %30 = arith.addf %27, %29 : vector<40x4xf32>
    %c0_16 = arith.constant 0 : index
    %c0_17 = arith.constant 0 : index
    %31 = vector.load %arg9[%c0_16, %c0_17] : memref<40x4xf32, #tpu.memory_space<vmem>>, vector<40x4xf32>
    tpu.vector_store %arg9[%c0_16, %c0_17], %30 {strides = array<i32>} : memref<40x4xf32, #tpu.memory_space<vmem>>, vector<40x4xf32>,
    %cst_18 = arith.constant dense<0xFF800000> : vector<40xf32>
    %32 = vector.multi_reduction <maximumf>, %30, %cst_18 [1] : vector<40x4xf32> to vector<40xf32>
    %33 = vector.shape_cast %32 : vector<40xf32> to vector<40x1xf32>
    %34 = vector.broadcast %33 : vector<40x1xf32> to vector<40x4xf32>
    %35 = arith.subf %30, %34 : vector<40x4xf32>
    %36 = math.exp %35 : vector<40x4xf32>
    %cst_19 = arith.constant dense<0.000000e+00> : vector<40xf32>
    %37 = vector.multi_reduction <add>, %36, %cst_19 [1] : vector<40x4xf32> to vector<40xf32>
    %38 = vector.shape_cast %37 : vector<40xf32> to vector<40x1xf32>
    %39 = vector.broadcast %38 : vector<40x1xf32> to vector<40x4xf32>
    %40 = arith.divf %36, %39 : vector<40x4xf32>
    %41 = tpu.iota {dimensions = array<i32: 1>} : vector<40x4xi32>
    %42 = arith.sitofp %41 : vector<40x4xi32> to vector<40x4xf32>
    %cst_20 = arith.constant 0.000000e+00 : f32
    %43 = vector.broadcast %cst_20 : f32 to vector<40x4xf32>
    %cst_21 = arith.constant dense<0xFF800000> : vector<40xf32>
    %44 = vector.multi_reduction <maximumf>, %40, %cst_21 [1] : vector<40x4xf32> to vector<40xf32>
    %45 = vector.shape_cast %44 : vector<40xf32> to vector<40x1xf32>
    %46 = vector.broadcast %45 : vector<40x1xf32> to vector<40x4xf32>
    %47 = arith.cmpf oge, %40, %46 : vector<40x4xf32>
    %cst_22 = arith.constant 4.000000e+00 : f32
    %48 = vector.broadcast %cst_22 : f32 to vector<40x4xf32>
    %49 = arith.select %47, %42, %48 : vector<40x4xi1>, vector<40x4xf32>
    %cst_23 = arith.constant dense<0x7F800000> : vector<40xf32>
    %50 = vector.multi_reduction <minimumf>, %49, %cst_23 [1] : vector<40x4xf32> to vector<40xf32>
    %51 = vector.shape_cast %50 : vector<40xf32> to vector<40x1xf32>
    %52 = vector.broadcast %51 : vector<40x1xf32> to vector<40x4xf32>
    %53 = arith.cmpf oeq, %42, %52 : vector<40x4xf32>
    %54 = arith.select %53, %40, %43 : vector<40x4xi1>, vector<40x4xf32>
    %cst_24 = arith.constant 0xFF800000 : f32
    %55 = vector.broadcast %cst_24 : f32 to vector<40x4xf32>
    %56 = arith.select %53, %55, %40 : vector<40x4xi1>, vector<40x4xf32>
    %cst_25 = arith.constant dense<0xFF800000> : vector<40xf32>
    %57 = vector.multi_reduction <maximumf>, %56, %cst_25 [1] : vector<40x4xf32> to vector<40xf32>
    %58 = vector.shape_cast %57 : vector<40xf32> to vector<40x1xf32>
    %59 = vector.broadcast %58 : vector<40x1xf32> to vector<40x4xf32>
    %60 = arith.cmpf oge, %56, %59 : vector<40x4xf32>
    %cst_26 = arith.constant 4.000000e+00 : f32
    %61 = vector.broadcast %cst_26 : f32 to vector<40x4xf32>
    %62 = arith.select %60, %42, %61 : vector<40x4xi1>, vector<40x4xf32>
    %cst_27 = arith.constant dense<0x7F800000> : vector<40xf32>
    %63 = vector.multi_reduction <minimumf>, %62, %cst_27 [1] : vector<40x4xf32> to vector<40xf32>
    %64 = vector.shape_cast %63 : vector<40xf32> to vector<40x1xf32>
    %65 = vector.broadcast %64 : vector<40x1xf32> to vector<40x4xf32>
    %66 = arith.cmpf oeq, %42, %65 : vector<40x4xf32>
    %67 = arith.select %66, %40, %54 : vector<40x4xi1>, vector<40x4xf32>
    %cst_28 = arith.constant dense<0.000000e+00> : vector<40xf32>
    %68 = vector.multi_reduction <add>, %67, %cst_28 [1] : vector<40x4xf32> to vector<40xf32>
    %69 = vector.shape_cast %68 : vector<40xf32> to vector<40x1xf32>
    %70 = vector.broadcast %69 : vector<40x1xf32> to vector<40x4xf32>
    %71 = arith.divf %67, %70 : vector<40x4xf32>
    %c0_29 = arith.constant 0 : index
    %c0_30 = arith.constant 0 : index
    %72 = vector.load %arg8[%c0_29, %c0_30] : memref<40x4xf32, #tpu.memory_space<vmem>>, vector<40x4xf32>
    tpu.vector_store %arg8[%c0_29, %c0_30], %71 {strides = array<i32>} : memref<40x4xf32, #tpu.memory_space<vmem>>, vector<40x4xf32>,
    %c0_31 = arith.constant 0 : index
    %c0_32 = arith.constant 0 : index
    %73 = vector.load %arg6[%c0_31, %c0_32] : memref<40x1xf32, #tpu.memory_space<vmem>>, vector<40x1xf32>
    %c0_i32 = arith.constant 0 : i32
    %74 = arith.cmpi eq, %arg0, %c0_i32 : i32
    %75 = arith.extui %74 : i1 to i32
    %c0_i32_33 = arith.constant 0 : i32
    %76 = arith.cmpi ne, %75, %c0_i32_33 : i32
    scf.if %76 {
      %cst_46 = arith.constant 0.000000e+00 : f32
      %96 = vector.broadcast %cst_46 : f32 to vector<1x4xf32>
      %c0_47 = arith.constant 0 : index
      %c0_48 = arith.constant 0 : index
      %97 = vector.load %arg11[%c0_47, %c0_48] : memref<1x4xf32, #tpu.memory_space<vmem>>, vector<1x4xf32>
      tpu.vector_store %arg11[%c0_47, %c0_48], %96 {strides = array<i32>} : memref<1x4xf32, #tpu.memory_space<vmem>>, vector<1x4xf32>,
      %cst_49 = arith.constant 0.000000e+00 : f32
      %98 = vector.broadcast %cst_49 : f32 to vector<1x1xf32>
      %c0_50 = arith.constant 0 : index
      %c0_51 = arith.constant 0 : index
      %99 = vector.load %arg12[%c0_50, %c0_51] : memref<1x1xf32, #tpu.memory_space<vmem>>, vector<1x1xf32>
      tpu.vector_store %arg12[%c0_50, %c0_51], %98 {strides = array<i32>} : memref<1x1xf32, #tpu.memory_space<vmem>>, vector<1x1xf32>,
    } else {
    }
    %c0_34 = arith.constant 0 : index
    %c0_35 = arith.constant 0 : index
    %77 = vector.load %arg11[%c0_34, %c0_35] : memref<1x4xf32, #tpu.memory_space<vmem>>, vector<1x4xf32>
    %78 = vector.broadcast %73 : vector<40x1xf32> to vector<40x4xf32>
    %79 = arith.mulf %40, %78 : vector<40x4xf32>
    %cst_36 = arith.constant dense<0.000000e+00> : vector<4xf32>
    %80 = vector.multi_reduction <add>, %79, %cst_36 [0] : vector<40x4xf32> to vector<4xf32>
    %81 = vector.shape_cast %80 : vector<4xf32> to vector<1x4xf32>
    %82 = arith.addf %77, %81 : vector<1x4xf32>
    %c0_37 = arith.constant 0 : index
    %c0_38 = arith.constant 0 : index
    %83 = vector.load %arg11[%c0_37, %c0_38] : memref<1x4xf32, #tpu.memory_space<vmem>>, vector<1x4xf32>
    tpu.vector_store %arg11[%c0_37, %c0_38], %82 {strides = array<i32>} : memref<1x4xf32, #tpu.memory_space<vmem>>, vector<1x4xf32>,
    %84 = math.log %38 : vector<40x1xf32>
    %85 = arith.addf %33, %84 : vector<40x1xf32>
    %c0_39 = arith.constant 0 : index
    %c0_40 = arith.constant 0 : index
    %86 = vector.load %arg12[%c0_39, %c0_40] : memref<1x1xf32, #tpu.memory_space<vmem>>, vector<1x1xf32>
    %87 = arith.mulf %85, %85 : vector<40x1xf32>
    %88 = arith.mulf %87, %73 : vector<40x1xf32>
    %cst_41 = arith.constant dense<0.000000e+00> : vector<1xf32>
    %89 = vector.multi_reduction <add>, %88, %cst_41 [0] : vector<40x1xf32> to vector<1xf32>
    %90 = vector.shape_cast %89 : vector<1xf32> to vector<1x1xf32>
    %91 = arith.addf %86, %90 : vector<1x1xf32>
    %c0_42 = arith.constant 0 : index
    %c0_43 = arith.constant 0 : index
    %92 = vector.load %arg12[%c0_42, %c0_43] : memref<1x1xf32, #tpu.memory_space<vmem>>, vector<1x1xf32>
    tpu.vector_store %arg12[%c0_42, %c0_43], %91 {strides = array<i32>} : memref<1x1xf32, #tpu.memory_space<vmem>>, vector<1x1xf32>,
    %c0_i32_44 = arith.constant 0 : i32
    %93 = arith.cmpi eq, %arg0, %c0_i32_44 : i32
    %94 = arith.extui %93 : i1 to i32
    %c0_i32_45 = arith.constant 0 : i32
    %95 = arith.cmpi ne, %94, %c0_i32_45 : i32
    scf.if %95 {
      %c0_46 = arith.constant 0 : index
      %c0_47 = arith.constant 0 : index
      %96 = vector.load %arg11[%c0_46, %c0_47] : memref<1x4xf32, #tpu.memory_space<vmem>>, vector<1x4xf32>
      %cst_48 = arith.constant 3.400000e+01 : f32
      %97 = vector.broadcast %cst_48 : f32 to vector<1x4xf32>
      %98 = arith.divf %96, %97 : vector<1x4xf32>
      %cst_49 = arith.constant 2.500000e-01 : f32
      %99 = math.log %cst_49 : f32
      %cst_50 = arith.constant 9.99999968E-21 : f32
      %100 = vector.broadcast %cst_50 : f32 to vector<1x4xf32>
      %101 = arith.addf %98, %100 : vector<1x4xf32>
      %102 = math.log %101 : vector<1x4xf32>
      %103 = vector.broadcast %99 : f32 to vector<1x4xf32>
      %104 = arith.subf %103, %102 : vector<1x4xf32>
      %cst_51 = arith.constant 2.500000e-01 : f32
      %105 = vector.broadcast %cst_51 : f32 to vector<1x4xf32>
      %106 = arith.mulf %105, %104 : vector<1x4xf32>
      %cst_52 = arith.constant dense<0.000000e+00> : vector<1xf32>
      %107 = vector.multi_reduction <add>, %106, %cst_52 [1] : vector<1x4xf32> to vector<1xf32>
      %108 = vector.shape_cast %107 : vector<1xf32> to vector<1x1xf32>
      %cst_53 = arith.constant 4.000000e+00 : f32
      %109 = vector.broadcast %cst_53 : f32 to vector<1x1xf32>
      %110 = arith.divf %108, %109 : vector<1x1xf32>
      %c0_54 = arith.constant 0 : index
      %c0_55 = arith.constant 0 : index
      %111 = vector.load %arg12[%c0_54, %c0_55] : memref<1x1xf32, #tpu.memory_space<vmem>>, vector<1x1xf32>
      %cst_56 = arith.constant 3.400000e+01 : f32
      %112 = vector.broadcast %cst_56 : f32 to vector<1x1xf32>
      %113 = arith.divf %111, %112 : vector<1x1xf32>
      %cst_57 = arith.constant 1.000000e-03 : f32
      %114 = vector.broadcast %cst_57 : f32 to vector<1x1xf32>
      %115 = arith.mulf %114, %113 : vector<1x1xf32>
      %116 = arith.addf %110, %115 : vector<1x1xf32>
      %c0_58 = arith.constant 0 : index
      %c0_59 = arith.constant 0 : index
      %117 = vector.load %arg10[%c0_58, %c0_59] : memref<1x1xf32, #tpu.memory_space<vmem>>, vector<1x1xf32>
      tpu.vector_store %arg10[%c0_58, %c0_59], %116 {strides = array<i32>} : memref<1x1xf32, #tpu.memory_space<vmem>>, vector<1x1xf32>,
    } else {
    }
    return
  }
  func.func @transform_0(%arg0: i32) -> (i32, i32) {
    %c0_i32 = arith.constant 0 : i32
    %c0_i32_0 = arith.constant 0 : i32
    return %arg0, %c0_i32 : i32, i32
  }
  func.func @transform_1(%arg0: i32) -> (i32, i32) {
    %c0_i32 = arith.constant 0 : i32
    %c0_i32_0 = arith.constant 0 : i32
    %c0_i32_1 = arith.constant 0 : i32
    return %c0_i32, %c0_i32_0 : i32, i32
  }
  func.func @transform_2(%arg0: i32) -> (i32, i32) {
    %c0_i32 = arith.constant 0 : i32
    %c0_i32_0 = arith.constant 0 : i32
    %c0_i32_1 = arith.constant 0 : i32
    return %c0_i32, %c0_i32_0 : i32, i32
  }
  func.func @transform_3(%arg0: i32) -> (i32, i32) {
    %c0_i32 = arith.constant 0 : i32
    %c0_i32_0 = arith.constant 0 : i32
    %c0_i32_1 = arith.constant 0 : i32
    return %c0_i32, %c0_i32_0 : i32, i32
  }
  func.func @transform_4(%arg0: i32) -> (i32, i32) {
    %c0_i32 = arith.constant 0 : i32
    %c0_i32_0 = arith.constant 0 : i32
    %c0_i32_1 = arith.constant 0 : i32
    return %c0_i32, %c0_i32_0 : i32, i32
  }
  func.func @transform_5(%arg0: i32) -> (i32, i32) {
    %c0_i32 = arith.constant 0 : i32
    %c0_i32_0 = arith.constant 0 : i32
    return %arg0, %c0_i32 : i32, i32
  }
  func.func @transform_6(%arg0: i32) -> (i32, i32) {
    %c0_i32 = arith.constant 0 : i32
    %c0_i32_0 = arith.constant 0 : i32
    return %arg0, %c0_i32 : i32, i32
  }
  func.func @transform_7(%arg0: i32) -> (i32, i32) {
    %c0_i32 = arith.constant 0 : i32
    %c0_i32_0 = arith.constant 0 : i32
    return %arg0, %c0_i32 : i32, i32
  }
  func.func @transform_8(%arg0: i32) -> (i32, i32) {
    %c0_i32 = arith.constant 0 : i32
    %c0_i32_0 = arith.constant 0 : i32
    return %arg0, %c0_i32 : i32, i32
  }
  func.func @transform_9(%arg0: i32) -> (i32, i32) {
    %c0_i32 = arith.constant 0 : i32
    %c0_i32_0 = arith.constant 0 : i32
    %c0_i32_1 = arith.constant 0 : i32
    return %c0_i32, %c0_i32_0 : i32, i32
  }
}

module attributes {stable_mosaic.version = 11 : i64} {
  func.func @_ln_kernel(%arg0: i32, %arg1: memref<8x32xf32, #tpu.memory_space<vmem>>, %arg2: memref<1x32xf32, #tpu.memory_space<vmem>>, %arg3: memref<1x32xf32, #tpu.memory_space<vmem>>, %arg4: memref<8x32xf32, #tpu.memory_space<vmem>>) attributes {dimension_semantics = [#tpu.dimension_semantics<parallel>], iteration_bounds = array<i64: 1>, scalar_prefetch = 0 : i64, scratch_operands = 0 : i64, tpu.core_type = #tpu.core_type<tc>, window_params = [{transform_indices = @transform_0, window_bounds = array<i64: 8, 32>}, {pipeline_mode = #tpu.pipeline_mode<synchronous>, transform_indices = @transform_1, window_bounds = array<i64: 1, 32>}, {pipeline_mode = #tpu.pipeline_mode<synchronous>, transform_indices = @transform_2, window_bounds = array<i64: 1, 32>}, {transform_indices = @transform_3, window_bounds = array<i64: 8, 32>}]} {
    %c0 = arith.constant 0 : index
    %c0_0 = arith.constant 0 : index
    %0 = vector.load %arg1[%c0, %c0_0] : memref<8x32xf32, #tpu.memory_space<vmem>>, vector<8x32xf32>
    %cst = arith.constant dense<0.000000e+00> : vector<8xf32>
    %1 = vector.multi_reduction <add>, %0, %cst [1] : vector<8x32xf32> to vector<8xf32>
    %2 = vector.shape_cast %1 : vector<8xf32> to vector<8x1xf32>
    %cst_1 = arith.constant 3.200000e+01 : f32
    %3 = vector.broadcast %cst_1 : f32 to vector<8x1xf32>
    %4 = arith.divf %2, %3 : vector<8x1xf32>
    %5 = vector.broadcast %4 : vector<8x1xf32> to vector<8x32xf32>
    %6 = arith.subf %0, %5 : vector<8x32xf32>
    %7 = arith.mulf %6, %6 : vector<8x32xf32>
    %cst_2 = arith.constant dense<0.000000e+00> : vector<8xf32>
    %8 = vector.multi_reduction <add>, %7, %cst_2 [1] : vector<8x32xf32> to vector<8xf32>
    %9 = vector.shape_cast %8 : vector<8xf32> to vector<8x1xf32>
    %cst_3 = arith.constant 3.200000e+01 : f32
    %10 = vector.broadcast %cst_3 : f32 to vector<8x1xf32>
    %11 = arith.divf %9, %10 : vector<8x1xf32>
    %12 = vector.broadcast %4 : vector<8x1xf32> to vector<8x32xf32>
    %13 = arith.subf %0, %12 : vector<8x32xf32>
    %cst_4 = arith.constant 9.99999974E-6 : f32
    %14 = vector.broadcast %cst_4 : f32 to vector<8x1xf32>
    %15 = arith.addf %11, %14 : vector<8x1xf32>
    %16 = math.rsqrt %15 : vector<8x1xf32>
    %17 = vector.broadcast %16 : vector<8x1xf32> to vector<8x32xf32>
    %18 = arith.mulf %13, %17 : vector<8x32xf32>
    %c0_5 = arith.constant 0 : index
    %c0_6 = arith.constant 0 : index
    %19 = vector.load %arg2[%c0_5, %c0_6] : memref<1x32xf32, #tpu.memory_space<vmem>>, vector<1x32xf32>
    %20 = vector.broadcast %19 : vector<1x32xf32> to vector<8x32xf32>
    %21 = arith.mulf %18, %20 : vector<8x32xf32>
    %c0_7 = arith.constant 0 : index
    %c0_8 = arith.constant 0 : index
    %22 = vector.load %arg3[%c0_7, %c0_8] : memref<1x32xf32, #tpu.memory_space<vmem>>, vector<1x32xf32>
    %23 = vector.broadcast %22 : vector<1x32xf32> to vector<8x32xf32>
    %24 = arith.addf %21, %23 : vector<8x32xf32>
    %c0_9 = arith.constant 0 : index
    %c0_10 = arith.constant 0 : index
    %25 = vector.load %arg4[%c0_9, %c0_10] : memref<8x32xf32, #tpu.memory_space<vmem>>, vector<8x32xf32>
    tpu.vector_store %arg4[%c0_9, %c0_10], %24 {strides = array<i32>} : memref<8x32xf32, #tpu.memory_space<vmem>>, vector<8x32xf32>,
    return
  }
  func.func @transform_0(%arg0: i32) -> (i32, i32) {
    %c0_i32 = arith.constant 0 : i32
    %c0_i32_0 = arith.constant 0 : i32
    return %arg0, %c0_i32 : i32, i32
  }
  func.func @transform_1(%arg0: i32) -> (i32, i32) {
    %c0_i32 = arith.constant 0 : i32
    %c0_i32_0 = arith.constant 0 : i32
    %c0_i32_1 = arith.constant 0 : i32
    return %c0_i32, %c0_i32_0 : i32, i32
  }
  func.func @transform_2(%arg0: i32) -> (i32, i32) {
    %c0_i32 = arith.constant 0 : i32
    %c0_i32_0 = arith.constant 0 : i32
    %c0_i32_1 = arith.constant 0 : i32
    return %c0_i32, %c0_i32_0 : i32, i32
  }
  func.func @transform_3(%arg0: i32) -> (i32, i32) {
    %c0_i32 = arith.constant 0 : i32
    %c0_i32_0 = arith.constant 0 : i32
    return %arg0, %c0_i32 : i32, i32
  }
}

module attributes {stable_mosaic.version = 11 : i64} {
  func.func @_moe_kernel(%arg0: i32, %arg1: i32, %arg2: memref<40x32xf32, #tpu.memory_space<vmem>>, %arg3: memref<40x4xf32, #tpu.memory_space<vmem>>, %arg4: memref<40x32xf32, #tpu.memory_space<vmem>>, %arg5: memref<1x32x128xbf16, #tpu.memory_space<vmem>>, %arg6: memref<1x1x128xf32, #tpu.memory_space<vmem>>, %arg7: memref<1x128x32xbf16, #tpu.memory_space<vmem>>, %arg8: memref<1x1x32xf32, #tpu.memory_space<vmem>>, %arg9: memref<40x32xf32, #tpu.memory_space<vmem>>) attributes {dimension_semantics = [#tpu.dimension_semantics<parallel>, #tpu.dimension_semantics<arbitrary>], iteration_bounds = array<i64: 1, 4>, scalar_prefetch = 0 : i64, scratch_operands = 0 : i64, tpu.core_type = #tpu.core_type<tc>, window_params = [{transform_indices = @transform_0, window_bounds = array<i64: 40, 32>}, {transform_indices = @transform_1, window_bounds = array<i64: 40, 4>}, {transform_indices = @transform_2, window_bounds = array<i64: 40, 32>}, {transform_indices = @transform_3, window_bounds = array<i64: 1, 32, 128>}, {transform_indices = @transform_4, window_bounds = array<i64: 1, 1, 128>}, {transform_indices = @transform_5, window_bounds = array<i64: 1, 128, 32>}, {transform_indices = @transform_6, window_bounds = array<i64: 1, 1, 32>}, {transform_indices = @transform_7, window_bounds = array<i64: 40, 32>}]} {
    %c0_i32 = arith.constant 0 : i32
    %0 = arith.cmpi eq, %arg1, %c0_i32 : i32
    %1 = arith.extui %0 : i1 to i32
    %c0_i32_0 = arith.constant 0 : i32
    %2 = arith.cmpi ne, %1, %c0_i32_0 : i32
    scf.if %2 {
      %c0_27 = arith.constant 0 : index
      %c0_28 = arith.constant 0 : index
      %46 = vector.load %arg4[%c0_27, %c0_28] : memref<40x32xf32, #tpu.memory_space<vmem>>, vector<40x32xf32>
      %c0_29 = arith.constant 0 : index
      %c0_30 = arith.constant 0 : index
      %47 = vector.load %arg9[%c0_29, %c0_30] : memref<40x32xf32, #tpu.memory_space<vmem>>, vector<40x32xf32>
      tpu.vector_store %arg9[%c0_29, %c0_30], %46 {strides = array<i32>} : memref<40x32xf32, #tpu.memory_space<vmem>>, vector<40x32xf32>,
    } else {
    }
    %c0 = arith.constant 0 : index
    %c0_1 = arith.constant 0 : index
    %3 = vector.load %arg2[%c0, %c0_1] : memref<40x32xf32, #tpu.memory_space<vmem>>, vector<40x32xf32>
    %4 = arith.truncf %3 : vector<40x32xf32> to vector<40x32xbf16>
    %c0_2 = arith.constant 0 : index
    %c0_3 = arith.constant 0 : index
    %c0_4 = arith.constant 0 : index
    %5 = vector.load %arg5[%c0_2, %c0_3, %c0_4] : memref<1x32x128xbf16, #tpu.memory_space<vmem>>, vector<1x32x128xbf16>
    %6 = vector.shape_cast %5 : vector<1x32x128xbf16> to vector<32x128xbf16>
    %cst = arith.constant dense<0.000000e+00> : vector<40x128xf32>
    %7 = tpu.matmul %4, %6, %cst {dimension_numbers = #tpu.dot_dimension_numbers<[1], [0], [0], [1], [0, 0, 1, 1], [], []>} : vector<40x32xbf16>, vector<32x128xbf16>, vector<40x128xf32> -> vector<40x128xf32>
    %c0_5 = arith.constant 0 : index
    %c0_6 = arith.constant 0 : index
    %c0_7 = arith.constant 0 : index
    %8 = vector.load %arg6[%c0_5, %c0_6, %c0_7] : memref<1x1x128xf32, #tpu.memory_space<vmem>>, vector<1x1x128xf32>
    %9 = vector.shape_cast %8 : vector<1x1x128xf32> to vector<1x128xf32>
    %10 = vector.broadcast %9 : vector<1x128xf32> to vector<40x128xf32>
    %11 = arith.addf %7, %10 : vector<40x128xf32>
    %12 = arith.mulf %11, %11 : vector<40x128xf32>
    %13 = arith.mulf %11, %12 : vector<40x128xf32>
    %cst_8 = arith.constant 4.471500e-02 : f32
    %14 = vector.broadcast %cst_8 : f32 to vector<40x128xf32>
    %15 = arith.mulf %14, %13 : vector<40x128xf32>
    %16 = arith.addf %11, %15 : vector<40x128xf32>
    %cst_9 = arith.constant 0.797884583 : f32
    %17 = vector.broadcast %cst_9 : f32 to vector<40x128xf32>
    %18 = arith.mulf %17, %16 : vector<40x128xf32>
    %19 = math.tanh %18 : vector<40x128xf32>
    %cst_10 = arith.constant 1.000000e+00 : f32
    %20 = vector.broadcast %cst_10 : f32 to vector<40x128xf32>
    %21 = arith.addf %20, %19 : vector<40x128xf32>
    %cst_11 = arith.constant 5.000000e-01 : f32
    %22 = vector.broadcast %cst_11 : f32 to vector<40x128xf32>
    %23 = arith.mulf %22, %21 : vector<40x128xf32>
    %24 = arith.mulf %11, %23 : vector<40x128xf32>
    %25 = arith.truncf %24 : vector<40x128xf32> to vector<40x128xbf16>
    %c0_12 = arith.constant 0 : index
    %c0_13 = arith.constant 0 : index
    %c0_14 = arith.constant 0 : index
    %26 = vector.load %arg7[%c0_12, %c0_13, %c0_14] : memref<1x128x32xbf16, #tpu.memory_space<vmem>>, vector<1x128x32xbf16>
    %27 = vector.shape_cast %26 : vector<1x128x32xbf16> to vector<128x32xbf16>
    %cst_15 = arith.constant dense<0.000000e+00> : vector<40x32xf32>
    %28 = tpu.matmul %25, %27, %cst_15 {dimension_numbers = #tpu.dot_dimension_numbers<[1], [0], [0], [1], [0, 0, 1, 1], [], []>} : vector<40x128xbf16>, vector<128x32xbf16>, vector<40x32xf32> -> vector<40x32xf32>
    %c0_16 = arith.constant 0 : index
    %c0_17 = arith.constant 0 : index
    %c0_18 = arith.constant 0 : index
    %29 = vector.load %arg8[%c0_16, %c0_17, %c0_18] : memref<1x1x32xf32, #tpu.memory_space<vmem>>, vector<1x1x32xf32>
    %30 = vector.shape_cast %29 : vector<1x1x32xf32> to vector<1x32xf32>
    %31 = vector.broadcast %30 : vector<1x32xf32> to vector<40x32xf32>
    %32 = arith.addf %28, %31 : vector<40x32xf32>
    %c0_19 = arith.constant 0 : index
    %c0_20 = arith.constant 0 : index
    %33 = vector.load %arg3[%c0_19, %c0_20] : memref<40x4xf32, #tpu.memory_space<vmem>>, vector<40x4xf32>
    %34 = tpu.iota {dimensions = array<i32: 1>} : vector<40x4xi32>
    %35 = vector.broadcast %arg1 : i32 to vector<40x4xi32>
    %36 = arith.cmpi eq, %34, %35 : vector<40x4xi32>
    %cst_21 = arith.constant 0.000000e+00 : f32
    %37 = vector.broadcast %cst_21 : f32 to vector<40x4xf32>
    %38 = arith.select %36, %33, %37 : vector<40x4xi1>, vector<40x4xf32>
    %cst_22 = arith.constant dense<0.000000e+00> : vector<40xf32>
    %39 = vector.multi_reduction <add>, %38, %cst_22 [1] : vector<40x4xf32> to vector<40xf32>
    %40 = vector.shape_cast %39 : vector<40xf32> to vector<40x1xf32>
    %c0_23 = arith.constant 0 : index
    %c0_24 = arith.constant 0 : index
    %41 = vector.load %arg9[%c0_23, %c0_24] : memref<40x32xf32, #tpu.memory_space<vmem>>, vector<40x32xf32>
    %42 = vector.broadcast %40 : vector<40x1xf32> to vector<40x32xf32>
    %43 = arith.mulf %42, %32 : vector<40x32xf32>
    %44 = arith.addf %41, %43 : vector<40x32xf32>
    %c0_25 = arith.constant 0 : index
    %c0_26 = arith.constant 0 : index
    %45 = vector.load %arg9[%c0_25, %c0_26] : memref<40x32xf32, #tpu.memory_space<vmem>>, vector<40x32xf32>
    tpu.vector_store %arg9[%c0_25, %c0_26], %44 {strides = array<i32>} : memref<40x32xf32, #tpu.memory_space<vmem>>, vector<40x32xf32>,
    return
  }
  func.func @transform_0(%arg0: i32, %arg1: i32) -> (i32, i32) {
    %c0_i32 = arith.constant 0 : i32
    %c0_i32_0 = arith.constant 0 : i32
    return %arg0, %c0_i32 : i32, i32
  }
  func.func @transform_1(%arg0: i32, %arg1: i32) -> (i32, i32) {
    %c0_i32 = arith.constant 0 : i32
    %c0_i32_0 = arith.constant 0 : i32
    return %arg0, %c0_i32 : i32, i32
  }
  func.func @transform_2(%arg0: i32, %arg1: i32) -> (i32, i32) {
    %c0_i32 = arith.constant 0 : i32
    %c0_i32_0 = arith.constant 0 : i32
    return %arg0, %c0_i32 : i32, i32
  }
  func.func @transform_3(%arg0: i32, %arg1: i32) -> (i32, i32, i32) {
    %c0_i32 = arith.constant 0 : i32
    %c0_i32_0 = arith.constant 0 : i32
    %c0_i32_1 = arith.constant 0 : i32
    return %arg1, %c0_i32, %c0_i32_0 : i32, i32, i32
  }
  func.func @transform_4(%arg0: i32, %arg1: i32) -> (i32, i32, i32) {
    %c0_i32 = arith.constant 0 : i32
    %c0_i32_0 = arith.constant 0 : i32
    %c0_i32_1 = arith.constant 0 : i32
    return %arg1, %c0_i32, %c0_i32_0 : i32, i32, i32
  }
  func.func @transform_5(%arg0: i32, %arg1: i32) -> (i32, i32, i32) {
    %c0_i32 = arith.constant 0 : i32
    %c0_i32_0 = arith.constant 0 : i32
    %c0_i32_1 = arith.constant 0 : i32
    return %arg1, %c0_i32, %c0_i32_0 : i32, i32, i32
  }
  func.func @transform_6(%arg0: i32, %arg1: i32) -> (i32, i32, i32) {
    %c0_i32 = arith.constant 0 : i32
    %c0_i32_0 = arith.constant 0 : i32
    %c0_i32_1 = arith.constant 0 : i32
    return %arg1, %c0_i32, %c0_i32_0 : i32, i32, i32
  }
  func.func @transform_7(%arg0: i32, %arg1: i32) -> (i32, i32) {
    %c0_i32 = arith.constant 0 : i32
    %c0_i32_0 = arith.constant 0 : i32
    return %arg0, %c0_i32 : i32, i32
  }
}

module attributes {stable_mosaic.version = 11 : i64} {
  func.func @_mm_bias_kernel(%arg0: i32, %arg1: i32, %arg2: i32, %arg3: memref<8x128xf32, #tpu.memory_space<vmem>>, %arg4: memref<128x128xbf16, #tpu.memory_space<vmem>>, %arg5: memref<1x128xf32, #tpu.memory_space<vmem>>, %arg6: memref<8x128xf32, #tpu.memory_space<vmem>>, %arg7: memref<8x128xf32, #tpu.memory_space<vmem>>) attributes {dimension_semantics = [#tpu.dimension_semantics<parallel>, #tpu.dimension_semantics<parallel>, #tpu.dimension_semantics<arbitrary>], iteration_bounds = array<i64: 1, 1, 1>, scalar_prefetch = 0 : i64, scratch_operands = 1 : i64, tpu.core_type = #tpu.core_type<tc>, window_params = [{transform_indices = @transform_0, window_bounds = array<i64: 8, 128>}, {transform_indices = @transform_1, window_bounds = array<i64: 128, 128>}, {transform_indices = @transform_2, window_bounds = array<i64: 1, 128>}, {transform_indices = @transform_3, window_bounds = array<i64: 8, 128>}]} {
    %c0_i32 = arith.constant 0 : i32
    %0 = arith.cmpi eq, %arg2, %c0_i32 : i32
    %1 = arith.extui %0 : i1 to i32
    %c0_i32_0 = arith.constant 0 : i32
    %2 = arith.cmpi ne, %1, %c0_i32_0 : i32
    scf.if %2 {
      %cst_10 = arith.constant 0.000000e+00 : f32
      %13 = vector.broadcast %cst_10 : f32 to vector<8x128xf32>
      %c0_11 = arith.constant 0 : index
      %c0_12 = arith.constant 0 : index
      %14 = vector.load %arg7[%c0_11, %c0_12] : memref<8x128xf32, #tpu.memory_space<vmem>>, vector<8x128xf32>
      tpu.vector_store %arg7[%c0_11, %c0_12], %13 {strides = array<i32>} : memref<8x128xf32, #tpu.memory_space<vmem>>, vector<8x128xf32>,
    } else {
    }
    %c0 = arith.constant 0 : index
    %c0_1 = arith.constant 0 : index
    %3 = vector.load %arg7[%c0, %c0_1] : memref<8x128xf32, #tpu.memory_space<vmem>>, vector<8x128xf32>
    %c0_2 = arith.constant 0 : index
    %c0_3 = arith.constant 0 : index
    %4 = vector.load %arg3[%c0_2, %c0_3] : memref<8x128xf32, #tpu.memory_space<vmem>>, vector<8x128xf32>
    %5 = arith.truncf %4 : vector<8x128xf32> to vector<8x128xbf16>
    %c0_4 = arith.constant 0 : index
    %c0_5 = arith.constant 0 : index
    %6 = vector.load %arg4[%c0_4, %c0_5] : memref<128x128xbf16, #tpu.memory_space<vmem>>, vector<128x128xbf16>
    %cst = arith.constant dense<0.000000e+00> : vector<8x128xf32>
    %7 = tpu.matmul %5, %6, %cst {dimension_numbers = #tpu.dot_dimension_numbers<[1], [0], [0], [1], [0, 0, 1, 1], [], []>} : vector<8x128xbf16>, vector<128x128xbf16>, vector<8x128xf32> -> vector<8x128xf32>
    %8 = arith.addf %3, %7 : vector<8x128xf32>
    %c0_6 = arith.constant 0 : index
    %c0_7 = arith.constant 0 : index
    %9 = vector.load %arg7[%c0_6, %c0_7] : memref<8x128xf32, #tpu.memory_space<vmem>>, vector<8x128xf32>
    tpu.vector_store %arg7[%c0_6, %c0_7], %8 {strides = array<i32>} : memref<8x128xf32, #tpu.memory_space<vmem>>, vector<8x128xf32>,
    %c0_i32_8 = arith.constant 0 : i32
    %10 = arith.cmpi eq, %arg2, %c0_i32_8 : i32
    %11 = arith.extui %10 : i1 to i32
    %c0_i32_9 = arith.constant 0 : i32
    %12 = arith.cmpi ne, %11, %c0_i32_9 : i32
    scf.if %12 {
      %c0_10 = arith.constant 0 : index
      %c0_11 = arith.constant 0 : index
      %13 = vector.load %arg7[%c0_10, %c0_11] : memref<8x128xf32, #tpu.memory_space<vmem>>, vector<8x128xf32>
      %c0_12 = arith.constant 0 : index
      %c0_13 = arith.constant 0 : index
      %14 = vector.load %arg5[%c0_12, %c0_13] : memref<1x128xf32, #tpu.memory_space<vmem>>, vector<1x128xf32>
      %15 = vector.broadcast %14 : vector<1x128xf32> to vector<8x128xf32>
      %16 = arith.addf %13, %15 : vector<8x128xf32>
      %c0_14 = arith.constant 0 : index
      %c0_15 = arith.constant 0 : index
      %17 = vector.load %arg6[%c0_14, %c0_15] : memref<8x128xf32, #tpu.memory_space<vmem>>, vector<8x128xf32>
      tpu.vector_store %arg6[%c0_14, %c0_15], %16 {strides = array<i32>} : memref<8x128xf32, #tpu.memory_space<vmem>>, vector<8x128xf32>,
    } else {
    }
    return
  }
  func.func @transform_0(%arg0: i32, %arg1: i32, %arg2: i32) -> (i32, i32) {
    %c0_i32 = arith.constant 0 : i32
    return %arg0, %arg2 : i32, i32
  }
  func.func @transform_1(%arg0: i32, %arg1: i32, %arg2: i32) -> (i32, i32) {
    %c0_i32 = arith.constant 0 : i32
    return %arg2, %arg1 : i32, i32
  }
  func.func @transform_2(%arg0: i32, %arg1: i32, %arg2: i32) -> (i32, i32) {
    %c0_i32 = arith.constant 0 : i32
    %c0_i32_0 = arith.constant 0 : i32
    return %c0_i32, %arg1 : i32, i32
  }
  func.func @transform_3(%arg0: i32, %arg1: i32, %arg2: i32) -> (i32, i32) {
    %c0_i32 = arith.constant 0 : i32
    return %arg0, %arg1 : i32, i32
  }
}

</mosaic_0001>

<llo_original>
// kernel: forward.13
$region0: #{forward.13}
  #allocation0 [shape = 'u32[]', space=smem, size = 0x4, offset = 0x4, fixed_abs, tag = 'smem constant byte address 0x4 - core index']
  #allocation1 [shape = 'u32[144,128]{1,0:T(1,128)}', space=vmem, size = 0x12000, scoped, tag = 'internal scratch']
  #allocation2 [shape = 'f32[32,128]{1,0:T(8,128)}', space=vmem, size = 0x4000, scoped, tag = 'scratch operand']
  %s0 = inlined_call_operand.vmem [shape: f32[32,128], index: 0, kind: input, shape index: {}]
  %s1 = inlined_call_operand.vmem [shape: bf16[128,128], index: 1, kind: input, shape index: {}]
  %s2 = inlined_call_operand.vmem [shape: f32[1,128], index: 2, kind: input, shape index: {}]
  %s3 = inlined_call_operand.vmem [shape: f32[32,128], index: 3, kind: output, shape index: {}]
  %s4 = sld [smem:[#allocation0]]
  $region30: #{forward.13} parent=0
    _
  %s6 = ssub.s32 1, %s4
  %s7 = scalar_select 0, %s6, %s4
  // Predicated region
  $region2: #{forward.13} parent=0 // pred_check
    _
  $region3: #{forward.13} parent=0 // pred_check_branch
    %9 = sbr.rel (0) target = $region5
  $region4: #{forward.13} parent=0 // pred_region
    _
  $region5: #{forward.13} parent=0 // pred_fallthru
    _
  // Predicated region
  $region6: #{forward.13} parent=0 // pred_check
    _
  $region7: #{forward.13} parent=0 // pred_check_branch
    %11 = sbr.rel (0) target = $region9
  $region8: #{forward.13} parent=0 // pred_region
    _
  $region9: #{forward.13} parent=0 // pred_fallthru
    _
  // Predicated region
  $region10: #{forward.13} parent=0 // pred_check
    _
  $region11: #{forward.13} parent=0 // pred_check_branch
    %13 = sbr.rel (0) target = $region13
  $region12: #{forward.13} parent=0 // pred_region
    _
  $region13: #{forward.13} parent=0 // pred_fallthru
    _
  %p15 = scmp.eq.s32.totalorder 0, 0
  // Predicated region
  $region14: #{forward.13} parent=0 // pred_check
    %p16 = pneg %p15
  $region15: #{forward.13} parent=0 // pred_check_branch
    %18 = sbr.rel (%p16) target = $region17
  $region16: #{forward.13} parent=0 // pred_region
    %19 = vst [vmem:[#allocation2] sm:$0xff] 0.0
    %20 = vst [vmem:[#allocation2 + $0x8] sm:$0xff] 0.0
    %21 = vst [vmem:[#allocation2 + $0x10] sm:$0xff] 0.0
    %22 = vst [vmem:[#allocation2 + $0x18] sm:$0xff] 0.0
  $region17: #{forward.13} parent=0 // pred_fallthru
    _
  %v23 = vld [vmem:[#allocation2] sm:$0xff]
  %v24 = vld [vmem:[#allocation2 + $0x8] sm:$0xff]
  %v25 = vld [vmem:[#allocation2 + $0x10] sm:$0xff]
  %v26 = vld [vmem:[#allocation2 + $0x18] sm:$0xff]
  %v27 = vld [vmem:[%s0] sm:$0xff]
  %v28 = vld [vmem:[%s0 + $0x8] sm:$0xff]
  %v29 = vld [vmem:[%s0 + $0x10] sm:$0xff]
  %v30 = vld [vmem:[%s0 + $0x18] sm:$0xff]
  %v31 = vpack.c.bf16 %v28, %v27
  %v32 = vpack.c.bf16 %v30, %v29
  %v33 = vld [vmem:[%s1] sm:$0xf]
  %v34 = vld [vmem:[%s1 + $0x4] sm:$0xf]
  %v35 = vld [vmem:[%s1 + $0x8] sm:$0xf]
  %v36 = vld [vmem:[%s1 + $0xc] sm:$0xf]
  %v37 = vld [vmem:[%s1 + $0x10] sm:$0xf]
  %v38 = vld [vmem:[%s1 + $0x14] sm:$0xf]
  %v39 = vld [vmem:[%s1 + $0x18] sm:$0xf]
  %v40 = vld [vmem:[%s1 + $0x1c] sm:$0xf]
  %v41 = vld [vmem:[%s1 + $0x20] sm:$0xf]
  %v42 = vld [vmem:[%s1 + $0x24] sm:$0xf]
  %v43 = vld [vmem:[%s1 + $0x28] sm:$0xf]
  %v44 = vld [vmem:[%s1 + $0x2c] sm:$0xf]
  %v45 = vld [vmem:[%s1 + $0x30] sm:$0xf]
  %v46 = vld [vmem:[%s1 + $0x34] sm:$0xf]
  %v47 = vld [vmem:[%s1 + $0x38] sm:$0xf]
  %v48 = vld [vmem:[%s1 + $0x3c] sm:$0xf]
  %v65 = vunpack.c.l.b16 %v33
  %v66 = vunpack.c.l.b16 %v34
  %v67 = vunpack.c.l.b16 %v35
  %v68 = vunpack.c.l.b16 %v36
  %v69 = vunpack.c.l.b16 %v37
  %v70 = vunpack.c.l.b16 %v38
  %v71 = vunpack.c.l.b16 %v39
  %v72 = vunpack.c.l.b16 %v40
  %v73 = vunpack.c.l.b16 %v41
  %v74 = vunpack.c.l.b16 %v42
  %v75 = vunpack.c.l.b16 %v43
  %v76 = vunpack.c.l.b16 %v44
  %v77 = vunpack.c.l.b16 %v45
  %v78 = vunpack.c.l.b16 %v46
  %v79 = vunpack.c.l.b16 %v47
  %v80 = vunpack.c.l.b16 %v48
  %v81 = vpack.c.b16 %v66, %v65
  %v82 = vpack.c.b16 %v68, %v67
  %v83 = vpack.c.b16 %v70, %v69
  %v84 = vpack.c.b16 %v72, %v71
  %v85 = vpack.c.b16 %v74, %v73
  %v86 = vpack.c.b16 %v76, %v75
  %v87 = vpack.c.b16 %v78, %v77
  %v88 = vpack.c.b16 %v80, %v79
  %97 = vmatprep.subr.bf16.mxu0 0
  %98 = vmatpush1.bf16.msra.mxu0 %v88
  %99 = vmatprep.subr.bf16.mxu0 0
  %100 = vmatpush1.bf16.msra.mxu0 %v87
  %101 = vmatprep.subr.bf16.mxu0 0
  %102 = vmatpush1.bf16.msra.mxu0 %v86
  %103 = vmatprep.subr.bf16.mxu0 0
  %104 = vmatpush1.bf16.msra.mxu0 %v85
  %105 = vmatprep.subr.bf16.mxu0 0
  %106 = vmatpush1.bf16.msra.mxu0 %v84
  %107 = vmatprep.subr.bf16.mxu0 0
  %108 = vmatpush1.bf16.msra.mxu0 %v83
  %109 = vmatprep.subr.bf16.mxu0 0
  %110 = vmatpush1.bf16.msra.mxu0 %v82
  %111 = vmatprep.subr.bf16.mxu0 0
  %112 = vmatpush1.bf16.msra.mxu0 %v81
  %113 = vmatprep.subr.bf16.mxu0 0
  %114 = vmatpush2.bf16.msra.mxu0 0
  %115 = vmatprep.subr.bf16.mxu0 0
  %116 = vmatpush2.bf16.msra.mxu0 0
  %117 = vmatprep.subr.bf16.mxu0 0
  %118 = vmatpush2.bf16.msra.mxu0 0
  %119 = vmatprep.subr.bf16.mxu0 0
  %120 = vmatpush2.bf16.msra.mxu0 0
  %121 = vmatprep.subr.bf16.mxu0 0
  %122 = vmatpush2.bf16.msra.mxu0 0
  %123 = vmatprep.subr.bf16.mxu0 0
  %124 = vmatpush2.bf16.msra.mxu0 0
  %125 = vmatprep.subr.bf16.mxu0 0
  %126 = vmatpush2.bf16.msra.mxu0 0
  %127 = vmatprep.subr.bf16.mxu0 0
  %128 = vmatpush2.bf16.msra.mxu0 0
  %129 = vmatprep.mubr.bf16.mxu0 0
  %130 = vmatmul.mubr.bf16.gmra.mxu0 %v31
  %v131 = vpop.f32.mrf.mxu0
  %v132 = vadd.f32 0.0, %v131
  %v133 = vpop.f32.mrf.mxu0
  %v134 = vpop.f32.mrf.mxu0
  %v135 = vadd.f32 0.0, %v134
  %v136 = vpop.f32.mrf.mxu0
  %137 = vmatprep.mubr.bf16.mxu0 0
  %138 = vmatmul.mubr.bf16.gmra.mxu0 %v32
  %v139 = vpop.f32.mrf.mxu0
  %v140 = vadd.f32 0.0, %v139
  %v141 = vpop.f32.mrf.mxu0
  %v142 = vpop.f32.mrf.mxu0
  %v143 = vadd.f32 0.0, %v142
  %v144 = vpop.f32.mrf.mxu0
  %145 = vdwg.mxu0
  %v146 = vadd.f32 %v23, %v132
  %v147 = vadd.f32 %v24, %v135
  %v148 = vadd.f32 %v25, %v140
  %v149 = vadd.f32 %v26, %v143
  %150 = vst [vmem:[#allocation2] sm:$0xff] %v146
  %151 = vst [vmem:[#allocation2 + $0x8] sm:$0xff] %v147
  %152 = vst [vmem:[#allocation2 + $0x10] sm:$0xff] %v148
  %153 = vst [vmem:[#allocation2 + $0x18] sm:$0xff] %v149
  // Predicated region
  $region18: #{forward.13} parent=0 // pred_check
    %p154 = pneg %p15
  $region19: #{forward.13} parent=0 // pred_check_branch
    %156 = sbr.rel (%p154) target = $region21
  $region20: #{forward.13} parent=0 // pred_region
    %v157 = vld [vmem:[#allocation2] sm:$0xff]
    %v158 = vld [vmem:[#allocation2 + $0x8] sm:$0xff]
    %v159 = vld [vmem:[#allocation2 + $0x10] sm:$0xff]
    %v160 = vld [vmem:[#allocation2 + $0x18] sm:$0xff]
    %v161 = vld [vmem:[%s2] sm:$0x1]
    %v163 = vlaneseq
    %v164 = vshrl.u32 %v163, 7
    %v165 = vsub.s32 0, %v164
    %v166 = vrot.slane %v161, %v165
    %v168 = vadd.f32 %v157, %v166
    %v169 = vadd.f32 %v158, %v166
    %v170 = vadd.f32 %v159, %v166
    %v171 = vadd.f32 %v160, %v166
    %172 = vst [vmem:[%s3] sm:$0xff] %v168
    %173 = vst [vmem:[%s3 + $0x8] sm:$0xff] %v169
    %174 = vst [vmem:[%s3 + $0x10] sm:$0xff] %v170
    %175 = vst [vmem:[%s3 + $0x18] sm:$0xff] %v171
  $region21: #{forward.13} parent=0 // pred_fallthru
    _
  // Predicated region
  $region22: #{forward.13} parent=0 // pred_check
    _
  $region23: #{forward.13} parent=0 // pred_check_branch
    %177 = sbr.rel (0) target = $region25
  $region24: #{forward.13} parent=0 // pred_region
    _
  $region25: #{forward.13} parent=0 // pred_fallthru
    _
  // Predicated region
  $region26: #{forward.13} parent=0 // pred_check
    _
  $region27: #{forward.13} parent=0 // pred_check_branch
    %179 = sbr.rel (0) target = $region29
  $region28: #{forward.13} parent=0 // pred_region
    _
  $region29: #{forward.13} parent=0 // pred_fallthru
    _

// kernel: forward.14
$region0: #{forward.14}
  #allocation0 [shape = 'u32[]', space=smem, size = 0x4, offset = 0x4, fixed_abs, tag = 'smem constant byte address 0x4 - core index']
  #allocation1 [shape = 'u32[144,128]{1,0:T(1,128)}', space=vmem, size = 0x12000, scoped, tag = 'internal scratch']
  %s0 = inlined_call_operand.vmem [shape: f32[40,32], index: 0, kind: input, shape index: {}]
  %s1 = inlined_call_operand.vmem [shape: f32[1,32], index: 1, kind: input, shape index: {}]
  %s2 = inlined_call_operand.vmem [shape: f32[1,32], index: 2, kind: input, shape index: {}]
  %s3 = inlined_call_operand.vmem [shape: bf16[32,128], index: 3, kind: input, shape index: {}]
  %s4 = inlined_call_operand.vmem [shape: f32[1,128], index: 4, kind: input, shape index: {}]
  %s5 = inlined_call_operand.vmem [shape: f32[40,128], index: 5, kind: output, shape index: {}]
  %s6 = sld [smem:[#allocation0]]
  $region30: #{forward.14} parent=0
    _
  %s8 = ssub.s32 1, %s6
  %s9 = scalar_select 0, %s8, %s6
  // Predicated region
  $region2: #{forward.14} parent=0 // pred_check
    _
  $region3: #{forward.14} parent=0 // pred_check_branch
    %11 = sbr.rel (0) target = $region5
  $region4: #{forward.14} parent=0 // pred_region
    _
  $region5: #{forward.14} parent=0 // pred_fallthru
    _
  // Predicated region
  $region6: #{forward.14} parent=0 // pred_check
    _
  $region7: #{forward.14} parent=0 // pred_check_branch
    %13 = sbr.rel (0) target = $region9
  $region8: #{forward.14} parent=0 // pred_region
    _
  $region9: #{forward.14} parent=0 // pred_fallthru
    _
  // Predicated region
  $region10: #{forward.14} parent=0 // pred_check
    _
  $region11: #{forward.14} parent=0 // pred_check_branch
    %15 = sbr.rel (0) target = $region13
  $region12: #{forward.14} parent=0 // pred_region
    _
  $region13: #{forward.14} parent=0 // pred_fallthru
    _
  // Predicated region
  $region14: #{forward.14} parent=0 // pred_check
    _
  $region15: #{forward.14} parent=0 // pred_check_branch
    %17 = sbr.rel (0) target = $region17
  $region16: #{forward.14} parent=0 // pred_region
    _
  $region17: #{forward.14} parent=0 // pred_fallthru
    _
  // Predicated region
  $region18: #{forward.14} parent=0 // pred_check
    _
  $region19: #{forward.14} parent=0 // pred_check_branch
    %19 = sbr.rel (0) target = $region21
  $region20: #{forward.14} parent=0 // pred_region
    _
  $region21: #{forward.14} parent=0 // pred_fallthru
    _
  %v21 = vld [vmem:[%s0] sm:$0xff]
  %v22 = vld [vmem:[%s0 + $0x8] sm:$0xff]
  %v23 = vld [vmem:[%s0 + $0x10] sm:$0xff]
  %v24 = vld [vmem:[%s0 + $0x18] sm:$0xff]
  %v25 = vld [vmem:[%s0 + $0x20] sm:$0xff]
  %vm26 = vcmask 261120
  %v27 = vsel %vm26, %v21, 0.0
  %28 = vadd.xlane.f32.xlu0 %v27
  %v29 = vpop.xlane.xlu0 %28
  %v30 = vsel %vm26, %v22, 0.0
  %31 = vadd.xlane.f32.xlu0 %v30
  %v32 = vpop.xlane.xlu0 %31
  %v33 = vsel %vm26, %v23, 0.0
  %34 = vadd.xlane.f32.xlu0 %v33
  %v35 = vpop.xlane.xlu0 %34
  %v36 = vsel %vm26, %v24, 0.0
  %37 = vadd.xlane.f32.xlu0 %v36
  %v38 = vpop.xlane.xlu0 %37
  %v39 = vsel %vm26, %v25, 0.0
  %40 = vadd.xlane.f32.xlu0 %v39
  %v41 = vpop.xlane.xlu0 %40
  %v42 = vrcp.pop 32.0
  %v43 = vmul.f32 %v29, %v42
  %v44 = vmul.f32 %v32, %v42
  %v45 = vmul.f32 %v35, %v42
  %v46 = vmul.f32 %v38, %v42
  %v47 = vmul.f32 %v41, %v42
  %v48 = vsub.f32 %v21, %v43
  %v49 = vsub.f32 %v22, %v44
  %v50 = vsub.f32 %v23, %v45
  %v51 = vsub.f32 %v24, %v46
  %v52 = vsub.f32 %v25, %v47
  %v53 = vmul.f32 %v48, %v48
  %v54 = vmul.f32 %v49, %v49
  %v55 = vmul.f32 %v50, %v50
  %v56 = vmul.f32 %v51, %v51
  %v57 = vmul.f32 %v52, %v52
  %v58 = vsel %vm26, %v53, 0.0
  %59 = vadd.xlane.f32.xlu0 %v58
  %v60 = vpop.xlane.xlu0 %59
  %v61 = vsel %vm26, %v54, 0.0
  %62 = vadd.xlane.f32.xlu0 %v61
  %v63 = vpop.xlane.xlu0 %62
  %v64 = vsel %vm26, %v55, 0.0
  %65 = vadd.xlane.f32.xlu0 %v64
  %v66 = vpop.xlane.xlu0 %65
  %v67 = vsel %vm26, %v56, 0.0
  %68 = vadd.xlane.f32.xlu0 %v67
  %v69 = vpop.xlane.xlu0 %68
  %v70 = vsel %vm26, %v57, 0.0
  %71 = vadd.xlane.f32.xlu0 %v70
  %v72 = vpop.xlane.xlu0 %71
  %v73 = vmul.f32 %v60, %v42
  %v74 = vmul.f32 %v63, %v42
  %v75 = vmul.f32 %v66, %v42
  %v76 = vmul.f32 %v69, %v42
  %v77 = vmul.f32 %v72, %v42
  %v78 = vadd.f32 %v73, 1e-05
  %v79 = vadd.f32 %v74, 1e-05
  %v80 = vadd.f32 %v75, 1e-05
  %v81 = vadd.f32 %v76, 1e-05
  %v82 = vadd.f32 %v77, 1e-05
  %v83 = vrsqrt.pop %v78
  %v84 = vrsqrt.pop %v79
  %v85 = vrsqrt.pop %v80
  %v86 = vrsqrt.pop %v81
  %v87 = vrsqrt.pop %v82
  %v88 = vmul.f32 %v48, %v83
  %v89 = vmul.f32 %v49, %v84
  %v90 = vmul.f32 %v50, %v85
  %v91 = vmul.f32 %v51, %v86
  %v92 = vmul.f32 %v52, %v87
  %v93 = vld [vmem:[%s1] sm:$0x1]
  %v95 = vlaneseq
  %v96 = vshrl.u32 %v95, 7
  %v97 = vsub.s32 0, %v96
  %v98 = vrot.slane %v93, %v97
  %v100 = vmul.f32 %v88, %v98
  %v101 = vmul.f32 %v89, %v98
  %v102 = vmul.f32 %v90, %v98
  %v103 = vmul.f32 %v91, %v98
  %v104 = vmul.f32 %v92, %v98
  %v105 = vld [vmem:[%s2] sm:$0x1]
  %v107 = vlaneseq
  %v108 = vshrl.u32 %v107, 7
  %v109 = vsub.s32 0, %v108
  %v110 = vrot.slane %v105, %v109
  %v112 = vadd.f32 %v100, %v110
  %v113 = vadd.f32 %v101, %v110
  %v114 = vadd.f32 %v102, %v110
  %v115 = vadd.f32 %v103, %v110
  %v116 = vadd.f32 %v104, %v110
  %v117 = vpack.c.bf16 %v113, %v112
  %v118 = vpack.c.bf16 %v115, %v114
  %v119 = vpack.c.bf16 %v116, %v116
  %v120 = vld [vmem:[%s3] sm:$0xf]
  %v121 = vld [vmem:[%s3 + $0x4] sm:$0xf]
  %v122 = vld [vmem:[%s3 + $0x8] sm:$0xf]
  %v123 = vld [vmem:[%s3 + $0xc] sm:$0xf]
  %v124 = vld [vmem:[%s4] sm:$0x1]
  %v126 = vlaneseq
  %v127 = vshrl.u32 %v126, 7
  %v128 = vsub.s32 0, %v127
  %v129 = vrot.slane %v124, %v128
  %v135 = vunpack.c.l.b16 %v120
  %v136 = vunpack.c.l.b16 %v121
  %v137 = vunpack.c.l.b16 %v122
  %v138 = vunpack.c.l.b16 %v123
  %v139 = vpack.c.b16 %v136, %v135
  %v140 = vpack.c.b16 %v138, %v137
  %v144 = vsel %vm26, %v117, 0
  %v147 = vsel %vm26, %v118, 0
  %v150 = vsel %vm26, %v119, 0
  %152 = vmatprep.subr.bf16.mxu0 0
  %153 = vmatpush1.bf16.msra.mxu0 0
  %154 = vmatprep.subr.bf16.mxu0 0
  %155 = vmatpush1.bf16.msra.mxu0 0
  %156 = vmatprep.subr.bf16.mxu0 0
  %157 = vmatpush1.bf16.msra.mxu0 0
  %158 = vmatprep.subr.bf16.mxu0 0
  %159 = vmatpush1.bf16.msra.mxu0 0
  %160 = vmatprep.subr.bf16.mxu0 0
  %161 = vmatpush1.bf16.msra.mxu0 0
  %162 = vmatprep.subr.bf16.mxu0 0
  %163 = vmatpush1.bf16.msra.mxu0 0
  %164 = vmatprep.subr.bf16.mxu0 0
  %165 = vmatpush1.bf16.msra.mxu0 %v140
  %166 = vmatprep.subr.bf16.mxu0 0
  %167 = vmatpush1.bf16.msra.mxu0 %v139
  %168 = vmatprep.subr.bf16.mxu0 0
  %169 = vmatpush2.bf16.msra.mxu0 0
  %170 = vmatprep.subr.bf16.mxu0 0
  %171 = vmatpush2.bf16.msra.mxu0 0
  %172 = vmatprep.subr.bf16.mxu0 0
  %173 = vmatpush2.bf16.msra.mxu0 0
  %174 = vmatprep.subr.bf16.mxu0 0
  %175 = vmatpush2.bf16.msra.mxu0 0
  %176 = vmatprep.subr.bf16.mxu0 0
  %177 = vmatpush2.bf16.msra.mxu0 0
  %178 = vmatprep.subr.bf16.mxu0 0
  %179 = vmatpush2.bf16.msra.mxu0 0
  %180 = vmatprep.subr.bf16.mxu0 0
  %181 = vmatpush2.bf16.msra.mxu0 0
  %182 = vmatprep.subr.bf16.mxu0 0
  %183 = vmatpush2.bf16.msra.mxu0 0
  %184 = vmatprep.mubr.bf16.mxu0 0
  %185 = vmatmul.mubr.bf16.gmra.mxu0 %v144
  %v186 = vpop.f32.mrf.mxu0
  %v187 = vadd.f32 %v129, %v186
  %v188 = vpop.f32.mrf.mxu0
  %v189 = vpop.f32.mrf.mxu0
  %v190 = vadd.f32 %v129, %v189
  %v191 = vpop.f32.mrf.mxu0
  %192 = vmatprep.mubr.bf16.mxu0 0
  %193 = vmatmul.mubr.bf16.gmra.mxu0 %v147
  %v194 = vpop.f32.mrf.mxu0
  %v195 = vadd.f32 %v129, %v194
  %v196 = vpop.f32.mrf.mxu0
  %v197 = vpop.f32.mrf.mxu0
  %v198 = vadd.f32 %v129, %v197
  %v199 = vpop.f32.mrf.mxu0
  %200 = vmatprep.mubr.bf16.mxu0 0
  %201 = vmatmul.mubr.bf16.gmra.mxu0 %v150
  %v202 = vpop.f32.mrf.mxu0
  %v203 = vadd.f32 %v129, %v202
  %v204 = vpop.f32.mrf.mxu0
  %v205 = vpop.f32.mrf.mxu0
  %v206 = vpop.f32.mrf.mxu0
  %207 = vdwg.mxu0
  %208 = vst [vmem:[%s5] sm:$0xff] %v187
  %209 = vst [vmem:[%s5 + $0x8] sm:$0xff] %v190
  %210 = vst [vmem:[%s5 + $0x10] sm:$0xff] %v195
  %211 = vst [vmem:[%s5 + $0x18] sm:$0xff] %v198
  %212 = vst [vmem:[%s5 + $0x20] sm:$0xff] %v203
  // Predicated region
  $region22: #{forward.14} parent=0 // pred_check
    _
  $region23: #{forward.14} parent=0 // pred_check_branch
    %214 = sbr.rel (0) target = $region25
  $region24: #{forward.14} parent=0 // pred_region
    _
  $region25: #{forward.14} parent=0 // pred_fallthru
    _
  // Predicated region
  $region26: #{forward.14} parent=0 // pred_check
    _
  $region27: #{forward.14} parent=0 // pred_check_branch
    %216 = sbr.rel (0) target = $region29
  $region28: #{forward.14} parent=0 // pred_region
    _
  $region29: #{forward.14} parent=0 // pred_fallthru
    _

// kernel: forward.15
$region0: #{forward.15}
  #allocation0 [shape = 'u32[]', space=smem, size = 0x4, offset = 0x4, fixed_abs, tag = 'smem constant byte address 0x4 - core index']
  #allocation1 [shape = 'u32[144,128]{1,0:T(1,128)}', space=vmem, size = 0x12000, scoped, tag = 'internal scratch']
  %s0 = inlined_call_operand.vmem [shape: f32[2,4,17,8], index: 0, kind: input, shape index: {}]
  %s1 = inlined_call_operand.vmem [shape: f32[2,4,17,8], index: 1, kind: input, shape index: {}]
  %s2 = inlined_call_operand.vmem [shape: f32[2,4,17,8], index: 2, kind: input, shape index: {}]
  %s3 = inlined_call_operand.vmem [shape: f32[2,4,17,8], index: 3, kind: output, shape index: {}]
  %s4 = sld [smem:[#allocation0]]
  $region45: #{forward.15} parent=0
    _
  %s6 = ssub.s32 1, %s4
  %s7 = scalar_select 0, %s6, %s4
  loop: start=0, step=1, limit=4
  $region2: #{forward.15} parent=0 // loop_pre_header
    _
  $region3: #{forward.15} parent=0 // loop_header
    %s9 = sphi 0, %s13
    %p10 = scmp.ge.s32.totalorder %s9, 4
    %s19 = sphi 0, %s21
    %s22 = sphi 0, %s19
    %s23 = sphi 0, %s22
    %s39 = sphi 0, %s23
    %s45 = sphi 0, %s47
    %s48 = sphi 0, %s45
    %s49 = sphi 0, %s48
    %s65 = sphi 0, %s49
    %s71 = sphi 0, %s73
    %s74 = sphi 0, %s71
    %s75 = sphi 0, %s74
    %s91 = sphi 0, %s75
    %s97 = sphi 0, %s99
    %s100 = sphi 0, %s97
    %s101 = sphi 0, %s100
    %s117 = sphi 0, %s101
  $region4: #{forward.15} parent=0 // loop_header_branch
    %12 = sbr.rel (%p10) target = $region8
  $region5: #{forward.15} parent=0 // loop_body
    %s14 = ssub.s32 %s9, 1
    %s15 = ssub.s32 %s9, 2
    %s16 = sadd.s32 %s9, 1
    %s17 = ssub.s32 %s9, %s16
    %p18 = scmp.eq.s32.totalorder %s17, 0
    %s20 = sadd.s32 %s19, 1
    %s21 = scalar_select %p18, %s19, %s20
    %p24 = pneg %p18
    %p25 = scmp.eq.s32.totalorder %s9, 1
    %p26 = por %p24, %p25
    %p27 = scmp.ne.s32.totalorder %s19, %s22
    %p28 = scmp.eq.s32.totalorder %s9, 0
    %p29 = por %p27, %p28
    %p30 = scmp.ne.s32.totalorder %s19, %s22
    %p31 = scmp.eq.s32.totalorder %s14, 1
    %p32 = por %p30, %p31
    %p33 = scmp.ne.s32.totalorder %s22, %s23
    %p34 = scmp.eq.s32.totalorder %s14, 0
    %p35 = por %p33, %p34
    %p36 = scmp.ne.s32.totalorder %s22, %s23
    %p37 = scmp.eq.s32.totalorder %s15, 1
    %p38 = por %p36, %p37
    %p40 = scmp.ne.s32.totalorder %s23, %s39
    %p41 = scmp.eq.s32.totalorder %s15, 0
    %p42 = por %p40, %p41
    %s43 = ssub.s32 %s9, %s16
    %p44 = scmp.eq.s32.totalorder %s43, 0
    %s46 = sadd.s32 %s45, 1
    %s47 = scalar_select %p44, %s45, %s46
    %p50 = pneg %p44
    %p51 = scmp.eq.s32.totalorder %s9, 1
    %p52 = por %p50, %p51
    %p53 = scmp.ne.s32.totalorder %s45, %s48
    %p54 = scmp.eq.s32.totalorder %s9, 0
    %p55 = por %p53, %p54
    %p56 = scmp.ne.s32.totalorder %s45, %s48
    %p57 = scmp.eq.s32.totalorder %s14, 1
    %p58 = por %p56, %p57
    %p59 = scmp.ne.s32.totalorder %s48, %s49
    %p60 = scmp.eq.s32.totalorder %s14, 0
    %p61 = por %p59, %p60
    %p62 = scmp.ne.s32.totalorder %s48, %s49
    %p63 = scmp.eq.s32.totalorder %s15, 1
    %p64 = por %p62, %p63
    %p66 = scmp.ne.s32.totalorder %s49, %s65
    %p67 = scmp.eq.s32.totalorder %s15, 0
    %p68 = por %p66, %p67
    %s69 = ssub.s32 %s9, %s16
    %p70 = scmp.eq.s32.totalorder %s69, 0
    %s72 = sadd.s32 %s71, 1
    %s73 = scalar_select %p70, %s71, %s72
    %p76 = pneg %p70
    %p77 = scmp.eq.s32.totalorder %s9, 1
    %p78 = por %p76, %p77
    %p79 = scmp.ne.s32.totalorder %s71, %s74
    %p80 = scmp.eq.s32.totalorder %s9, 0
    %p81 = por %p79, %p80
    %p82 = scmp.ne.s32.totalorder %s71, %s74
    %p83 = scmp.eq.s32.totalorder %s14, 1
    %p84 = por %p82, %p83
    %p85 = scmp.ne.s32.totalorder %s74, %s75
    %p86 = scmp.eq.s32.totalorder %s14, 0
    %p87 = por %p85, %p86
    %p88 = scmp.ne.s32.totalorder %s74, %s75
    %p89 = scmp.eq.s32.totalorder %s15, 1
    %p90 = por %p88, %p89
    %p92 = scmp.ne.s32.totalorder %s75, %s91
    %p93 = scmp.eq.s32.totalorder %s15, 0
    %p94 = por %p92, %p93
    %s95 = ssub.s32 %s9, %s16
    %p96 = scmp.eq.s32.totalorder %s95, 0
    %s98 = sadd.s32 %s97, 1
    %s99 = scalar_select %p96, %s97, %s98
    %p102 = pneg %p96
    %p103 = scmp.eq.s32.totalorder %s9, 1
    %p104 = por %p102, %p103
    %p105 = scmp.ne.s32.totalorder %s97, %s100
    %p106 = scmp.eq.s32.totalorder %s9, 0
    %p107 = por %p105, %p106
    %p108 = scmp.ne.s32.totalorder %s97, %s100
    %p109 = scmp.eq.s32.totalorder %s14, 1
    %p110 = por %p108, %p109
    %p111 = scmp.ne.s32.totalorder %s100, %s101
    %p112 = scmp.eq.s32.totalorder %s14, 0
    %p113 = por %p111, %p112
    %p114 = scmp.ne.s32.totalorder %s100, %s101
    %p115 = scmp.eq.s32.totalorder %s15, 1
    %p116 = por %p114, %p115
    %p118 = scmp.ne.s32.totalorder %s101, %s117
    %p119 = scmp.eq.s32.totalorder %s15, 0
    %p120 = por %p118, %p119
    %p121 = scmp.le.s32.totalorder 1, %s9
    %p122 = scmp.lt.s32.totalorder %s9, 3
    %p123 = pnand %p121, %p122
    %p124 = pneg %p123
    // Predicated region
    $region9: #{forward.15} parent=5 // pred_check
      _
    $region10: #{forward.15} parent=5 // pred_check_branch
      %126 = sbr.rel (%p123) target = $region12
    $region11: #{forward.15} parent=5 // pred_region
      %s127 = ssub.s32 %s9, 1
    $region12: #{forward.15} parent=5 // pred_fallthru
      _
    %p128 = scmp.lt.s32.totalorder %s9, 2
    // Predicated region
    $region13: #{forward.15} parent=5 // pred_check
      %p129 = pneg %p128
    $region14: #{forward.15} parent=5 // pred_check_branch
      %131 = sbr.rel (%p129) target = $region16
    $region15: #{forward.15} parent=5 // pred_region
      // Predicated region
      $region17: #{forward.15} parent=15 // pred_check
        %p132 = pneg %p29
      $region18: #{forward.15} parent=15 // pred_check_branch
        %134 = sbr.rel (%p132) target = $region20
      $region19: #{forward.15} parent=15 // pred_region
        %p135 = scmp.lt.s32.totalorder %s9, 1
        %s136 = scalar_select %p135, %s9, 1
        %s137 = smul.addr %s136, 12
        %s138 = smul.addr %s137, 8
        %s139 = scalar_lea.vmem %s0, %s138
      $region20: #{forward.15} parent=15 // pred_fallthru
        _
      // Predicated region
      $region21: #{forward.15} parent=15 // pred_check
        %p140 = pneg %p55
      $region22: #{forward.15} parent=15 // pred_check_branch
        %142 = sbr.rel (%p140) target = $region24
      $region23: #{forward.15} parent=15 // pred_region
        %p143 = scmp.lt.s32.totalorder %s9, 1
        %s144 = scalar_select %p143, %s9, 1
        %s145 = smul.addr %s144, 12
        %s146 = smul.addr %s145, 8
        %s147 = scalar_lea.vmem %s1, %s146
      $region24: #{forward.15} parent=15 // pred_fallthru
        _
      // Predicated region
      $region25: #{forward.15} parent=15 // pred_check
        %p148 = pneg %p81
      $region26: #{forward.15} parent=15 // pred_check_branch
        %150 = sbr.rel (%p148) target = $region28
      $region27: #{forward.15} parent=15 // pred_region
        %p151 = scmp.lt.s32.totalorder %s9, 1
        %s152 = scalar_select %p151, %s9, 1
        %s153 = smul.addr %s152, 12
        %s154 = smul.addr %s153, 8
        %s155 = scalar_lea.vmem %s2, %s154
      $region28: #{forward.15} parent=15 // pred_fallthru
        _
    $region16: #{forward.15} parent=5 // pred_fallthru
      _
    %p156 = scmp.le.s32.totalorder 1, %s9
    %p157 = scmp.lt.s32.totalorder %s9, 3
    %p158 = pnand %p156, %p157
    %p159 = pneg %p158
    // Predicated region
    $region29: #{forward.15} parent=5 // pred_check
      _
    $region30: #{forward.15} parent=5 // pred_check_branch
      %161 = sbr.rel (%p158) target = $region32
    $region31: #{forward.15} parent=5 // pred_region
      %s162 = ssub.s32 %s9, 1
      %p163 = scmp.lt.s32.totalorder %s14, 1
      %s164 = scalar_select %p163, %s14, 1
      %s165 = smul.addr %s164, 12
      %s166 = smul.addr %s165, 8
      %s167 = scalar_lea.vmem %s0, %s166
      %p168 = pneg %p35
      %p169 = pneg %p32
      %p170 = scmp.lt.s32.totalorder %s14, 1
      %s171 = scalar_select %p170, %s14, 1
      %s172 = smul.addr %s171, 12
      %s173 = smul.addr %s172, 8
      %s174 = scalar_lea.vmem %s1, %s173
      %p175 = pneg %p61
      %p176 = pneg %p58
      %p177 = scmp.lt.s32.totalorder %s14, 1
      %s178 = scalar_select %p177, %s14, 1
      %s179 = smul.addr %s178, 12
      %s180 = smul.addr %s179, 8
      %s181 = scalar_lea.vmem %s2, %s180
      %p182 = pneg %p87
      %p183 = pneg %p84
      %p184 = pneg %p113
      %p185 = pneg %p110
      %p186 = scmp.lt.s32.totalorder %s14, 1
      %s187 = scalar_select %p186, %s14, 1
      %s188 = smul.addr %s187, 12
      %s189 = smul.addr %s188, 8
      %s190 = scalar_lea.vmem %s3, %s189
      %p191 = scmp.lt.s32.totalorder %s14, 1
      %s192 = scalar_select %p191, %s14, 1
      %s193 = smul.addr %s192, 12
      %s194 = smul.addr %s193, 8
      %s195 = scalar_lea.vmem %s0, %s194
      %p196 = scmp.lt.s32.totalorder %s14, 1
      %s197 = scalar_select %p196, %s14, 1
      %s198 = smul.addr %s197, 12
      %s199 = smul.addr %s198, 8
      %s200 = scalar_lea.vmem %s1, %s199
      %p201 = scmp.lt.s32.totalorder %s14, 1
      %s202 = scalar_select %p201, %s14, 1
      %s203 = smul.addr %s202, 12
      %s204 = smul.addr %s203, 8
      %s205 = scalar_lea.vmem %s2, %s204
      %p206 = scmp.lt.s32.totalorder %s14, 1
      %s207 = scalar_select %p206, %s14, 1
      %s208 = smul.addr %s207, 12
      %s209 = smul.addr %s208, 8
      %s210 = scalar_lea.vmem %s3, %s209
      %v212 = vld [vmem:[%s195] sm:$0xff]
      %v213 = vld [vmem:[%s195 + $0x8] sm:$0xff]
      %v214 = vld [vmem:[%s195 + $0x10] sm:$0x1]
      %v215 = vld [vmem:[%s195 + $0x18] sm:$0xff]
      %v216 = vld [vmem:[%s195 + $0x20] sm:$0xff]
      %v217 = vld [vmem:[%s195 + $0x28] sm:$0x1]
      %v218 = vld [vmem:[%s195 + $0x30] sm:$0xff]
      %v219 = vld [vmem:[%s195 + $0x38] sm:$0xff]
      %v220 = vld [vmem:[%s195 + $0x40] sm:$0x1]
      %v221 = vld [vmem:[%s195 + $0x48] sm:$0xff]
      %v222 = vld [vmem:[%s195 + $0x50] sm:$0xff]
      %v223 = vld [vmem:[%s195 + $0x58] sm:$0x1]
      %v224 = vpack.c.bf16 %v213, %v212
      %v225 = vpack.c.bf16 %v214, %v214
      %v226 = vpack.c.bf16 %v216, %v215
      %v227 = vpack.c.bf16 %v217, %v217
      %v228 = vpack.c.bf16 %v219, %v218
      %v229 = vpack.c.bf16 %v220, %v220
      %v230 = vpack.c.bf16 %v222, %v221
      %v231 = vpack.c.bf16 %v223, %v223
      %v232 = vld [vmem:[%s200] sm:$0xff]
      %v233 = vld [vmem:[%s200 + $0x8] sm:$0xff]
      %v234 = vld [vmem:[%s200 + $0x10] sm:$0x1]
      %v235 = vld [vmem:[%s200 + $0x18] sm:$0xff]
      %v236 = vld [vmem:[%s200 + $0x20] sm:$0xff]
      %v237 = vld [vmem:[%s200 + $0x28] sm:$0x1]
      %v238 = vld [vmem:[%s200 + $0x30] sm:$0xff]
      %v239 = vld [vmem:[%s200 + $0x38] sm:$0xff]
      %v240 = vld [vmem:[%s200 + $0x40] sm:$0x1]
      %v241 = vld [vmem:[%s200 + $0x48] sm:$0xff]
      %v242 = vld [vmem:[%s200 + $0x50] sm:$0xff]
      %v243 = vld [vmem:[%s200 + $0x58] sm:$0x1]
      %v244 = vpack.c.bf16 %v233, %v232
      %v245 = vpack.c.bf16 %v234, %v234
      %v246 = vpack.c.bf16 %v236, %v235
      %v247 = vpack.c.bf16 %v237, %v237
      %v248 = vpack.c.bf16 %v239, %v238
      %v249 = vpack.c.bf16 %v240, %v240
      %v250 = vpack.c.bf16 %v242, %v241
      %v251 = vpack.c.bf16 %v243, %v243
      %v252 = vld [vmem:[%s205] sm:$0xff]
      %v253 = vld [vmem:[%s205 + $0x8] sm:$0xff]
      %v254 = vld [vmem:[%s205 + $0x10] sm:$0x1]
      %v255 = vld [vmem:[%s205 + $0x18] sm:$0xff]
      %v256 = vld [vmem:[%s205 + $0x20] sm:$0xff]
      %v257 = vld [vmem:[%s205 + $0x28] sm:$0x1]
      %v258 = vld [vmem:[%s205 + $0x30] sm:$0xff]
      %v259 = vld [vmem:[%s205 + $0x38] sm:$0xff]
      %v260 = vld [vmem:[%s205 + $0x40] sm:$0x1]
      %v261 = vld [vmem:[%s205 + $0x48] sm:$0xff]
      %v262 = vld [vmem:[%s205 + $0x50] sm:$0xff]
      %v263 = vld [vmem:[%s205 + $0x58] sm:$0x1]
      %v264 = vpack.c.bf16 %v253, %v252
      %v265 = vpack.c.bf16 %v254, %v254
      %v266 = vpack.c.bf16 %v256, %v255
      %v267 = vpack.c.bf16 %v257, %v257
      %v268 = vpack.c.bf16 %v259, %v258
      %v269 = vpack.c.bf16 %v260, %v260
      %v270 = vpack.c.bf16 %v262, %v261
      %v271 = vpack.c.bf16 %v263, %v263
      %vm272 = vcmask 64512
      %v274 = vsel %vm272, %v224, 0
      %v277 = vsel %vm272, %v225, 0
      %v280 = vsel %vm272, %v244, 0
      %v283 = vsel %vm272, %v245, 0
      %285 = vmatprep.subr.bf16.mxu0 0
      %286 = vmatpush1.bf16.xpose.msra.mxu0 0
      %287 = vmatprep.subr.bf16.mxu0 0
      %288 = vmatpush1.bf16.xpose.msra.mxu0 0
      %289 = vmatprep.subr.bf16.mxu0 0
      %290 = vmatpush1.bf16.xpose.msra.mxu0 0
      %291 = vmatprep.subr.bf16.mxu0 0
      %292 = vmatpush1.bf16.xpose.msra.mxu0 0
      %293 = vmatprep.subr.bf16.mxu0 0
      %294 = vmatpush1.bf16.xpose.msra.mxu0 0
      %295 = vmatprep.subr.bf16.mxu0 0
      %296 = vmatpush1.bf16.xpose.msra.mxu0 0
      %297 = vmatprep.subr.bf16.mxu0 0
      %298 = vmatpush1.bf16.xpose.msra.mxu0 %v283
      %299 = vmatprep.subr.bf16.mxu0 0
      %300 = vmatpush1.bf16.xpose.msra.mxu0 %v280
      %301 = vmatprep.subr.bf16.mxu0 0
      %302 = vmatpush2.bf16.xpose.msra.mxu0 0
      %303 = vmatprep.subr.bf16.mxu0 0
      %304 = vmatpush2.bf16.xpose.msra.mxu0 0
      %305 = vmatprep.subr.bf16.mxu0 0
      %306 = vmatpush2.bf16.xpose.msra.mxu0 0
      %307 = vmatprep.subr.bf16.mxu0 0
      %308 = vmatpush2.bf16.xpose.msra.mxu0 0
      %309 = vmatprep.subr.bf16.mxu0 0
      %310 = vmatpush2.bf16.xpose.msra.mxu0 0
      %311 = vmatprep.subr.bf16.mxu0 0
      %312 = vmatpush2.bf16.xpose.msra.mxu0 0
      %313 = vmatprep.subr.bf16.mxu0 0
      %314 = vmatpush2.bf16.xpose.msra.mxu0 0
      %315 = vmatprep.subr.bf16.mxu0 0
      %316 = vmatpush2.bf16.xpose.msra.mxu0 0
      %317 = vmatprep.mubr.bf16.mxu0 0
      %318 = vmatmul.mubr.bf16.gmra.mxu0 %v274
      %v319 = vpop.f32.mrf.mxu0
      %v320 = vadd.f32 0.0, %v319
      %v321 = vpop.f32.mrf.mxu0
      %v322 = vpop.f32.mrf.mxu0
      %v323 = vadd.f32 0.0, %v322
      %v324 = vpop.f32.mrf.mxu0
      %325 = vmatprep.mubr.bf16.mxu0 0
      %326 = vmatmul.mubr.bf16.gmra.mxu0 %v277
      %v327 = vpop.f32.mrf.mxu0
      %v328 = vadd.f32 0.0, %v327
      %v329 = vpop.f32.mrf.mxu0
      %v330 = vpop.f32.mrf.mxu0
      %v331 = vpop.f32.mrf.mxu0
      %332 = vdwg.mxu0
      %v334 = vsel %vm272, %v226, 0
      %v337 = vsel %vm272, %v227, 0
      %v340 = vsel %vm272, %v246, 0
      %v343 = vsel %vm272, %v247, 0
      %345 = vmatprep.subr.bf16.mxu0 0
      %346 = vmatpush1.bf16.xpose.msra.mxu0 0
      %347 = vmatprep.subr.bf16.mxu0 0
      %348 = vmatpush1.bf16.xpose.msra.mxu0 0
      %349 = vmatprep.subr.bf16.mxu0 0
      %350 = vmatpush1.bf16.xpose.msra.mxu0 0
      %351 = vmatprep.subr.bf16.mxu0 0
      %352 = vmatpush1.bf16.xpose.msra.mxu0 0
      %353 = vmatprep.subr.bf16.mxu0 0
      %354 = vmatpush1.bf16.xpose.msra.mxu0 0
      %355 = vmatprep.subr.bf16.mxu0 0
      %356 = vmatpush1.bf16.xpose.msra.mxu0 0
      %357 = vmatprep.subr.bf16.mxu0 0
      %358 = vmatpush1.bf16.xpose.msra.mxu0 %v343
      %359 = vmatprep.subr.bf16.mxu0 0
      %360 = vmatpush1.bf16.xpose.msra.mxu0 %v340
      %361 = vmatprep.subr.bf16.mxu0 0
      %362 = vmatpush2.bf16.xpose.msra.mxu0 0
      %363 = vmatprep.subr.bf16.mxu0 0
      %364 = vmatpush2.bf16.xpose.msra.mxu0 0
      %365 = vmatprep.subr.bf16.mxu0 0
      %366 = vmatpush2.bf16.xpose.msra.mxu0 0
      %367 = vmatprep.subr.bf16.mxu0 0
      %368 = vmatpush2.bf16.xpose.msra.mxu0 0
      %369 = vmatprep.subr.bf16.mxu0 0
      %370 = vmatpush2.bf16.xpose.msra.mxu0 0
      %371 = vmatprep.subr.bf16.mxu0 0
      %372 = vmatpush2.bf16.xpose.msra.mxu0 0
      %373 = vmatprep.subr.bf16.mxu0 0
      %374 = vmatpush2.bf16.xpose.msra.mxu0 0
      %375 = vmatprep.subr.bf16.mxu0 0
      %376 = vmatpush2.bf16.xpose.msra.mxu0 0
      %377 = vmatprep.mubr.bf16.mxu0 0
      %378 = vmatmul.mubr.bf16.gmra.mxu0 %v334
      %v379 = vpop.f32.mrf.mxu0
      %v380 = vadd.f32 0.0, %v379
      %v381 = vpop.f32.mrf.mxu0
      %v382 = vpop.f32.mrf.mxu0
      %v383 = vadd.f32 0.0, %v382
      %v384 = vpop.f32.mrf.mxu0
      %385 = vmatprep.mubr.bf16.mxu0 0
      %386 = vmatmul.mubr.bf16.gmra.mxu0 %v337
      %v387 = vpop.f32.mrf.mxu0
      %v388 = vadd.f32 0.0, %v387
      %v389 = vpop.f32.mrf.mxu0
      %v390 = vpop.f32.mrf.mxu0
      %v391 = vpop.f32.mrf.mxu0
      %392 = vdwg.mxu0
      %v394 = vsel %vm272, %v228, 0
      %v397 = vsel %vm272, %v229, 0
      %v400 = vsel %vm272, %v248, 0
      %v403 = vsel %vm272, %v249, 0
      %405 = vmatprep.subr.bf16.mxu0 0
      %406 = vmatpush1.bf16.xpose.msra.mxu0 0
      %407 = vmatprep.subr.bf16.mxu0 0
      %408 = vmatpush1.bf16.xpose.msra.mxu0 0
      %409 = vmatprep.subr.bf16.mxu0 0
      %410 = vmatpush1.bf16.xpose.msra.mxu0 0
      %411 = vmatprep.subr.bf16.mxu0 0
      %412 = vmatpush1.bf16.xpose.msra.mxu0 0
      %413 = vmatprep.subr.bf16.mxu0 0
      %414 = vmatpush1.bf16.xpose.msra.mxu0 0
      %415 = vmatprep.subr.bf16.mxu0 0
      %416 = vmatpush1.bf16.xpose.msra.mxu0 0
      %417 = vmatprep.subr.bf16.mxu0 0
      %418 = vmatpush1.bf16.xpose.msra.mxu0 %v403
      %419 = vmatprep.subr.bf16.mxu0 0
      %420 = vmatpush1.bf16.xpose.msra.mxu0 %v400
      %421 = vmatprep.subr.bf16.mxu0 0
      %422 = vmatpush2.bf16.xpose.msra.mxu0 0
      %423 = vmatprep.subr.bf16.mxu0 0
      %424 = vmatpush2.bf16.xpose.msra.mxu0 0
      %425 = vmatprep.subr.bf16.mxu0 0
      %426 = vmatpush2.bf16.xpose.msra.mxu0 0
      %427 = vmatprep.subr.bf16.mxu0 0
      %428 = vmatpush2.bf16.xpose.msra.mxu0 0
      %429 = vmatprep.subr.bf16.mxu0 0
      %430 = vmatpush2.bf16.xpose.msra.mxu0 0
      %431 = vmatprep.subr.bf16.mxu0 0
      %432 = vmatpush2.bf16.xpose.msra.mxu0 0
      %433 = vmatprep.subr.bf16.mxu0 0
      %434 = vmatpush2.bf16.xpose.msra.mxu0 0
      %435 = vmatprep.subr.bf16.mxu0 0
      %436 = vmatpush2.bf16.xpose.msra.mxu0 0
      %437 = vmatprep.mubr.bf16.mxu0 0
      %438 = vmatmul.mubr.bf16.gmra.mxu0 %v394
      %v439 = vpop.f32.mrf.mxu0
      %v440 = vadd.f32 0.0, %v439
      %v441 = vpop.f32.mrf.mxu0
      %v442 = vpop.f32.mrf.mxu0
      %v443 = vadd.f32 0.0, %v442
      %v444 = vpop.f32.mrf.mxu0
      %445 = vmatprep.mubr.bf16.mxu0 0
      %446 = vmatmul.mubr.bf16.gmra.mxu0 %v397
      %v447 = vpop.f32.mrf.mxu0
      %v448 = vadd.f32 0.0, %v447
      %v449 = vpop.f32.mrf.mxu0
      %v450 = vpop.f32.mrf.mxu0
      %v451 = vpop.f32.mrf.mxu0
      %452 = vdwg.mxu0
      %v454 = vsel %vm272, %v230, 0
      %v457 = vsel %vm272, %v231, 0
      %v460 = vsel %vm272, %v250, 0
      %v463 = vsel %vm272, %v251, 0
      %465 = vmatprep.subr.bf16.mxu0 0
      %466 = vmatpush1.bf16.xpose.msra.mxu0 0
      %467 = vmatprep.subr.bf16.mxu0 0
      %468 = vmatpush1.bf16.xpose.msra.mxu0 0
      %469 = vmatprep.subr.bf16.mxu0 0
      %470 = vmatpush1.bf16.xpose.msra.mxu0 0
      %471 = vmatprep.subr.bf16.mxu0 0
      %472 = vmatpush1.bf16.xpose.msra.mxu0 0
      %473 = vmatprep.subr.bf16.mxu0 0
      %474 = vmatpush1.bf16.xpose.msra.mxu0 0
      %475 = vmatprep.subr.bf16.mxu0 0
      %476 = vmatpush1.bf16.xpose.msra.mxu0 0
      %477 = vmatprep.subr.bf16.mxu0 0
      %478 = vmatpush1.bf16.xpose.msra.mxu0 %v463
      %479 = vmatprep.subr.bf16.mxu0 0
      %480 = vmatpush1.bf16.xpose.msra.mxu0 %v460
      %481 = vmatprep.subr.bf16.mxu0 0
      %482 = vmatpush2.bf16.xpose.msra.mxu0 0
      %483 = vmatprep.subr.bf16.mxu0 0
      %484 = vmatpush2.bf16.xpose.msra.mxu0 0
      %485 = vmatprep.subr.bf16.mxu0 0
      %486 = vmatpush2.bf16.xpose.msra.mxu0 0
      %487 = vmatprep.subr.bf16.mxu0 0
      %488 = vmatpush2.bf16.xpose.msra.mxu0 0
      %489 = vmatprep.subr.bf16.mxu0 0
      %490 = vmatpush2.bf16.xpose.msra.mxu0 0
      %491 = vmatprep.subr.bf16.mxu0 0
      %492 = vmatpush2.bf16.xpose.msra.mxu0 0
      %493 = vmatprep.subr.bf16.mxu0 0
      %494 = vmatpush2.bf16.xpose.msra.mxu0 0
      %495 = vmatprep.subr.bf16.mxu0 0
      %496 = vmatpush2.bf16.xpose.msra.mxu0 0
      %497 = vmatprep.mubr.bf16.mxu0 0
      %498 = vmatmul.mubr.bf16.gmra.mxu0 %v454
      %v499 = vpop.f32.mrf.mxu0
      %v500 = vadd.f32 0.0, %v499
      %v501 = vpop.f32.mrf.mxu0
      %v502 = vpop.f32.mrf.mxu0
      %v503 = vadd.f32 0.0, %v502
      %v504 = vpop.f32.mrf.mxu0
      %505 = vmatprep.mubr.bf16.mxu0 0
      %506 = vmatmul.mubr.bf16.gmra.mxu0 %v457
      %v507 = vpop.f32.mrf.mxu0
      %v508 = vadd.f32 0.0, %v507
      %v509 = vpop.f32.mrf.mxu0
      %v510 = vpop.f32.mrf.mxu0
      %v511 = vpop.f32.mrf.mxu0
      %512 = vdwg.mxu0
      %v513 = vmul.f32 %v320, 0.35355338
      %v514 = vmul.f32 %v323, 0.35355338
      %v515 = vmul.f32 %v328, 0.35355338
      %v516 = vmul.f32 %v380, 0.35355338
      %v517 = vmul.f32 %v383, 0.35355338
      %v518 = vmul.f32 %v388, 0.35355338
      %v519 = vmul.f32 %v440, 0.35355338
      %v520 = vmul.f32 %v443, 0.35355338
      %v521 = vmul.f32 %v448, 0.35355338
      %v522 = vmul.f32 %v500, 0.35355338
      %v523 = vmul.f32 %v503, 0.35355338
      %v524 = vmul.f32 %v508, 0.35355338
      %vm525 = vcmask 138240
      %v526 = vsel %vm525, %v513, -inf
      %527 = vmax.xlane.f32.xlu0 %v526
      %v528 = vpop.xlane.xlu0 %527
      %v529 = vsel %vm525, %v514, -inf
      %530 = vmax.xlane.f32.xlu0 %v529
      %v531 = vpop.xlane.xlu0 %530
      %vm532 = vcmask 131072
      %v533 = vsel %vm532, %v515, -inf
      %534 = vmax.xlane.f32.xlu0 %v533
      %v535 = vpop.xlane.xlu0 %534
      %v536 = vsel %vm525, %v516, -inf
      %537 = vmax.xlane.f32.xlu0 %v536
      %v538 = vpop.xlane.xlu0 %537
      %v539 = vsel %vm525, %v517, -inf
      %540 = vmax.xlane.f32.xlu0 %v539
      %v541 = vpop.xlane.xlu0 %540
      %v542 = vsel %vm532, %v518, -inf
      %543 = vmax.xlane.f32.xlu0 %v542
      %v544 = vpop.xlane.xlu0 %543
      %v545 = vsel %vm525, %v519, -inf
      %546 = vmax.xlane.f32.xlu0 %v545
      %v547 = vpop.xlane.xlu0 %546
      %v548 = vsel %vm525, %v520, -inf
      %549 = vmax.xlane.f32.xlu0 %v548
      %v550 = vpop.xlane.xlu0 %549
      %v551 = vsel %vm532, %v521, -inf
      %552 = vmax.xlane.f32.xlu0 %v551
      %v553 = vpop.xlane.xlu0 %552
      %v554 = vsel %vm525, %v522, -inf
      %555 = vmax.xlane.f32.xlu0 %v554
      %v556 = vpop.xlane.xlu0 %555
      %v557 = vsel %vm525, %v523, -inf
      %558 = vmax.xlane.f32.xlu0 %v557
      %v559 = vpop.xlane.xlu0 %558
      %v560 = vsel %vm532, %v524, -inf
      %561 = vmax.xlane.f32.xlu0 %v560
      %v562 = vpop.xlane.xlu0 %561
      %v563 = vsub.f32 %v513, %v528
      %v564 = vsub.f32 %v514, %v531
      %v565 = vsub.f32 %v515, %v535
      %v566 = vsub.f32 %v516, %v538
      %v567 = vsub.f32 %v517, %v541
      %v568 = vsub.f32 %v518, %v544
      %v569 = vsub.f32 %v519, %v547
      %v570 = vsub.f32 %v520, %v550
      %v571 = vsub.f32 %v521, %v553
      %v572 = vsub.f32 %v522, %v556
      %v573 = vsub.f32 %v523, %v559
      %v574 = vsub.f32 %v524, %v562
      %v575 = vmul.f32 %v563, 1.442695
      %v576 = vpow.pop %v575
      %v577 = vmul.f32 %v564, 1.442695
      %v578 = vpow.pop %v577
      %v579 = vmul.f32 %v565, 1.442695
      %v580 = vpow.pop %v579
      %v581 = vmul.f32 %v566, 1.442695
      %v582 = vpow.pop %v581
      %v583 = vmul.f32 %v567, 1.442695
      %v584 = vpow.pop %v583
      %v585 = vmul.f32 %v568, 1.442695
      %v586 = vpow.pop %v585
      %v587 = vmul.f32 %v569, 1.442695
      %v588 = vpow.pop %v587
      %v589 = vmul.f32 %v570, 1.442695
      %v590 = vpow.pop %v589
      %v591 = vmul.f32 %v571, 1.442695
      %v592 = vpow.pop %v591
      %v593 = vmul.f32 %v572, 1.442695
      %v594 = vpow.pop %v593
      %v595 = vmul.f32 %v573, 1.442695
      %v596 = vpow.pop %v595
      %v597 = vmul.f32 %v574, 1.442695
      %v598 = vpow.pop %v597
      %v599 = vsel %vm525, %v576, 0.0
      %600 = vadd.xlane.f32.xlu0 %v599
      %v601 = vpop.xlane.xlu0 %600
      %v602 = vsel %vm525, %v578, 0.0
      %603 = vadd.xlane.f32.xlu0 %v602
      %v604 = vpop.xlane.xlu0 %603
      %v605 = vsel %vm532, %v580, 0.0
      %606 = vadd.xlane.f32.xlu0 %v605
      %v607 = vpop.xlane.xlu0 %606
      %v608 = vsel %vm525, %v582, 0.0
      %609 = vadd.xlane.f32.xlu0 %v608
      %v610 = vpop.xlane.xlu0 %609
      %v611 = vsel %vm525, %v584, 0.0
      %612 = vadd.xlane.f32.xlu0 %v611
      %v613 = vpop.xlane.xlu0 %612
      %v614 = vsel %vm532, %v586, 0.0
      %615 = vadd.xlane.f32.xlu0 %v614
      %v616 = vpop.xlane.xlu0 %615
      %v617 = vsel %vm525, %v588, 0.0
      %618 = vadd.xlane.f32.xlu0 %v617
      %v619 = vpop.xlane.xlu0 %618
      %v620 = vsel %vm525, %v590, 0.0
      %621 = vadd.xlane.f32.xlu0 %v620
      %v622 = vpop.xlane.xlu0 %621
      %v623 = vsel %vm532, %v592, 0.0
      %624 = vadd.xlane.f32.xlu0 %v623
      %v625 = vpop.xlane.xlu0 %624
      %v626 = vsel %vm525, %v594, 0.0
      %627 = vadd.xlane.f32.xlu0 %v626
      %v628 = vpop.xlane.xlu0 %627
      %v629 = vsel %vm525, %v596, 0.0
      %630 = vadd.xlane.f32.xlu0 %v629
      %v631 = vpop.xlane.xlu0 %630
      %v632 = vsel %vm532, %v598, 0.0
      %633 = vadd.xlane.f32.xlu0 %v632
      %v634 = vpop.xlane.xlu0 %633
      %v635 = vrcp.pop %v601
      %v636 = vrcp.pop %v604
      %v637 = vrcp.pop %v607
      %v638 = vrcp.pop %v610
      %v639 = vrcp.pop %v613
      %v640 = vrcp.pop %v616
      %v641 = vrcp.pop %v619
      %v642 = vrcp.pop %v622
      %v643 = vrcp.pop %v625
      %v644 = vrcp.pop %v628
      %v645 = vrcp.pop %v631
      %v646 = vrcp.pop %v634
      %v647 = vmul.f32 %v576, %v635
      %v648 = vmul.f32 %v578, %v636
      %v649 = vmul.f32 %v580, %v637
      %v650 = vmul.f32 %v582, %v638
      %v651 = vmul.f32 %v584, %v639
      %v652 = vmul.f32 %v586, %v640
      %v653 = vmul.f32 %v588, %v641
      %v654 = vmul.f32 %v590, %v642
      %v655 = vmul.f32 %v592, %v643
      %v656 = vmul.f32 %v594, %v644
      %v657 = vmul.f32 %v596, %v645
      %v658 = vmul.f32 %v598, %v646
      %v659 = vpack.c.bf16 %v648, %v647
      %v660 = vpack.c.bf16 %v649, %v649
      %v661 = vpack.c.bf16 %v651, %v650
      %v662 = vpack.c.bf16 %v652, %v652
      %v663 = vpack.c.bf16 %v654, %v653
      %v664 = vpack.c.bf16 %v655, %v655
      %v665 = vpack.c.bf16 %v657, %v656
      %v666 = vpack.c.bf16 %v658, %v658
      %v668 = vsel %vm525, %v659, 0
      %v671 = vsel %vm525, %v660, 0
      %vm673 = vcmask 1040384
      %v674 = vsel 0, 4294967295, 65535
      %v675 = vsel %vm673, %v674, 0
      %v677 = vand.u32 %v265, %v675
      %679 = vmatprep.subr.bf16.mxu0 0
      %680 = vmatpush1.bf16.msra.mxu0 0
      %681 = vmatprep.subr.bf16.mxu0 0
      %682 = vmatpush1.bf16.msra.mxu0 0
      %683 = vmatprep.subr.bf16.mxu0 0
      %684 = vmatpush1.bf16.msra.mxu0 0
      %685 = vmatprep.subr.bf16.mxu0 0
      %686 = vmatpush1.bf16.msra.mxu0 0
      %687 = vmatprep.subr.bf16.mxu0 0
      %688 = vmatpush1.bf16.msra.mxu0 0
      %689 = vmatprep.subr.bf16.mxu0 0
      %690 = vmatpush1.bf16.msra.mxu0 0
      %691 = vmatprep.subr.bf16.mxu0 0
      %692 = vmatpush1.bf16.msra.mxu0 %v677
      %693 = vmatprep.subr.bf16.mxu0 0
      %694 = vmatpush1.bf16.msra.mxu0 %v264
      %695 = vmatprep.subr.bf16.mxu0 0
      %696 = vmatpush2.bf16.msra.mxu0 0
      %697 = vmatprep.subr.bf16.mxu0 0
      %698 = vmatpush2.bf16.msra.mxu0 0
      %699 = vmatprep.subr.bf16.mxu0 0
      %700 = vmatpush2.bf16.msra.mxu0 0
      %701 = vmatprep.subr.bf16.mxu0 0
      %702 = vmatpush2.bf16.msra.mxu0 0
      %703 = vmatprep.subr.bf16.mxu0 0
      %704 = vmatpush2.bf16.msra.mxu0 0
      %705 = vmatprep.subr.bf16.mxu0 0
      %706 = vmatpush2.bf16.msra.mxu0 0
      %707 = vmatprep.subr.bf16.mxu0 0
      %708 = vmatpush2.bf16.msra.mxu0 0
      %709 = vmatprep.subr.bf16.mxu0 0
      %710 = vmatpush2.bf16.msra.mxu0 0
      %711 = vmatprep.mubr.bf16.mxu0 0
      %712 = vmatmul.mubr.bf16.gmra.mxu0 %v668
      %v713 = vpop.f32.mrf.mxu0
      %v714 = vadd.f32 0.0, %v713
      %v715 = vpop.f32.mrf.mxu0
      %v716 = vpop.f32.mrf.mxu0
      %v717 = vadd.f32 0.0, %v716
      %v718 = vpop.f32.mrf.mxu0
      %719 = vmatprep.mubr.bf16.mxu0 0
      %720 = vmatmul.mubr.bf16.gmra.mxu0 %v671
      %v721 = vpop.f32.mrf.mxu0
      %v722 = vadd.f32 0.0, %v721
      %v723 = vpop.f32.mrf.mxu0
      %v724 = vpop.f32.mrf.mxu0
      %v725 = vpop.f32.mrf.mxu0
      %726 = vdwg.mxu0
      %v728 = vsel %vm525, %v661, 0
      %v731 = vsel %vm525, %v662, 0
      %v734 = vand.u32 %v267, %v675
      %736 = vmatprep.subr.bf16.mxu0 0
      %737 = vmatpush1.bf16.msra.mxu0 0
      %738 = vmatprep.subr.bf16.mxu0 0
      %739 = vmatpush1.bf16.msra.mxu0 0
      %740 = vmatprep.subr.bf16.mxu0 0
      %741 = vmatpush1.bf16.msra.mxu0 0
      %742 = vmatprep.subr.bf16.mxu0 0
      %743 = vmatpush1.bf16.msra.mxu0 0
      %744 = vmatprep.subr.bf16.mxu0 0
      %745 = vmatpush1.bf16.msra.mxu0 0
      %746 = vmatprep.subr.bf16.mxu0 0
      %747 = vmatpush1.bf16.msra.mxu0 0
      %748 = vmatprep.subr.bf16.mxu0 0
      %749 = vmatpush1.bf16.msra.mxu0 %v734
      %750 = vmatprep.subr.bf16.mxu0 0
      %751 = vmatpush1.bf16.msra.mxu0 %v266
      %752 = vmatprep.subr.bf16.mxu0 0
      %753 = vmatpush2.bf16.msra.mxu0 0
      %754 = vmatprep.subr.bf16.mxu0 0
      %755 = vmatpush2.bf16.msra.mxu0 0
      %756 = vmatprep.subr.bf16.mxu0 0
      %757 = vmatpush2.bf16.msra.mxu0 0
      %758 = vmatprep.subr.bf16.mxu0 0
      %759 = vmatpush2.bf16.msra.mxu0 0
      %760 = vmatprep.subr.bf16.mxu0 0
      %761 = vmatpush2.bf16.msra.mxu0 0
      %762 = vmatprep.subr.bf16.mxu0 0
      %763 = vmatpush2.bf16.msra.mxu0 0
      %764 = vmatprep.subr.bf16.mxu0 0
      %765 = vmatpush2.bf16.msra.mxu0 0
      %766 = vmatprep.subr.bf16.mxu0 0
      %767 = vmatpush2.bf16.msra.mxu0 0
      %768 = vmatprep.mubr.bf16.mxu0 0
      %769 = vmatmul.mubr.bf16.gmra.mxu0 %v728
      %v770 = vpop.f32.mrf.mxu0
      %v771 = vadd.f32 0.0, %v770
      %v772 = vpop.f32.mrf.mxu0
      %v773 = vpop.f32.mrf.mxu0
      %v774 = vadd.f32 0.0, %v773
      %v775 = vpop.f32.mrf.mxu0
      %776 = vmatprep.mubr.bf16.mxu0 0
      %777 = vmatmul.mubr.bf16.gmra.mxu0 %v731
      %v778 = vpop.f32.mrf.mxu0
      %v779 = vadd.f32 0.0, %v778
      %v780 = vpop.f32.mrf.mxu0
      %v781 = vpop.f32.mrf.mxu0
      %v782 = vpop.f32.mrf.mxu0
      %783 = vdwg.mxu0
      %v785 = vsel %vm525, %v663, 0
      %v788 = vsel %vm525, %v664, 0
      %v791 = vand.u32 %v269, %v675
      %793 = vmatprep.subr.bf16.mxu0 0
      %794 = vmatpush1.bf16.msra.mxu0 0
      %795 = vmatprep.subr.bf16.mxu0 0
      %796 = vmatpush1.bf16.msra.mxu0 0
      %797 = vmatprep.subr.bf16.mxu0 0
      %798 = vmatpush1.bf16.msra.mxu0 0
      %799 = vmatprep.subr.bf16.mxu0 0
      %800 = vmatpush1.bf16.msra.mxu0 0
      %801 = vmatprep.subr.bf16.mxu0 0
      %802 = vmatpush1.bf16.msra.mxu0 0
      %803 = vmatprep.subr.bf16.mxu0 0
      %804 = vmatpush1.bf16.msra.mxu0 0
      %805 = vmatprep.subr.bf16.mxu0 0
      %806 = vmatpush1.bf16.msra.mxu0 %v791
      %807 = vmatprep.subr.bf16.mxu0 0
      %808 = vmatpush1.bf16.msra.mxu0 %v268
      %809 = vmatprep.subr.bf16.mxu0 0
      %810 = vmatpush2.bf16.msra.mxu0 0
      %811 = vmatprep.subr.bf16.mxu0 0
      %812 = vmatpush2.bf16.msra.mxu0 0
      %813 = vmatprep.subr.bf16.mxu0 0
      %814 = vmatpush2.bf16.msra.mxu0 0
      %815 = vmatprep.subr.bf16.mxu0 0
      %816 = vmatpush2.bf16.msra.mxu0 0
      %817 = vmatprep.subr.bf16.mxu0 0
      %818 = vmatpush2.bf16.msra.mxu0 0
      %819 = vmatprep.subr.bf16.mxu0 0
      %820 = vmatpush2.bf16.msra.mxu0 0
      %821 = vmatprep.subr.bf16.mxu0 0
      %822 = vmatpush2.bf16.msra.mxu0 0
      %823 = vmatprep.subr.bf16.mxu0 0
      %824 = vmatpush2.bf16.msra.mxu0 0
      %825 = vmatprep.mubr.bf16.mxu0 0
      %826 = vmatmul.mubr.bf16.gmra.mxu0 %v785
      %v827 = vpop.f32.mrf.mxu0
      %v828 = vadd.f32 0.0, %v827
      %v829 = vpop.f32.mrf.mxu0
      %v830 = vpop.f32.mrf.mxu0
      %v831 = vadd.f32 0.0, %v830
      %v832 = vpop.f32.mrf.mxu0
      %833 = vmatprep.mubr.bf16.mxu0 0
      %834 = vmatmul.mubr.bf16.gmra.mxu0 %v788
      %v835 = vpop.f32.mrf.mxu0
      %v836 = vadd.f32 0.0, %v835
      %v837 = vpop.f32.mrf.mxu0
      %v838 = vpop.f32.mrf.mxu0
      %v839 = vpop.f32.mrf.mxu0
      %840 = vdwg.mxu0
      %v842 = vsel %vm525, %v665, 0
      %v845 = vsel %vm525, %v666, 0
      %v848 = vand.u32 %v271, %v675
      %850 = vmatprep.subr.bf16.mxu0 0
      %851 = vmatpush1.bf16.msra.mxu0 0
      %852 = vmatprep.subr.bf16.mxu0 0
      %853 = vmatpush1.bf16.msra.mxu0 0
      %854 = vmatprep.subr.bf16.mxu0 0
      %855 = vmatpush1.bf16.msra.mxu0 0
      %856 = vmatprep.subr.bf16.mxu0 0
      %857 = vmatpush1.bf16.msra.mxu0 0
      %858 = vmatprep.subr.bf16.mxu0 0
      %859 = vmatpush1.bf16.msra.mxu0 0
      %860 = vmatprep.subr.bf16.mxu0 0
      %861 = vmatpush1.bf16.msra.mxu0 0
      %862 = vmatprep.subr.bf16.mxu0 0
      %863 = vmatpush1.bf16.msra.mxu0 %v848
      %864 = vmatprep.subr.bf16.mxu0 0
      %865 = vmatpush1.bf16.msra.mxu0 %v270
      %866 = vmatprep.subr.bf16.mxu0 0
      %867 = vmatpush2.bf16.msra.mxu0 0
      %868 = vmatprep.subr.bf16.mxu0 0
      %869 = vmatpush2.bf16.msra.mxu0 0
      %870 = vmatprep.subr.bf16.mxu0 0
      %871 = vmatpush2.bf16.msra.mxu0 0
      %872 = vmatprep.subr.bf16.mxu0 0
      %873 = vmatpush2.bf16.msra.mxu0 0
      %874 = vmatprep.subr.bf16.mxu0 0
      %875 = vmatpush2.bf16.msra.mxu0 0
      %876 = vmatprep.subr.bf16.mxu0 0
      %877 = vmatpush2.bf16.msra.mxu0 0
      %878 = vmatprep.subr.bf16.mxu0 0
      %879 = vmatpush2.bf16.msra.mxu0 0
      %880 = vmatprep.subr.bf16.mxu0 0
      %881 = vmatpush2.bf16.msra.mxu0 0
      %882 = vmatprep.mubr.bf16.mxu0 0
      %883 = vmatmul.mubr.bf16.gmra.mxu0 %v842
      %v884 = vpop.f32.mrf.mxu0
      %v885 = vadd.f32 0.0, %v884
      %v886 = vpop.f32.mrf.mxu0
      %v887 = vpop.f32.mrf.mxu0
      %v888 = vadd.f32 0.0, %v887
      %v889 = vpop.f32.mrf.mxu0
      %890 = vmatprep.mubr.bf16.mxu0 0
      %891 = vmatmul.mubr.bf16.gmra.mxu0 %v845
      %v892 = vpop.f32.mrf.mxu0
      %v893 = vadd.f32 0.0, %v892
      %v894 = vpop.f32.mrf.mxu0
      %v895 = vpop.f32.mrf.mxu0
      %v896 = vpop.f32.mrf.mxu0
      %897 = vdwg.mxu0
      %898 = vst.msk [vmem:[%s210] sm:$0xff] %vm272, %v714
      %899 = vst.msk [vmem:[%s210 + $0x8] sm:$0xff] %vm272, %v717
      %vm900 = vcmask 57344
      %901 = vst.msk [vmem:[%s210 + $0x10] sm:$0x1] %vm900, %v722
      %902 = vst.msk [vmem:[%s210 + $0x18] sm:$0xff] %vm272, %v771
      %903 = vst.msk [vmem:[%s210 + $0x20] sm:$0xff] %vm272, %v774
      %904 = vst.msk [vmem:[%s210 + $0x28] sm:$0x1] %vm900, %v779
      %905 = vst.msk [vmem:[%s210 + $0x30] sm:$0xff] %vm272, %v828
      %906 = vst.msk [vmem:[%s210 + $0x38] sm:$0xff] %vm272, %v831
      %907 = vst.msk [vmem:[%s210 + $0x40] sm:$0x1] %vm900, %v836
      %908 = vst.msk [vmem:[%s210 + $0x48] sm:$0xff] %vm272, %v885
      %909 = vst.msk [vmem:[%s210 + $0x50] sm:$0xff] %vm272, %v888
      %910 = vst.msk [vmem:[%s210 + $0x58] sm:$0x1] %vm900, %v893
      %p911 = scmp.lt.s32.totalorder %s14, 1
      %s912 = scalar_select %p911, %s14, 1
      %s913 = smul.addr %s912, 12
      %s914 = smul.addr %s913, 8
      %s915 = scalar_lea.vmem %s3, %s914
      // Predicated region
      $region33: #{forward.15} parent=31 // pred_check
        %p916 = pneg %p110
      $region34: #{forward.15} parent=31 // pred_check_branch
        %918 = sbr.rel (%p916) target = $region36
      $region35: #{forward.15} parent=31 // pred_region
        _
      $region36: #{forward.15} parent=31 // pred_fallthru
        _
    $region32: #{forward.15} parent=5 // pred_fallthru
      _
    %p919 = scmp.le.s32.totalorder 2, %s9
    // Predicated region
    $region37: #{forward.15} parent=5 // pred_check
      %p920 = pneg %p919
    $region38: #{forward.15} parent=5 // pred_check_branch
      %922 = sbr.rel (%p920) target = $region40
    $region39: #{forward.15} parent=5 // pred_region
      %s923 = ssub.s32 %s9, 2
      // Predicated region
      $region41: #{forward.15} parent=39 // pred_check
        %p924 = pneg %p116
      $region42: #{forward.15} parent=39 // pred_check_branch
        %926 = sbr.rel (%p924) target = $region44
      $region43: #{forward.15} parent=39 // pred_region
        %p927 = scmp.lt.s32.totalorder %s15, 1
        %s928 = scalar_select %p927, %s15, 1
        %s929 = smul.addr %s928, 12
        %s930 = smul.addr %s929, 8
        %s931 = scalar_lea.vmem %s3, %s930
      $region44: #{forward.15} parent=39 // pred_fallthru
        _
    $region40: #{forward.15} parent=5 // pred_fallthru
      _
  $region6: #{forward.15} parent=0 // loop_footer
    %s13 = sadd.s32 1, %s9
  $region7: #{forward.15} parent=0 // loop_footer_branch
    %8 = sbr.rel target = $region3
  $region8: #{forward.15} parent=0 // loop_exit
    _

// kernel: forward.16
$region0: #{forward.16}
  #allocation0 [shape = 'u32[]', space=smem, size = 0x4, offset = 0x4, fixed_abs, tag = 'smem constant byte address 0x4 - core index']
  #allocation1 [shape = 'u32[144,128]{1,0:T(1,128)}', space=vmem, size = 0x12000, scoped, tag = 'internal scratch']
  #allocation2 [shape = 'f32[40,128]{1,0:T(8,128)}', space=vmem, size = 0x5000, scoped, tag = 'scratch operand']
  %s0 = inlined_call_operand.vmem [shape: f32[40,128], index: 0, kind: input, shape index: {}]
  %s1 = inlined_call_operand.vmem [shape: bf16[128,128], index: 1, kind: input, shape index: {}]
  %s2 = inlined_call_operand.vmem [shape: f32[1,128], index: 2, kind: input, shape index: {}]
  %s3 = inlined_call_operand.vmem [shape: f32[40,128], index: 3, kind: input, shape index: {}]
  %s4 = inlined_call_operand.vmem [shape: f32[40,128], index: 4, kind: output, shape index: {}]
  %s5 = sld [smem:[#allocation0]]
  $region34: #{forward.16} parent=0
    _
  %s7 = ssub.s32 1, %s5
  %s8 = scalar_select 0, %s7, %s5
  // Predicated region
  $region2: #{forward.16} parent=0 // pred_check
    _
  $region3: #{forward.16} parent=0 // pred_check_branch
    %10 = sbr.rel (0) target = $region5
  $region4: #{forward.16} parent=0 // pred_region
    _
  $region5: #{forward.16} parent=0 // pred_fallthru
    _
  // Predicated region
  $region6: #{forward.16} parent=0 // pred_check
    _
  $region7: #{forward.16} parent=0 // pred_check_branch
    %12 = sbr.rel (0) target = $region9
  $region8: #{forward.16} parent=0 // pred_region
    _
  $region9: #{forward.16} parent=0 // pred_fallthru
    _
  // Predicated region
  $region10: #{forward.16} parent=0 // pred_check
    _
  $region11: #{forward.16} parent=0 // pred_check_branch
    %14 = sbr.rel (0) target = $region13
  $region12: #{forward.16} parent=0 // pred_region
    _
  $region13: #{forward.16} parent=0 // pred_fallthru
    _
  // Predicated region
  $region14: #{forward.16} parent=0 // pred_check
    _
  $region15: #{forward.16} parent=0 // pred_check_branch
    %16 = sbr.rel (0) target = $region17
  $region16: #{forward.16} parent=0 // pred_region
    _
  $region17: #{forward.16} parent=0 // pred_fallthru
    _
  %p18 = scmp.eq.s32.totalorder 0, 0
  // Predicated region
  $region18: #{forward.16} parent=0 // pred_check
    %p19 = pneg %p18
  $region19: #{forward.16} parent=0 // pred_check_branch
    %21 = sbr.rel (%p19) target = $region21
  $region20: #{forward.16} parent=0 // pred_region
    %22 = vst [vmem:[#allocation2] sm:$0xff] 0.0
    %23 = vst [vmem:[#allocation2 + $0x8] sm:$0xff] 0.0
    %24 = vst [vmem:[#allocation2 + $0x10] sm:$0xff] 0.0
    %25 = vst [vmem:[#allocation2 + $0x18] sm:$0xff] 0.0
    %26 = vst [vmem:[#allocation2 + $0x20] sm:$0xff] 0.0
  $region21: #{forward.16} parent=0 // pred_fallthru
    _
  %v27 = vld [vmem:[#allocation2] sm:$0xff]
  %v28 = vld [vmem:[#allocation2 + $0x8] sm:$0xff]
  %v29 = vld [vmem:[#allocation2 + $0x10] sm:$0xff]
  %v30 = vld [vmem:[#allocation2 + $0x18] sm:$0xff]
  %v31 = vld [vmem:[#allocation2 + $0x20] sm:$0xff]
  %v32 = vld [vmem:[%s0] sm:$0xff]
  %v33 = vld [vmem:[%s0 + $0x8] sm:$0xff]
  %v34 = vld [vmem:[%s0 + $0x10] sm:$0xff]
  %v35 = vld [vmem:[%s0 + $0x18] sm:$0xff]
  %v36 = vld [vmem:[%s0 + $0x20] sm:$0xff]
  %v37 = vpack.c.bf16 %v33, %v32
  %v38 = vpack.c.bf16 %v35, %v34
  %v39 = vpack.c.bf16 %v36, %v36
  %v40 = vld [vmem:[%s1] sm:$0xf]
  %v41 = vld [vmem:[%s1 + $0x4] sm:$0xf]
  %v42 = vld [vmem:[%s1 + $0x8] sm:$0xf]
  %v43 = vld [vmem:[%s1 + $0xc] sm:$0xf]
  %v44 = vld [vmem:[%s1 + $0x10] sm:$0xf]
  %v45 = vld [vmem:[%s1 + $0x14] sm:$0xf]
  %v46 = vld [vmem:[%s1 + $0x18] sm:$0xf]
  %v47 = vld [vmem:[%s1 + $0x1c] sm:$0xf]
  %v48 = vld [vmem:[%s1 + $0x20] sm:$0xf]
  %v49 = vld [vmem:[%s1 + $0x24] sm:$0xf]
  %v50 = vld [vmem:[%s1 + $0x28] sm:$0xf]
  %v51 = vld [vmem:[%s1 + $0x2c] sm:$0xf]
  %v52 = vld [vmem:[%s1 + $0x30] sm:$0xf]
  %v53 = vld [vmem:[%s1 + $0x34] sm:$0xf]
  %v54 = vld [vmem:[%s1 + $0x38] sm:$0xf]
  %v55 = vld [vmem:[%s1 + $0x3c] sm:$0xf]
  %v72 = vunpack.c.l.b16 %v40
  %v73 = vunpack.c.l.b16 %v41
  %v74 = vunpack.c.l.b16 %v42
  %v75 = vunpack.c.l.b16 %v43
  %v76 = vunpack.c.l.b16 %v44
  %v77 = vunpack.c.l.b16 %v45
  %v78 = vunpack.c.l.b16 %v46
  %v79 = vunpack.c.l.b16 %v47
  %v80 = vunpack.c.l.b16 %v48
  %v81 = vunpack.c.l.b16 %v49
  %v82 = vunpack.c.l.b16 %v50
  %v83 = vunpack.c.l.b16 %v51
  %v84 = vunpack.c.l.b16 %v52
  %v85 = vunpack.c.l.b16 %v53
  %v86 = vunpack.c.l.b16 %v54
  %v87 = vunpack.c.l.b16 %v55
  %v88 = vpack.c.b16 %v73, %v72
  %v89 = vpack.c.b16 %v75, %v74
  %v90 = vpack.c.b16 %v77, %v76
  %v91 = vpack.c.b16 %v79, %v78
  %v92 = vpack.c.b16 %v81, %v80
  %v93 = vpack.c.b16 %v83, %v82
  %v94 = vpack.c.b16 %v85, %v84
  %v95 = vpack.c.b16 %v87, %v86
  %104 = vmatprep.subr.bf16.mxu0 0
  %105 = vmatpush1.bf16.msra.mxu0 %v95
  %106 = vmatprep.subr.bf16.mxu0 0
  %107 = vmatpush1.bf16.msra.mxu0 %v94
  %108 = vmatprep.subr.bf16.mxu0 0
  %109 = vmatpush1.bf16.msra.mxu0 %v93
  %110 = vmatprep.subr.bf16.mxu0 0
  %111 = vmatpush1.bf16.msra.mxu0 %v92
  %112 = vmatprep.subr.bf16.mxu0 0
  %113 = vmatpush1.bf16.msra.mxu0 %v91
  %114 = vmatprep.subr.bf16.mxu0 0
  %115 = vmatpush1.bf16.msra.mxu0 %v90
  %116 = vmatprep.subr.bf16.mxu0 0
  %117 = vmatpush1.bf16.msra.mxu0 %v89
  %118 = vmatprep.subr.bf16.mxu0 0
  %119 = vmatpush1.bf16.msra.mxu0 %v88
  %120 = vmatprep.subr.bf16.mxu0 0
  %121 = vmatpush2.bf16.msra.mxu0 0
  %122 = vmatprep.subr.bf16.mxu0 0
  %123 = vmatpush2.bf16.msra.mxu0 0
  %124 = vmatprep.subr.bf16.mxu0 0
  %125 = vmatpush2.bf16.msra.mxu0 0
  %126 = vmatprep.subr.bf16.mxu0 0
  %127 = vmatpush2.bf16.msra.mxu0 0
  %128 = vmatprep.subr.bf16.mxu0 0
  %129 = vmatpush2.bf16.msra.mxu0 0
  %130 = vmatprep.subr.bf16.mxu0 0
  %131 = vmatpush2.bf16.msra.mxu0 0
  %132 = vmatprep.subr.bf16.mxu0 0
  %133 = vmatpush2.bf16.msra.mxu0 0
  %134 = vmatprep.subr.bf16.mxu0 0
  %135 = vmatpush2.bf16.msra.mxu0 0
  %136 = vmatprep.mubr.bf16.mxu0 0
  %137 = vmatmul.mubr.bf16.gmra.mxu0 %v37
  %v138 = vpop.f32.mrf.mxu0
  %v139 = vadd.f32 0.0, %v138
  %v140 = vpop.f32.mrf.mxu0
  %v141 = vpop.f32.mrf.mxu0
  %v142 = vadd.f32 0.0, %v141
  %v143 = vpop.f32.mrf.mxu0
  %144 = vmatprep.mubr.bf16.mxu0 0
  %145 = vmatmul.mubr.bf16.gmra.mxu0 %v38
  %v146 = vpop.f32.mrf.mxu0
  %v147 = vadd.f32 0.0, %v146
  %v148 = vpop.f32.mrf.mxu0
  %v149 = vpop.f32.mrf.mxu0
  %v150 = vadd.f32 0.0, %v149
  %v151 = vpop.f32.mrf.mxu0
  %152 = vmatprep.mubr.bf16.mxu0 0
  %153 = vmatmul.mubr.bf16.gmra.mxu0 %v39
  %v154 = vpop.f32.mrf.mxu0
  %v155 = vadd.f32 0.0, %v154
  %v156 = vpop.f32.mrf.mxu0
  %v157 = vpop.f32.mrf.mxu0
  %v158 = vpop.f32.mrf.mxu0
  %159 = vdwg.mxu0
  %v160 = vadd.f32 %v27, %v139
  %v161 = vadd.f32 %v28, %v142
  %v162 = vadd.f32 %v29, %v147
  %v163 = vadd.f32 %v30, %v150
  %v164 = vadd.f32 %v31, %v155
  %165 = vst [vmem:[#allocation2] sm:$0xff] %v160
  %166 = vst [vmem:[#allocation2 + $0x8] sm:$0xff] %v161
  %167 = vst [vmem:[#allocation2 + $0x10] sm:$0xff] %v162
  %168 = vst [vmem:[#allocation2 + $0x18] sm:$0xff] %v163
  %169 = vst [vmem:[#allocation2 + $0x20] sm:$0xff] %v164
  // Predicated region
  $region22: #{forward.16} parent=0 // pred_check
    %p170 = pneg %p18
  $region23: #{forward.16} parent=0 // pred_check_branch
    %172 = sbr.rel (%p170) target = $region25
  $region24: #{forward.16} parent=0 // pred_region
    %v173 = vld [vmem:[#allocation2] sm:$0xff]
    %v174 = vld [vmem:[#allocation2 + $0x8] sm:$0xff]
    %v175 = vld [vmem:[#allocation2 + $0x10] sm:$0xff]
    %v176 = vld [vmem:[#allocation2 + $0x18] sm:$0xff]
    %v177 = vld [vmem:[#allocation2 + $0x20] sm:$0xff]
    %v178 = vld [vmem:[%s2] sm:$0x1]
    %v180 = vlaneseq
    %v181 = vshrl.u32 %v180, 7
    %v182 = vsub.s32 0, %v181
    %v183 = vrot.slane %v178, %v182
    %v185 = vadd.f32 %v173, %v183
    %v186 = vadd.f32 %v174, %v183
    %v187 = vadd.f32 %v175, %v183
    %v188 = vadd.f32 %v176, %v183
    %v189 = vadd.f32 %v177, %v183
    %v190 = vld [vmem:[%s3] sm:$0xff]
    %v191 = vld [vmem:[%s3 + $0x8] sm:$0xff]
    %v192 = vld [vmem:[%s3 + $0x10] sm:$0xff]
    %v193 = vld [vmem:[%s3 + $0x18] sm:$0xff]
    %v194 = vld [vmem:[%s3 + $0x20] sm:$0xff]
    %v195 = vadd.f32 %v185, %v190
    %v196 = vadd.f32 %v186, %v191
    %v197 = vadd.f32 %v187, %v192
    %v198 = vadd.f32 %v188, %v193
    %v199 = vadd.f32 %v189, %v194
    %200 = vst [vmem:[%s4] sm:$0xff] %v195
    %201 = vst [vmem:[%s4 + $0x8] sm:$0xff] %v196
    %202 = vst [vmem:[%s4 + $0x10] sm:$0xff] %v197
    %203 = vst [vmem:[%s4 + $0x18] sm:$0xff] %v198
    %204 = vst [vmem:[%s4 + $0x20] sm:$0xff] %v199
  $region25: #{forward.16} parent=0 // pred_fallthru
    _
  // Predicated region
  $region26: #{forward.16} parent=0 // pred_check
    _
  $region27: #{forward.16} parent=0 // pred_check_branch
    %206 = sbr.rel (0) target = $region29
  $region28: #{forward.16} parent=0 // pred_region
    _
  $region29: #{forward.16} parent=0 // pred_fallthru
    _
  // Predicated region
  $region30: #{forward.16} parent=0 // pred_check
    _
  $region31: #{forward.16} parent=0 // pred_check_branch
    %208 = sbr.rel (0) target = $region33
  $region32: #{forward.16} parent=0 // pred_region
    _
  $region33: #{forward.16} parent=0 // pred_fallthru
    _

// kernel: forward.17
$region0: #{forward.17}
  #allocation0 [shape = 'u32[]', space=smem, size = 0x4, offset = 0x4, fixed_abs, tag = 'smem constant byte address 0x4 - core index']
  #allocation1 [shape = 'u32[144,128]{1,0:T(1,128)}', space=vmem, size = 0x12000, scoped, tag = 'internal scratch']
  #allocation2 [shape = 'f32[1,4]{1,0:T(1,128)}', space=vmem, size = 0x200, scoped, tag = 'scratch operand']
  #allocation3 [shape = 'f32[1,1]{1,0:T(1,128)}', space=vmem, size = 0x200, scoped, tag = 'scratch operand']
  %s0 = inlined_call_operand.vmem [shape: f32[40,32], index: 0, kind: input, shape index: {}]
  %s1 = inlined_call_operand.vmem [shape: f32[1,32], index: 1, kind: input, shape index: {}]
  %s2 = inlined_call_operand.vmem [shape: f32[1,32], index: 2, kind: input, shape index: {}]
  %s3 = inlined_call_operand.vmem [shape: f32[32,4], index: 3, kind: input, shape index: {}]
  %s4 = inlined_call_operand.vmem [shape: f32[1,4], index: 4, kind: input, shape index: {}]
  %s5 = inlined_call_operand.vmem [shape: f32[40,1], index: 5, kind: input, shape index: {}]
  %s6 = inlined_call_operand.vmem [shape: f32[40,32], index: 6, kind: output, shape index: {0}]
  %s7 = inlined_call_operand.vmem [shape: f32[40,4], index: 7, kind: output, shape index: {1}]
  %s8 = inlined_call_operand.vmem [shape: f32[40,4], index: 8, kind: output, shape index: {2}]
  %s9 = inlined_call_operand.hbm [shape: f32[1,1], index: 9, kind: output, shape index: {3}]
  %10 = xla_tuple %s6, %s7, %s8, %s9
  %s11 = sld [smem:[#allocation0]]
  $region66: #{forward.17} parent=0
    _
  %s13 = ssub.s32 1, %s11
  %s14 = scalar_select 0, %s13, %s11
  $region1: #{forward.17} parent=0
    #allocation4 [shape = 'u8[512]{0}', space=vmem, size = 0x400, scoped, tag = 'output window, operand 3, single buffered']
    #allocation5 [shape = 's32[1]{0}', space=sflag, size = 0x4, scoped, tag = 'scoped memory for forward.17']
    %15 = vsyncpa [#allocation5], 0
    // Predicated region
    $region2: #{forward.17} parent=1 // pred_check
      _
    $region3: #{forward.17} parent=1 // pred_check_branch
      %17 = sbr.rel (0) target = $region5
    $region4: #{forward.17} parent=1 // pred_region
      _
    $region5: #{forward.17} parent=1 // pred_fallthru
      _
    // Predicated region
    $region6: #{forward.17} parent=1 // pred_check
      _
    $region7: #{forward.17} parent=1 // pred_check_branch
      %19 = sbr.rel (0) target = $region9
    $region8: #{forward.17} parent=1 // pred_region
      _
    $region9: #{forward.17} parent=1 // pred_fallthru
      _
    // Predicated region
    $region10: #{forward.17} parent=1 // pred_check
      _
    $region11: #{forward.17} parent=1 // pred_check_branch
      %21 = sbr.rel (0) target = $region13
    $region12: #{forward.17} parent=1 // pred_region
      _
    $region13: #{forward.17} parent=1 // pred_fallthru
      _
    // Predicated region
    $region14: #{forward.17} parent=1 // pred_check
      _
    $region15: #{forward.17} parent=1 // pred_check_branch
      %23 = sbr.rel (0) target = $region17
    $region16: #{forward.17} parent=1 // pred_region
      _
    $region17: #{forward.17} parent=1 // pred_fallthru
      _
    // Predicated region
    $region18: #{forward.17} parent=1 // pred_check
      _
    $region19: #{forward.17} parent=1 // pred_check_branch
      %25 = sbr.rel (0) target = $region21
    $region20: #{forward.17} parent=1 // pred_region
      _
    $region21: #{forward.17} parent=1 // pred_fallthru
      _
    // Predicated region
    $region22: #{forward.17} parent=1 // pred_check
      _
    $region23: #{forward.17} parent=1 // pred_check_branch
      %27 = sbr.rel (0) target = $region25
    $region24: #{forward.17} parent=1 // pred_region
      _
    $region25: #{forward.17} parent=1 // pred_fallthru
      _
    %v28 = vld [vmem:[%s0] sm:$0xff]
    %v29 = vld [vmem:[%s0 + $0x8] sm:$0xff]
    %v30 = vld [vmem:[%s0 + $0x10] sm:$0xff]
    %v31 = vld [vmem:[%s0 + $0x18] sm:$0xff]
    %v32 = vld [vmem:[%s0 + $0x20] sm:$0xff]
    %vm33 = vcmask 261120
    %v34 = vsel %vm33, %v28, 0.0
    %35 = vadd.xlane.f32.xlu0 %v34
    %v36 = vpop.xlane.xlu0 %35
    %v37 = vsel %vm33, %v29, 0.0
    %38 = vadd.xlane.f32.xlu0 %v37
    %v39 = vpop.xlane.xlu0 %38
    %v40 = vsel %vm33, %v30, 0.0
    %41 = vadd.xlane.f32.xlu0 %v40
    %v42 = vpop.xlane.xlu0 %41
    %v43 = vsel %vm33, %v31, 0.0
    %44 = vadd.xlane.f32.xlu0 %v43
    %v45 = vpop.xlane.xlu0 %44
    %v46 = vsel %vm33, %v32, 0.0
    %47 = vadd.xlane.f32.xlu0 %v46
    %v48 = vpop.xlane.xlu0 %47
    %v49 = vrcp.pop 32.0
    %v50 = vmul.f32 %v36, %v49
    %v51 = vmul.f32 %v39, %v49
    %v52 = vmul.f32 %v42, %v49
    %v53 = vmul.f32 %v45, %v49
    %v54 = vmul.f32 %v48, %v49
    %v55 = vsub.f32 %v28, %v50
    %v56 = vsub.f32 %v29, %v51
    %v57 = vsub.f32 %v30, %v52
    %v58 = vsub.f32 %v31, %v53
    %v59 = vsub.f32 %v32, %v54
    %v60 = vmul.f32 %v55, %v55
    %v61 = vmul.f32 %v56, %v56
    %v62 = vmul.f32 %v57, %v57
    %v63 = vmul.f32 %v58, %v58
    %v64 = vmul.f32 %v59, %v59
    %v65 = vsel %vm33, %v60, 0.0
    %66 = vadd.xlane.f32.xlu0 %v65
    %v67 = vpop.xlane.xlu0 %66
    %v68 = vsel %vm33, %v61, 0.0
    %69 = vadd.xlane.f32.xlu0 %v68
    %v70 = vpop.xlane.xlu0 %69
    %v71 = vsel %vm33, %v62, 0.0
    %72 = vadd.xlane.f32.xlu0 %v71
    %v73 = vpop.xlane.xlu0 %72
    %v74 = vsel %vm33, %v63, 0.0
    %75 = vadd.xlane.f32.xlu0 %v74
    %v76 = vpop.xlane.xlu0 %75
    %v77 = vsel %vm33, %v64, 0.0
    %78 = vadd.xlane.f32.xlu0 %v77
    %v79 = vpop.xlane.xlu0 %78
    %v80 = vmul.f32 %v67, %v49
    %v81 = vmul.f32 %v70, %v49
    %v82 = vmul.f32 %v73, %v49
    %v83 = vmul.f32 %v76, %v49
    %v84 = vmul.f32 %v79, %v49
    %v85 = vadd.f32 %v80, 1e-05
    %v86 = vadd.f32 %v81, 1e-05
    %v87 = vadd.f32 %v82, 1e-05
    %v88 = vadd.f32 %v83, 1e-05
    %v89 = vadd.f32 %v84, 1e-05
    %v90 = vrsqrt.pop %v85
    %v91 = vrsqrt.pop %v86
    %v92 = vrsqrt.pop %v87
    %v93 = vrsqrt.pop %v88
    %v94 = vrsqrt.pop %v89
    %v95 = vmul.f32 %v55, %v90
    %v96 = vmul.f32 %v56, %v91
    %v97 = vmul.f32 %v57, %v92
    %v98 = vmul.f32 %v58, %v93
    %v99 = vmul.f32 %v59, %v94
    %v100 = vld [vmem:[%s1] sm:$0x1]
    %v102 = vlaneseq
    %v103 = vshrl.u32 %v102, 7
    %v104 = vsub.s32 0, %v103
    %v105 = vrot.slane %v100, %v104
    %v107 = vmul.f32 %v95, %v105
    %v108 = vmul.f32 %v96, %v105
    %v109 = vmul.f32 %v97, %v105
    %v110 = vmul.f32 %v98, %v105
    %v111 = vmul.f32 %v99, %v105
    %v112 = vld [vmem:[%s2] sm:$0x1]
    %v114 = vlaneseq
    %v115 = vshrl.u32 %v114, 7
    %v116 = vsub.s32 0, %v115
    %v117 = vrot.slane %v112, %v116
    %v119 = vadd.f32 %v107, %v117
    %v120 = vadd.f32 %v108, %v117
    %v121 = vadd.f32 %v109, %v117
    %v122 = vadd.f32 %v110, %v117
    %v123 = vadd.f32 %v111, %v117
    %124 = vst.msk [vmem:[%s6] sm:$0xff] %vm33, %v119
    %125 = vst.msk [vmem:[%s6 + $0x8] sm:$0xff] %vm33, %v120
    %126 = vst.msk [vmem:[%s6 + $0x10] sm:$0xff] %vm33, %v121
    %127 = vst.msk [vmem:[%s6 + $0x18] sm:$0xff] %vm33, %v122
    %128 = vst.msk [vmem:[%s6 + $0x20] sm:$0xff] %vm33, %v123
    %v129 = vld [vmem:[%s3] sm:$0xff]
    %v130 = vld [vmem:[%s3 + $0x8] sm:$0xff]
    %v131 = vld [vmem:[%s3 + $0x10] sm:$0xff]
    %v132 = vld [vmem:[%s3 + $0x18] sm:$0xff]
    %v133 = vld [vmem:[%s4] sm:$0x1]
    %v135 = vlaneseq
    %v136 = vshrl.u32 %v135, 7
    %v137 = vsub.s32 0, %v136
    %v138 = vrot.slane %v133, %v137
    %v141 = vsel %vm33, %v119, 0
    %v144 = vsel %vm33, %v120, 0
    %v147 = vsel %vm33, %v121, 0
    %v150 = vsel %vm33, %v122, 0
    %v153 = vsel %vm33, %v123, 0
    %155 = vmatprep.subr.mxu0 0.0
    %156 = vmatpush1.msra.mxu0 0.0
    %157 = vmatprep.subr.mxu0 0.0
    %158 = vmatpush1.msra.mxu0 0.0
    %159 = vmatprep.subr.mxu0 0.0
    %160 = vmatpush1.msra.mxu0 0.0
    %161 = vmatprep.subr.mxu0 0.0
    %162 = vmatpush1.msra.mxu0 0.0
    %163 = vmatprep.subr.mxu0 0.0
    %164 = vmatpush1.msra.mxu0 0.0
    %165 = vmatprep.subr.mxu0 0.0
    %166 = vmatpush1.msra.mxu0 0.0
    %167 = vmatprep.subr.mxu0 0.0
    %168 = vmatpush1.msra.mxu0 0.0
    %169 = vmatprep.subr.mxu0 0.0
    %170 = vmatpush1.msra.mxu0 0.0
    %171 = vmatprep.subr.mxu0 0.0
    %172 = vmatpush1.msra.mxu0 0.0
    %173 = vmatprep.subr.mxu0 0.0
    %174 = vmatpush1.msra.mxu0 0.0
    %175 = vmatprep.subr.mxu0 0.0
    %176 = vmatpush1.msra.mxu0 0.0
    %177 = vmatprep.subr.mxu0 0.0
    %178 = vmatpush1.msra.mxu0 0.0
    %179 = vmatprep.subr.mxu0 0.0
    %180 = vmatpush1.msra.mxu0 %v132
    %181 = vmatprep.subr.mxu0 0.0
    %182 = vmatpush1.msra.mxu0 %v131
    %183 = vmatprep.subr.mxu0 0.0
    %184 = vmatpush1.msra.mxu0 %v130
    %185 = vmatprep.subr.mxu0 0.0
    %186 = vmatpush1.msra.mxu0 %v129
    %187 = vmatprep.subr.mxu0 0.0
    %188 = vmatpush2.msra.mxu0 0.0
    %189 = vmatprep.subr.mxu0 0.0
    %190 = vmatpush2.msra.mxu0 0.0
    %191 = vmatprep.subr.mxu0 0.0
    %192 = vmatpush2.msra.mxu0 0.0
    %193 = vmatprep.subr.mxu0 0.0
    %194 = vmatpush2.msra.mxu0 0.0
    %195 = vmatprep.subr.mxu0 0.0
    %196 = vmatpush2.msra.mxu0 0.0
    %197 = vmatprep.subr.mxu0 0.0
    %198 = vmatpush2.msra.mxu0 0.0
    %199 = vmatprep.subr.mxu0 0.0
    %200 = vmatpush2.msra.mxu0 0.0
    %201 = vmatprep.subr.mxu0 0.0
    %202 = vmatpush2.msra.mxu0 0.0
    %203 = vmatprep.subr.mxu0 0.0
    %204 = vmatpush2.msra.mxu0 0.0
    %205 = vmatprep.subr.mxu0 0.0
    %206 = vmatpush2.msra.mxu0 0.0
    %207 = vmatprep.subr.mxu0 0.0
    %208 = vmatpush2.msra.mxu0 0.0
    %209 = vmatprep.subr.mxu0 0.0
    %210 = vmatpush2.msra.mxu0 0.0
    %211 = vmatprep.subr.mxu0 0.0
    %212 = vmatpush2.msra.mxu0 0.0
    %213 = vmatprep.subr.mxu0 0.0
    %214 = vmatpush2.msra.mxu0 0.0
    %215 = vmatprep.subr.mxu0 0.0
    %216 = vmatpush2.msra.mxu0 0.0
    %217 = vmatprep.subr.mxu0 0.0
    %218 = vmatpush2.msra.mxu0 0.0
    %219 = vmatprep.mubr.f32.mxu0 0.0
    %220 = vmatmul.mubr.f32.gmra.mxu0 %v141
    %v221 = vpop.f32.mrf.mxu0
    %v222 = vadd.f32 %v138, %v221
    %v223 = vpop.f32.mrf.mxu0
    %224 = vmatprep.mubr.f32.mxu0 0.0
    %225 = vmatmul.mubr.f32.gmra.mxu0 %v144
    %v226 = vpop.f32.mrf.mxu0
    %v227 = vadd.f32 %v138, %v226
    %v228 = vpop.f32.mrf.mxu0
    %229 = vmatprep.mubr.f32.mxu0 0.0
    %230 = vmatmul.mubr.f32.gmra.mxu0 %v147
    %v231 = vpop.f32.mrf.mxu0
    %v232 = vadd.f32 %v138, %v231
    %v233 = vpop.f32.mrf.mxu0
    %234 = vmatprep.mubr.f32.mxu0 0.0
    %235 = vmatmul.mubr.f32.gmra.mxu0 %v150
    %v236 = vpop.f32.mrf.mxu0
    %v237 = vadd.f32 %v138, %v236
    %v238 = vpop.f32.mrf.mxu0
    %239 = vmatprep.mubr.f32.mxu0 0.0
    %240 = vmatmul.mubr.f32.gmra.mxu0 %v153
    %v241 = vpop.f32.mrf.mxu0
    %v242 = vadd.f32 %v138, %v241
    %v243 = vpop.f32.mrf.mxu0
    %244 = vdwg.mxu0
    %vm245 = vcmask 31744
    %246 = vst.msk [vmem:[%s8] sm:$0xff] %vm245, %v222
    %247 = vst.msk [vmem:[%s8 + $0x8] sm:$0xff] %vm245, %v227
    %248 = vst.msk [vmem:[%s8 + $0x10] sm:$0xff] %vm245, %v232
    %249 = vst.msk [vmem:[%s8 + $0x18] sm:$0xff] %vm245, %v237
    %250 = vst.msk [vmem:[%s8 + $0x20] sm:$0xff] %vm245, %v242
    %v251 = vsel %vm245, %v222, -inf
    %252 = vmax.xlane.f32.xlu0 %v251
    %v253 = vpop.xlane.xlu0 %252
    %v254 = vsel %vm245, %v227, -inf
    %255 = vmax.xlane.f32.xlu0 %v254
    %v256 = vpop.xlane.xlu0 %255
    %v257 = vsel %vm245, %v232, -inf
    %258 = vmax.xlane.f32.xlu0 %v257
    %v259 = vpop.xlane.xlu0 %258
    %v260 = vsel %vm245, %v237, -inf
    %261 = vmax.xlane.f32.xlu0 %v260
    %v262 = vpop.xlane.xlu0 %261
    %v263 = vsel %vm245, %v242, -inf
    %264 = vmax.xlane.f32.xlu0 %v263
    %v265 = vpop.xlane.xlu0 %264
    %v266 = vsub.f32 %v222, %v253
    %v267 = vsub.f32 %v227, %v256
    %v268 = vsub.f32 %v232, %v259
    %v269 = vsub.f32 %v237, %v262
    %v270 = vsub.f32 %v242, %v265
    %v271 = vmul.f32 %v266, 1.442695
    %v272 = vpow.pop %v271
    %v273 = vmul.f32 %v267, 1.442695
    %v274 = vpow.pop %v273
    %v275 = vmul.f32 %v268, 1.442695
    %v276 = vpow.pop %v275
    %v277 = vmul.f32 %v269, 1.442695
    %v278 = vpow.pop %v277
    %v279 = vmul.f32 %v270, 1.442695
    %v280 = vpow.pop %v279
    %v281 = vsel %vm245, %v272, 0.0
    %282 = vadd.xlane.f32.xlu0 %v281
    %v283 = vpop.xlane.xlu0 %282
    %v284 = vsel %vm245, %v274, 0.0
    %285 = vadd.xlane.f32.xlu0 %v284
    %v286 = vpop.xlane.xlu0 %285
    %v287 = vsel %vm245, %v276, 0.0
    %288 = vadd.xlane.f32.xlu0 %v287
    %v289 = vpop.xlane.xlu0 %288
    %v290 = vsel %vm245, %v278, 0.0
    %291 = vadd.xlane.f32.xlu0 %v290
    %v292 = vpop.xlane.xlu0 %291
    %v293 = vsel %vm245, %v280, 0.0
    %294 = vadd.xlane.f32.xlu0 %v293
    %v295 = vpop.xlane.xlu0 %294
    %v296 = vrcp.pop %v283
    %v297 = vmul.f32 %v272, %v296
    %v298 = vrcp.pop %v286
    %v299 = vmul.f32 %v274, %v298
    %v300 = vrcp.pop %v289
    %v301 = vmul.f32 %v276, %v300
    %v302 = vrcp.pop %v292
    %v303 = vmul.f32 %v278, %v302
    %v304 = vrcp.pop %v295
    %v305 = vmul.f32 %v280, %v304
    %v306 = vlaneseq
    %v307 = vand.u32 %v306, 127
    %v308 = vcvt.s32.f32 %v307
    %v309 = vsel %vm245, %v297, -inf
    %310 = vmax.xlane.f32.xlu0 %v309
    %v311 = vpop.xlane.xlu0 %310
    %v312 = vsel %vm245, %v299, -inf
    %313 = vmax.xlane.f32.xlu0 %v312
    %v314 = vpop.xlane.xlu0 %313
    %v315 = vsel %vm245, %v301, -inf
    %316 = vmax.xlane.f32.xlu0 %v315
    %v317 = vpop.xlane.xlu0 %316
    %v318 = vsel %vm245, %v303, -inf
    %319 = vmax.xlane.f32.xlu0 %v318
    %v320 = vpop.xlane.xlu0 %319
    %v321 = vsel %vm245, %v305, -inf
    %322 = vmax.xlane.f32.xlu0 %v321
    %v323 = vpop.xlane.xlu0 %322
    %vm324 = vcmp.ge.f32.partialorder %v297, %v311
    %vm325 = vcmp.ge.f32.partialorder %v299, %v314
    %vm326 = vcmp.ge.f32.partialorder %v301, %v317
    %vm327 = vcmp.ge.f32.partialorder %v303, %v320
    %vm328 = vcmp.ge.f32.partialorder %v305, %v323
    %v329 = vsel %vm324, %v308, 4.0
    %v330 = vsel %vm325, %v308, 4.0
    %v331 = vsel %vm326, %v308, 4.0
    %v332 = vsel %vm327, %v308, 4.0
    %v333 = vsel %vm328, %v308, 4.0
    %v334 = vsel %vm245, %v329, inf
    %335 = vmin.xlane.f32.xlu0 %v334
    %v336 = vpop.xlane.xlu0 %335
    %v337 = vsel %vm245, %v330, inf
    %338 = vmin.xlane.f32.xlu0 %v337
    %v339 = vpop.xlane.xlu0 %338
    %v340 = vsel %vm245, %v331, inf
    %341 = vmin.xlane.f32.xlu0 %v340
    %v342 = vpop.xlane.xlu0 %341
    %v343 = vsel %vm245, %v332, inf
    %344 = vmin.xlane.f32.xlu0 %v343
    %v345 = vpop.xlane.xlu0 %344
    %v346 = vsel %vm245, %v333, inf
    %347 = vmin.xlane.f32.xlu0 %v346
    %v348 = vpop.xlane.xlu0 %347
    %vm349 = vcmp.eq.f32.partialorder %v308, %v336
    %vm350 = vcmp.eq.f32.partialorder %v308, %v339
    %vm351 = vcmp.eq.f32.partialorder %v308, %v342
    %vm352 = vcmp.eq.f32.partialorder %v308, %v345
    %vm353 = vcmp.eq.f32.partialorder %v308, %v348
    %v354 = vsel %vm349, %v297, 0.0
    %v355 = vsel %vm350, %v299, 0.0
    %v356 = vsel %vm351, %v301, 0.0
    %v357 = vsel %vm352, %v303, 0.0
    %v358 = vsel %vm353, %v305, 0.0
    %v359 = vsel %vm349, -inf, %v297
    %v360 = vsel %vm350, -inf, %v299
    %v361 = vsel %vm351, -inf, %v301
    %v362 = vsel %vm352, -inf, %v303
    %v363 = vsel %vm353, -inf, %v305
    %v364 = vsel %vm245, %v359, -inf
    %365 = vmax.xlane.f32.xlu0 %v364
    %v366 = vpop.xlane.xlu0 %365
    %v367 = vsel %vm245, %v360, -inf
    %368 = vmax.xlane.f32.xlu0 %v367
    %v369 = vpop.xlane.xlu0 %368
    %v370 = vsel %vm245, %v361, -inf
    %371 = vmax.xlane.f32.xlu0 %v370
    %v372 = vpop.xlane.xlu0 %371
    %v373 = vsel %vm245, %v362, -inf
    %374 = vmax.xlane.f32.xlu0 %v373
    %v375 = vpop.xlane.xlu0 %374
    %v376 = vsel %vm245, %v363, -inf
    %377 = vmax.xlane.f32.xlu0 %v376
    %v378 = vpop.xlane.xlu0 %377
    %vm379 = vcmp.ge.f32.partialorder %v359, %v366
    %vm380 = vcmp.ge.f32.partialorder %v360, %v369
    %vm381 = vcmp.ge.f32.partialorder %v361, %v372
    %vm382 = vcmp.ge.f32.partialorder %v362, %v375
    %vm383 = vcmp.ge.f32.partialorder %v363, %v378
    %v384 = vsel %vm379, %v308, 4.0
    %v385 = vsel %vm380, %v308, 4.0
    %v386 = vsel %vm381, %v308, 4.0
    %v387 = vsel %vm382, %v308, 4.0
    %v388 = vsel %vm383, %v308, 4.0
    %v389 = vsel %vm245, %v384, inf
    %390 = vmin.xlane.f32.xlu0 %v389
    %v391 = vpop.xlane.xlu0 %390
    %v392 = vsel %vm245, %v385, inf
    %393 = vmin.xlane.f32.xlu0 %v392
    %v394 = vpop.xlane.xlu0 %393
    %v395 = vsel %vm245, %v386, inf
    %396 = vmin.xlane.f32.xlu0 %v395
    %v397 = vpop.xlane.xlu0 %396
    %v398 = vsel %vm245, %v387, inf
    %399 = vmin.xlane.f32.xlu0 %v398
    %v400 = vpop.xlane.xlu0 %399
    %v401 = vsel %vm245, %v388, inf
    %402 = vmin.xlane.f32.xlu0 %v401
    %v403 = vpop.xlane.xlu0 %402
    %vm404 = vcmp.eq.f32.partialorder %v308, %v391
    %vm405 = vcmp.eq.f32.partialorder %v308, %v394
    %vm406 = vcmp.eq.f32.partialorder %v308, %v397
    %vm407 = vcmp.eq.f32.partialorder %v308, %v400
    %vm408 = vcmp.eq.f32.partialorder %v308, %v403
    %v409 = vsel %vm404, %v297, %v354
    %v410 = vsel %vm405, %v299, %v355
    %v411 = vsel %vm406, %v301, %v356
    %v412 = vsel %vm407, %v303, %v357
    %v413 = vsel %vm408, %v305, %v358
    %v414 = vsel %vm245, %v409, 0.0
    %415 = vadd.xlane.f32.xlu0 %v414
    %v416 = vpop.xlane.xlu0 %415
    %v417 = vsel %vm245, %v410, 0.0
    %418 = vadd.xlane.f32.xlu0 %v417
    %v419 = vpop.xlane.xlu0 %418
    %v420 = vsel %vm245, %v411, 0.0
    %421 = vadd.xlane.f32.xlu0 %v420
    %v422 = vpop.xlane.xlu0 %421
    %v423 = vsel %vm245, %v412, 0.0
    %424 = vadd.xlane.f32.xlu0 %v423
    %v425 = vpop.xlane.xlu0 %424
    %v426 = vsel %vm245, %v413, 0.0
    %427 = vadd.xlane.f32.xlu0 %v426
    %v428 = vpop.xlane.xlu0 %427
    %v429 = vrcp.pop %v416
    %v430 = vmul.f32 %v409, %v429
    %v431 = vrcp.pop %v419
    %v432 = vmul.f32 %v410, %v431
    %v433 = vrcp.pop %v422
    %v434 = vmul.f32 %v411, %v433
    %v435 = vrcp.pop %v425
    %v436 = vmul.f32 %v412, %v435
    %v437 = vrcp.pop %v428
    %v438 = vmul.f32 %v413, %v437
    %439 = vst.msk [vmem:[%s7] sm:$0xff] %vm245, %v430
    %440 = vst.msk [vmem:[%s7 + $0x8] sm:$0xff] %vm245, %v432
    %441 = vst.msk [vmem:[%s7 + $0x10] sm:$0xff] %vm245, %v434
    %442 = vst.msk [vmem:[%s7 + $0x18] sm:$0xff] %vm245, %v436
    %443 = vst.msk [vmem:[%s7 + $0x20] sm:$0xff] %vm245, %v438
    %v444 = vld [vmem:[%s5] sm:$0xff]
    %v445 = vld [vmem:[%s5 + $0x8] sm:$0xff]
    %v446 = vld [vmem:[%s5 + $0x10] sm:$0xff]
    %v447 = vld [vmem:[%s5 + $0x18] sm:$0xff]
    %v448 = vld [vmem:[%s5 + $0x20] sm:$0xff]
    %p449 = scmp.eq.s32.totalorder 0, 0
    // Predicated region
    $region26: #{forward.17} parent=1 // pred_check
      %p450 = pneg %p449
    $region27: #{forward.17} parent=1 // pred_check_branch
      %452 = sbr.rel (%p450) target = $region29
    $region28: #{forward.17} parent=1 // pred_region
      %vm453 = vcmask 24576
      %454 = vst.msk [vmem:[#allocation2] sm:$0x1] %vm453, 0.0
      %vm455 = vcmask 0
      %456 = vst.msk [vmem:[#allocation3] sm:$0x1] %vm455, 0.0
    $region29: #{forward.17} parent=1 // pred_fallthru
      _
    %v457 = vld [vmem:[#allocation2] sm:$0x1]
    %459 = vset.pattern.permute.xlu0 0
    %460 = vperm.xlu0 %459, %v444
    %v461 = vpop.permute.xlu0 %460
    %464 = vset.pattern.permute.xlu0 0
    %465 = vperm.xlu0 %464, %v445
    %v466 = vpop.permute.xlu0 %465
    %469 = vset.pattern.permute.xlu0 0
    %470 = vperm.xlu0 %469, %v446
    %v471 = vpop.permute.xlu0 %470
    %474 = vset.pattern.permute.xlu0 0
    %475 = vperm.xlu0 %474, %v447
    %v476 = vpop.permute.xlu0 %475
    %479 = vset.pattern.permute.xlu0 0
    %480 = vperm.xlu0 %479, %v448
    %v481 = vpop.permute.xlu0 %480
    %v483 = vmul.f32 %v297, %v461
    %v484 = vmul.f32 %v299, %v466
    %v485 = vmul.f32 %v301, %v471
    %v486 = vmul.f32 %v303, %v476
    %v487 = vmul.f32 %v305, %v481
    %v488 = vsel %vm245, %v483, 0.0
    %v489 = vsel %vm245, %v484, 0.0
    %v490 = vadd.f32 %v488, %v489
    %v491 = vsel %vm245, %v485, 0.0
    %v492 = vadd.f32 %v490, %v491
    %v493 = vsel %vm245, %v486, 0.0
    %v494 = vadd.f32 %v492, %v493
    %v495 = vsel %vm245, %v487, 0.0
    %v496 = vadd.f32 %v494, %v495
    %v497 = vrot.slane %v496, 4
    %v498 = vadd.f32 %v496, %v497
    %v499 = vrot.slane %v498, 2
    %v500 = vadd.f32 %v498, %v499
    %v501 = vrot.slane %v500, 1
    %v502 = vadd.f32 %v500, %v501
    %v503 = vadd.f32 %v457, %v502
    %vm504 = vcmask 24576
    %505 = vst.msk [vmem:[#allocation2] sm:$0x1] %vm504, %v503
    %v506 = vlog2.pop %v283
    %v507 = vmul.f32 %v506, 0.6931472
    %v508 = vlog2.pop %v286
    %v509 = vmul.f32 %v508, 0.6931472
    %v510 = vlog2.pop %v289
    %v511 = vmul.f32 %v510, 0.6931472
    %v512 = vlog2.pop %v292
    %v513 = vmul.f32 %v512, 0.6931472
    %v514 = vlog2.pop %v295
    %v515 = vmul.f32 %v514, 0.6931472
    %v516 = vadd.f32 %v253, %v507
    %v517 = vadd.f32 %v256, %v509
    %v518 = vadd.f32 %v259, %v511
    %v519 = vadd.f32 %v262, %v513
    %v520 = vadd.f32 %v265, %v515
    %v521 = vld [vmem:[#allocation3] sm:$0x1]
    %v522 = vmul.f32 %v516, %v516
    %v523 = vmul.f32 %v517, %v517
    %v524 = vmul.f32 %v518, %v518
    %v525 = vmul.f32 %v519, %v519
    %v526 = vmul.f32 %v520, %v520
    %v527 = vmul.f32 %v522, %v444
    %v528 = vmul.f32 %v523, %v445
    %v529 = vmul.f32 %v524, %v446
    %v530 = vmul.f32 %v525, %v447
    %v531 = vmul.f32 %v526, %v448
    %vm532 = vcmask 7168
    %v533 = vsel %vm532, %v527, 0.0
    %v534 = vsel %vm532, %v528, 0.0
    %v535 = vadd.f32 %v533, %v534
    %v536 = vsel %vm532, %v529, 0.0
    %v537 = vadd.f32 %v535, %v536
    %v538 = vsel %vm532, %v530, 0.0
    %v539 = vadd.f32 %v537, %v538
    %v540 = vsel %vm532, %v531, 0.0
    %v541 = vadd.f32 %v539, %v540
    %v542 = vrot.slane %v541, 4
    %v543 = vadd.f32 %v541, %v542
    %v544 = vrot.slane %v543, 2
    %v545 = vadd.f32 %v543, %v544
    %v546 = vrot.slane %v545, 1
    %v547 = vadd.f32 %v545, %v546
    %v548 = vadd.f32 %v521, %v547
    %vm549 = vcmask 0
    %550 = vst.msk [vmem:[#allocation3] sm:$0x1] %vm549, %v548
    // Predicated region
    $region30: #{forward.17} parent=1 // pred_check
      %p551 = pneg %p449
    $region31: #{forward.17} parent=1 // pred_check_branch
      %553 = sbr.rel (%p551) target = $region33
    $region32: #{forward.17} parent=1 // pred_region
      %v554 = vld [vmem:[#allocation2] sm:$0x1]
      %v555 = vrcp.pop 34.0
      %v556 = vmul.f32 %v554, %v555
      %v557 = vadd.f32 %v556, 1e-20
      %v558 = vlog2.pop %v557
      %v559 = vmul.f32 %v558, 0.6931472
      %v560 = vsub.f32 -1.3862944, %v559
      %v561 = vmul.f32 %v560, 0.25
      %v562 = vsel %vm504, %v561, 0.0
      %563 = vadd.xlane.f32.xlu0 %v562
      %v564 = vpop.xlane.xlu0 %563
      %v565 = vrcp.pop 4.0
      %v566 = vmul.f32 %v564, %v565
      %v567 = vld [vmem:[#allocation3] sm:$0x1]
      %v568 = vmul.f32 %v567, %v555
      %v569 = vmul.f32 %v568, 0.001
      %v570 = vadd.f32 %v566, %v569
      %571 = vst.msk [vmem:[#allocation4] sm:$0x1] %vm549, %v570
    $region33: #{forward.17} parent=1 // pred_fallthru
      _
    // Predicated region
    $region34: #{forward.17} parent=1 // pred_check
      _
    $region35: #{forward.17} parent=1 // pred_check_branch
      %573 = sbr.rel (0) target = $region37
    $region36: #{forward.17} parent=1 // pred_region
      _
    $region37: #{forward.17} parent=1 // pred_fallthru
      _
    // Predicated region
    $region38: #{forward.17} parent=1 // pred_check
      _
    $region39: #{forward.17} parent=1 // pred_check_branch
      %575 = sbr.rel (0) target = $region41
    $region40: #{forward.17} parent=1 // pred_region
      _
    $region41: #{forward.17} parent=1 // pred_fallthru
      _
    // Predicated region
    $region42: #{forward.17} parent=1 // pred_check
      _
    $region43: #{forward.17} parent=1 // pred_check_branch
      %577 = sbr.rel (0) target = $region45
    $region44: #{forward.17} parent=1 // pred_region
      _
    $region45: #{forward.17} parent=1 // pred_fallthru
      _
    // Predicated region
    $region46: #{forward.17} parent=1 // pred_check
      _
    $region47: #{forward.17} parent=1 // pred_check_branch
      %579 = sbr.rel (0) target = $region49
    $region48: #{forward.17} parent=1 // pred_region
      %s581 = ssub.s32 16, 16
      %582 = vsyncadd [#allocation5], %s581
      %s584 = sshll.u32 [#allocation4], 4
      %s585 = int_to_ptr.vmem [resolvable:$true] %s584
      %587 = dma.vmem_to_hbm [thread:$0]  %s585, 16, %s9, [#allocation5]
    $region49: #{forward.17} parent=1 // pred_fallthru
      _
    // Predicated region
    $region50: #{forward.17} parent=1 // pred_check
      _
    $region51: #{forward.17} parent=1 // pred_check_branch
      %589 = sbr.rel (0) target = $region53
    $region52: #{forward.17} parent=1 // pred_region
      _
    $region53: #{forward.17} parent=1 // pred_fallthru
      _
    // Predicated region
    $region54: #{forward.17} parent=1 // pred_check
      _
    $region55: #{forward.17} parent=1 // pred_check_branch
      %591 = sbr.rel (0) target = $region57
    $region56: #{forward.17} parent=1 // pred_region
      _
    $region57: #{forward.17} parent=1 // pred_fallthru
      _
    // Predicated region
    $region58: #{forward.17} parent=1 // pred_check
      _
    $region59: #{forward.17} parent=1 // pred_check_branch
      %593 = sbr.rel (0) target = $region61
    $region60: #{forward.17} parent=1 // pred_region
      _
    $region61: #{forward.17} parent=1 // pred_fallthru
      _
    // Predicated region
    $region62: #{forward.17} parent=1 // pred_check
      _
    $region63: #{forward.17} parent=1 // pred_check_branch
      %595 = sbr.rel (0) target = $region65
    $region64: #{forward.17} parent=1 // pred_region
      %596 = dma.done [#allocation5], 16
    $region65: #{forward.17} parent=1 // pred_fallthru
      _
    %597 = vsyncpa [#allocation5], 1

// kernel: forward.24
$region0: #{forward.24}
  #allocation0 [shape = 'u32[]', space=smem, size = 0x4, offset = 0x4, fixed_abs, tag = 'smem constant byte address 0x4 - core index']
  #allocation1 [shape = 'u32[144,128]{1,0:T(1,128)}', space=vmem, size = 0x12000, scoped, tag = 'internal scratch']
  %s0 = inlined_call_operand.vmem [shape: f32[8,32], index: 0, kind: input, shape index: {}]
  %s1 = inlined_call_operand.vmem [shape: f32[1,32], index: 1, kind: input, shape index: {}]
  %s2 = inlined_call_operand.vmem [shape: f32[1,32], index: 2, kind: input, shape index: {}]
  %s3 = inlined_call_operand.vmem [shape: f32[8,32], index: 3, kind: output, shape index: {}]
  %s4 = sld [smem:[#allocation0]]
  $region22: #{forward.24} parent=0
    _
  %s6 = ssub.s32 1, %s4
  %s7 = scalar_select 0, %s6, %s4
  // Predicated region
  $region2: #{forward.24} parent=0 // pred_check
    _
  $region3: #{forward.24} parent=0 // pred_check_branch
    %9 = sbr.rel (0) target = $region5
  $region4: #{forward.24} parent=0 // pred_region
    _
  $region5: #{forward.24} parent=0 // pred_fallthru
    _
  // Predicated region
  $region6: #{forward.24} parent=0 // pred_check
    _
  $region7: #{forward.24} parent=0 // pred_check_branch
    %11 = sbr.rel (0) target = $region9
  $region8: #{forward.24} parent=0 // pred_region
    _
  $region9: #{forward.24} parent=0 // pred_fallthru
    _
  // Predicated region
  $region10: #{forward.24} parent=0 // pred_check
    _
  $region11: #{forward.24} parent=0 // pred_check_branch
    %13 = sbr.rel (0) target = $region13
  $region12: #{forward.24} parent=0 // pred_region
    _
  $region13: #{forward.24} parent=0 // pred_fallthru
    _
  %v14 = vld [vmem:[%s0] sm:$0xff]
  %vm15 = vcmask 261120
  %v16 = vsel %vm15, %v14, 0.0
  %17 = vadd.xlane.f32.xlu0 %v16
  %v18 = vpop.xlane.xlu0 %17
  %v19 = vrcp.pop 32.0
  %v20 = vmul.f32 %v18, %v19
  %v21 = vsub.f32 %v14, %v20
  %v22 = vmul.f32 %v21, %v21
  %v23 = vsel %vm15, %v22, 0.0
  %24 = vadd.xlane.f32.xlu0 %v23
  %v25 = vpop.xlane.xlu0 %24
  %v26 = vmul.f32 %v25, %v19
  %v27 = vadd.f32 %v26, 1e-05
  %v28 = vrsqrt.pop %v27
  %v29 = vmul.f32 %v21, %v28
  %v30 = vld [vmem:[%s1] sm:$0x1]
  %v32 = vlaneseq
  %v33 = vshrl.u32 %v32, 7
  %v34 = vsub.s32 0, %v33
  %v35 = vrot.slane %v30, %v34
  %v37 = vmul.f32 %v29, %v35
  %v38 = vld [vmem:[%s2] sm:$0x1]
  %v40 = vlaneseq
  %v41 = vshrl.u32 %v40, 7
  %v42 = vsub.s32 0, %v41
  %v43 = vrot.slane %v38, %v42
  %v45 = vadd.f32 %v37, %v43
  %46 = vst.msk [vmem:[%s3] sm:$0xff] %vm15, %v45
  // Predicated region
  $region14: #{forward.24} parent=0 // pred_check
    _
  $region15: #{forward.24} parent=0 // pred_check_branch
    %48 = sbr.rel (0) target = $region17
  $region16: #{forward.24} parent=0 // pred_region
    _
  $region17: #{forward.24} parent=0 // pred_fallthru
    _
  // Predicated region
  $region18: #{forward.24} parent=0 // pred_check
    _
  $region19: #{forward.24} parent=0 // pred_check_branch
    %50 = sbr.rel (0) target = $region21
  $region20: #{forward.24} parent=0 // pred_region
    _
  $region21: #{forward.24} parent=0 // pred_fallthru
    _

// kernel: forward.25
$region0: #{forward.25}
  #allocation0 [shape = 'u32[]', space=smem, size = 0x4, offset = 0x4, fixed_abs, tag = 'smem constant byte address 0x4 - core index']
  #allocation1 [shape = 'u32[144,128]{1,0:T(1,128)}', space=vmem, size = 0x12000, scoped, tag = 'internal scratch']
  #allocation2 [shape = 'f32[8,128]{1,0:T(8,128)}', space=vmem, size = 0x1000, scoped, tag = 'scratch operand']
  %s0 = inlined_call_operand.vmem [shape: f32[8,128], index: 0, kind: input, shape index: {}]
  %s1 = inlined_call_operand.vmem [shape: bf16[128,128], index: 1, kind: input, shape index: {}]
  %s2 = inlined_call_operand.vmem [shape: f32[1,128], index: 2, kind: input, shape index: {}]
  %s3 = inlined_call_operand.vmem [shape: f32[8,128], index: 3, kind: output, shape index: {}]
  %s4 = sld [smem:[#allocation0]]
  $region30: #{forward.25} parent=0
    _
  %s6 = ssub.s32 1, %s4
  %s7 = scalar_select 0, %s6, %s4
  // Predicated region
  $region2: #{forward.25} parent=0 // pred_check
    _
  $region3: #{forward.25} parent=0 // pred_check_branch
    %9 = sbr.rel (0) target = $region5
  $region4: #{forward.25} parent=0 // pred_region
    _
  $region5: #{forward.25} parent=0 // pred_fallthru
    _
  // Predicated region
  $region6: #{forward.25} parent=0 // pred_check
    _
  $region7: #{forward.25} parent=0 // pred_check_branch
    %11 = sbr.rel (0) target = $region9
  $region8: #{forward.25} parent=0 // pred_region
    _
  $region9: #{forward.25} parent=0 // pred_fallthru
    _
  // Predicated region
  $region10: #{forward.25} parent=0 // pred_check
    _
  $region11: #{forward.25} parent=0 // pred_check_branch
    %13 = sbr.rel (0) target = $region13
  $region12: #{forward.25} parent=0 // pred_region
    _
  $region13: #{forward.25} parent=0 // pred_fallthru
    _
  %p15 = scmp.eq.s32.totalorder 0, 0
  // Predicated region
  $region14: #{forward.25} parent=0 // pred_check
    %p16 = pneg %p15
  $region15: #{forward.25} parent=0 // pred_check_branch
    %18 = sbr.rel (%p16) target = $region17
  $region16: #{forward.25} parent=0 // pred_region
    %19 = vst [vmem:[#allocation2] sm:$0xff] 0.0
  $region17: #{forward.25} parent=0 // pred_fallthru
    _
  %v20 = vld [vmem:[#allocation2] sm:$0xff]
  %v21 = vld [vmem:[%s0] sm:$0xff]
  %v22 = vpack.c.bf16 %v21, %v21
  %v23 = vld [vmem:[%s1] sm:$0xf]
  %v24 = vld [vmem:[%s1 + $0x4] sm:$0xf]
  %v25 = vld [vmem:[%s1 + $0x8] sm:$0xf]
  %v26 = vld [vmem:[%s1 + $0xc] sm:$0xf]
  %v27 = vld [vmem:[%s1 + $0x10] sm:$0xf]
  %v28 = vld [vmem:[%s1 + $0x14] sm:$0xf]
  %v29 = vld [vmem:[%s1 + $0x18] sm:$0xf]
  %v30 = vld [vmem:[%s1 + $0x1c] sm:$0xf]
  %v31 = vld [vmem:[%s1 + $0x20] sm:$0xf]
  %v32 = vld [vmem:[%s1 + $0x24] sm:$0xf]
  %v33 = vld [vmem:[%s1 + $0x28] sm:$0xf]
  %v34 = vld [vmem:[%s1 + $0x2c] sm:$0xf]
  %v35 = vld [vmem:[%s1 + $0x30] sm:$0xf]
  %v36 = vld [vmem:[%s1 + $0x34] sm:$0xf]
  %v37 = vld [vmem:[%s1 + $0x38] sm:$0xf]
  %v38 = vld [vmem:[%s1 + $0x3c] sm:$0xf]
  %v55 = vunpack.c.l.b16 %v23
  %v56 = vunpack.c.l.b16 %v24
  %v57 = vunpack.c.l.b16 %v25
  %v58 = vunpack.c.l.b16 %v26
  %v59 = vunpack.c.l.b16 %v27
  %v60 = vunpack.c.l.b16 %v28
  %v61 = vunpack.c.l.b16 %v29
  %v62 = vunpack.c.l.b16 %v30
  %v63 = vunpack.c.l.b16 %v31
  %v64 = vunpack.c.l.b16 %v32
  %v65 = vunpack.c.l.b16 %v33
  %v66 = vunpack.c.l.b16 %v34
  %v67 = vunpack.c.l.b16 %v35
  %v68 = vunpack.c.l.b16 %v36
  %v69 = vunpack.c.l.b16 %v37
  %v70 = vunpack.c.l.b16 %v38
  %v71 = vpack.c.b16 %v56, %v55
  %v72 = vpack.c.b16 %v58, %v57
  %v73 = vpack.c.b16 %v60, %v59
  %v74 = vpack.c.b16 %v62, %v61
  %v75 = vpack.c.b16 %v64, %v63
  %v76 = vpack.c.b16 %v66, %v65
  %v77 = vpack.c.b16 %v68, %v67
  %v78 = vpack.c.b16 %v70, %v69
  %87 = vmatprep.subr.bf16.mxu0 0
  %88 = vmatpush1.bf16.msra.mxu0 %v78
  %89 = vmatprep.subr.bf16.mxu0 0
  %90 = vmatpush1.bf16.msra.mxu0 %v77
  %91 = vmatprep.subr.bf16.mxu0 0
  %92 = vmatpush1.bf16.msra.mxu0 %v76
  %93 = vmatprep.subr.bf16.mxu0 0
  %94 = vmatpush1.bf16.msra.mxu0 %v75
  %95 = vmatprep.subr.bf16.mxu0 0
  %96 = vmatpush1.bf16.msra.mxu0 %v74
  %97 = vmatprep.subr.bf16.mxu0 0
  %98 = vmatpush1.bf16.msra.mxu0 %v73
  %99 = vmatprep.subr.bf16.mxu0 0
  %100 = vmatpush1.bf16.msra.mxu0 %v72
  %101 = vmatprep.subr.bf16.mxu0 0
  %102 = vmatpush1.bf16.msra.mxu0 %v71
  %103 = vmatprep.subr.bf16.mxu0 0
  %104 = vmatpush2.bf16.msra.mxu0 0
  %105 = vmatprep.subr.bf16.mxu0 0
  %106 = vmatpush2.bf16.msra.mxu0 0
  %107 = vmatprep.subr.bf16.mxu0 0
  %108 = vmatpush2.bf16.msra.mxu0 0
  %109 = vmatprep.subr.bf16.mxu0 0
  %110 = vmatpush2.bf16.msra.mxu0 0
  %111 = vmatprep.subr.bf16.mxu0 0
  %112 = vmatpush2.bf16.msra.mxu0 0
  %113 = vmatprep.subr.bf16.mxu0 0
  %114 = vmatpush2.bf16.msra.mxu0 0
  %115 = vmatprep.subr.bf16.mxu0 0
  %116 = vmatpush2.bf16.msra.mxu0 0
  %117 = vmatprep.subr.bf16.mxu0 0
  %118 = vmatpush2.bf16.msra.mxu0 0
  %119 = vmatprep.mubr.bf16.mxu0 0
  %120 = vmatmul.mubr.bf16.gmra.mxu0 %v22
  %v121 = vpop.f32.mrf.mxu0
  %v122 = vadd.f32 0.0, %v121
  %v123 = vpop.f32.mrf.mxu0
  %v124 = vpop.f32.mrf.mxu0
  %v125 = vpop.f32.mrf.mxu0
  %126 = vdwg.mxu0
  %v127 = vadd.f32 %v20, %v122
  %128 = vst [vmem:[#allocation2] sm:$0xff] %v127
  // Predicated region
  $region18: #{forward.25} parent=0 // pred_check
    %p129 = pneg %p15
  $region19: #{forward.25} parent=0 // pred_check_branch
    %131 = sbr.rel (%p129) target = $region21
  $region20: #{forward.25} parent=0 // pred_region
    %v132 = vld [vmem:[#allocation2] sm:$0xff]
    %v133 = vld [vmem:[%s2] sm:$0x1]
    %v135 = vlaneseq
    %v136 = vshrl.u32 %v135, 7
    %v137 = vsub.s32 0, %v136
    %v138 = vrot.slane %v133, %v137
    %v140 = vadd.f32 %v132, %v138
    %141 = vst [vmem:[%s3] sm:$0xff] %v140
  $region21: #{forward.25} parent=0 // pred_fallthru
    _
  // Predicated region
  $region22: #{forward.25} parent=0 // pred_check
    _
  $region23: #{forward.25} parent=0 // pred_check_branch
    %143 = sbr.rel (0) target = $region25
  $region24: #{forward.25} parent=0 // pred_region
    _
  $region25: #{forward.25} parent=0 // pred_fallthru
    _
  // Predicated region
  $region26: #{forward.25} parent=0 // pred_check
    _
  $region27: #{forward.25} parent=0 // pred_check_branch
    %145 = sbr.rel (0) target = $region29
  $region28: #{forward.25} parent=0 // pred_region
    _
  $region29: #{forward.25} parent=0 // pred_fallthru
    _

// kernel: forward.18
$region0: #{forward.18}
  #allocation0 [shape = 'u32[]', space=smem, size = 0x4, offset = 0x4, fixed_abs, tag = 'smem constant byte address 0x4 - core index']
  #allocation1 [shape = 'u32[144,128]{1,0:T(1,128)}', space=vmem, size = 0x12000, scoped, tag = 'internal scratch']
  %s0 = inlined_call_operand.vmem [shape: f32[40,32], index: 0, kind: input, shape index: {}]
  %s1 = inlined_call_operand.vmem [shape: f32[40,4], index: 1, kind: input, shape index: {}]
  %s2 = inlined_call_operand.vmem [shape: f32[40,32], index: 2, kind: input, shape index: {}]
  %s3 = inlined_call_operand.vmem [shape: bf16[4,32,128], index: 3, kind: input, shape index: {}]
  %s4 = inlined_call_operand.vmem [shape: f32[4,1,128], index: 4, kind: input, shape index: {}]
  %s5 = inlined_call_operand.vmem [shape: bf16[4,128,32], index: 5, kind: input, shape index: {}]
  %s6 = inlined_call_operand.vmem [shape: f32[4,1,32], index: 6, kind: input, shape index: {}]
  %s7 = inlined_call_operand.vmem [shape: f32[40,32], index: 7, kind: output, shape index: {}]
  %s8 = sld [smem:[#allocation0]]
  $region65: #{forward.18} parent=0
    _
  %s10 = ssub.s32 1, %s8
  %s11 = scalar_select 0, %s10, %s8
  loop: start=0, step=1, limit=6
  $region2: #{forward.18} parent=0 // loop_pre_header
    _
  $region3: #{forward.18} parent=0 // loop_header
    %s13 = sphi 0, %s17
    %p14 = scmp.ge.s32.totalorder %s13, 6
    %s20 = sphi 0, %s32
    %s21 = sphi 0, %s28
    %s22 = sphi 0, %s20
    %s23 = sphi 0, %s21
    %s24 = sphi 0, %s22
    %s25 = sphi 0, %s23
    %s35 = sphi 0, %s37
    %s38 = sphi 0, %s35
    %s39 = sphi 0, %s38
    %s55 = sphi 0, %s39
    %s61 = sphi 0, %s63
    %s64 = sphi 0, %s61
    %s65 = sphi 0, %s64
    %s81 = sphi 0, %s65
    %s87 = sphi 0, %s89
    %s90 = sphi 0, %s87
    %s91 = sphi 0, %s90
    %s107 = sphi 0, %s91
    %s113 = sphi 0, %s115
    %s116 = sphi 0, %s113
    %s117 = sphi 0, %s116
    %s133 = sphi 0, %s117
    %s139 = sphi 0, %s141
    %s142 = sphi 0, %s139
    %s143 = sphi 0, %s142
    %s159 = sphi 0, %s143
    %s165 = sphi 0, %s167
    %s168 = sphi 0, %s165
    %s169 = sphi 0, %s168
    %s185 = sphi 0, %s169
    %s191 = sphi 0, %s193
    %s194 = sphi 0, %s191
    %s195 = sphi 0, %s194
    %s211 = sphi 0, %s195
    %s217 = sphi 0, %s219
    %s220 = sphi 0, %s217
    %s221 = sphi 0, %s220
    %s237 = sphi 0, %s221
  $region4: #{forward.18} parent=0 // loop_header_branch
    %16 = sbr.rel (%p14) target = $region8
  $region5: #{forward.18} parent=0 // loop_body
    %s18 = ssub.s32 %s13, 1
    %s19 = ssub.s32 %s13, 2
    %s26 = sadd.s32 1, %s21
    %p27 = scmp.ge.s32.totalorder %s26, 4
    %s28 = scalar_select %p27, 0, %s26
    %s29 = sadd.s32 1, %s20
    %s30 = scalar_select %p27, %s29, %s20
    %p31 = scmp.ge.s32.totalorder %s30, 1
    %s32 = scalar_select %p31, 0, %s30
    %s33 = ssub.s32 %s20, %s32
    %p34 = scmp.eq.s32.totalorder %s33, 0
    %s36 = sadd.s32 %s35, 1
    %s37 = scalar_select %p34, %s35, %s36
    %p40 = pneg %p34
    %p41 = scmp.eq.s32.totalorder %s13, 3
    %p42 = por %p40, %p41
    %p43 = scmp.ne.s32.totalorder %s35, %s38
    %p44 = scmp.eq.s32.totalorder %s13, 0
    %p45 = por %p43, %p44
    %p46 = scmp.ne.s32.totalorder %s35, %s38
    %p47 = scmp.eq.s32.totalorder %s18, 3
    %p48 = por %p46, %p47
    %p49 = scmp.ne.s32.totalorder %s38, %s39
    %p50 = scmp.eq.s32.totalorder %s18, 0
    %p51 = por %p49, %p50
    %p52 = scmp.ne.s32.totalorder %s38, %s39
    %p53 = scmp.eq.s32.totalorder %s19, 3
    %p54 = por %p52, %p53
    %p56 = scmp.ne.s32.totalorder %s39, %s55
    %p57 = scmp.eq.s32.totalorder %s19, 0
    %p58 = por %p56, %p57
    %s59 = ssub.s32 %s20, %s32
    %p60 = scmp.eq.s32.totalorder %s59, 0
    %s62 = sadd.s32 %s61, 1
    %s63 = scalar_select %p60, %s61, %s62
    %p66 = pneg %p60
    %p67 = scmp.eq.s32.totalorder %s13, 3
    %p68 = por %p66, %p67
    %p69 = scmp.ne.s32.totalorder %s61, %s64
    %p70 = scmp.eq.s32.totalorder %s13, 0
    %p71 = por %p69, %p70
    %p72 = scmp.ne.s32.totalorder %s61, %s64
    %p73 = scmp.eq.s32.totalorder %s18, 3
    %p74 = por %p72, %p73
    %p75 = scmp.ne.s32.totalorder %s64, %s65
    %p76 = scmp.eq.s32.totalorder %s18, 0
    %p77 = por %p75, %p76
    %p78 = scmp.ne.s32.totalorder %s64, %s65
    %p79 = scmp.eq.s32.totalorder %s19, 3
    %p80 = por %p78, %p79
    %p82 = scmp.ne.s32.totalorder %s65, %s81
    %p83 = scmp.eq.s32.totalorder %s19, 0
    %p84 = por %p82, %p83
    %s85 = ssub.s32 %s20, %s32
    %p86 = scmp.eq.s32.totalorder %s85, 0
    %s88 = sadd.s32 %s87, 1
    %s89 = scalar_select %p86, %s87, %s88
    %p92 = pneg %p86
    %p93 = scmp.eq.s32.totalorder %s13, 3
    %p94 = por %p92, %p93
    %p95 = scmp.ne.s32.totalorder %s87, %s90
    %p96 = scmp.eq.s32.totalorder %s13, 0
    %p97 = por %p95, %p96
    %p98 = scmp.ne.s32.totalorder %s87, %s90
    %p99 = scmp.eq.s32.totalorder %s18, 3
    %p100 = por %p98, %p99
    %p101 = scmp.ne.s32.totalorder %s90, %s91
    %p102 = scmp.eq.s32.totalorder %s18, 0
    %p103 = por %p101, %p102
    %p104 = scmp.ne.s32.totalorder %s90, %s91
    %p105 = scmp.eq.s32.totalorder %s19, 3
    %p106 = por %p104, %p105
    %p108 = scmp.ne.s32.totalorder %s91, %s107
    %p109 = scmp.eq.s32.totalorder %s19, 0
    %p110 = por %p108, %p109
    %s111 = ssub.s32 %s21, %s28
    %p112 = scmp.eq.s32.totalorder %s111, 0
    %s114 = sadd.s32 %s113, 1
    %s115 = scalar_select %p112, %s113, %s114
    %p118 = pneg %p112
    %p119 = scmp.eq.s32.totalorder %s13, 3
    %p120 = por %p118, %p119
    %p121 = scmp.ne.s32.totalorder %s113, %s116
    %p122 = scmp.eq.s32.totalorder %s13, 0
    %p123 = por %p121, %p122
    %p124 = scmp.ne.s32.totalorder %s113, %s116
    %p125 = scmp.eq.s32.totalorder %s18, 3
    %p126 = por %p124, %p125
    %p127 = scmp.ne.s32.totalorder %s116, %s117
    %p128 = scmp.eq.s32.totalorder %s18, 0
    %p129 = por %p127, %p128
    %p130 = scmp.ne.s32.totalorder %s116, %s117
    %p131 = scmp.eq.s32.totalorder %s19, 3
    %p132 = por %p130, %p131
    %p134 = scmp.ne.s32.totalorder %s117, %s133
    %p135 = scmp.eq.s32.totalorder %s19, 0
    %p136 = por %p134, %p135
    %s137 = ssub.s32 %s21, %s28
    %p138 = scmp.eq.s32.totalorder %s137, 0
    %s140 = sadd.s32 %s139, 1
    %s141 = scalar_select %p138, %s139, %s140
    %p144 = pneg %p138
    %p145 = scmp.eq.s32.totalorder %s13, 3
    %p146 = por %p144, %p145
    %p147 = scmp.ne.s32.totalorder %s139, %s142
    %p148 = scmp.eq.s32.totalorder %s13, 0
    %p149 = por %p147, %p148
    %p150 = scmp.ne.s32.totalorder %s139, %s142
    %p151 = scmp.eq.s32.totalorder %s18, 3
    %p152 = por %p150, %p151
    %p153 = scmp.ne.s32.totalorder %s142, %s143
    %p154 = scmp.eq.s32.totalorder %s18, 0
    %p155 = por %p153, %p154
    %p156 = scmp.ne.s32.totalorder %s142, %s143
    %p157 = scmp.eq.s32.totalorder %s19, 3
    %p158 = por %p156, %p157
    %p160 = scmp.ne.s32.totalorder %s143, %s159
    %p161 = scmp.eq.s32.totalorder %s19, 0
    %p162 = por %p160, %p161
    %s163 = ssub.s32 %s21, %s28
    %p164 = scmp.eq.s32.totalorder %s163, 0
    %s166 = sadd.s32 %s165, 1
    %s167 = scalar_select %p164, %s165, %s166
    %p170 = pneg %p164
    %p171 = scmp.eq.s32.totalorder %s13, 3
    %p172 = por %p170, %p171
    %p173 = scmp.ne.s32.totalorder %s165, %s168
    %p174 = scmp.eq.s32.totalorder %s13, 0
    %p175 = por %p173, %p174
    %p176 = scmp.ne.s32.totalorder %s165, %s168
    %p177 = scmp.eq.s32.totalorder %s18, 3
    %p178 = por %p176, %p177
    %p179 = scmp.ne.s32.totalorder %s168, %s169
    %p180 = scmp.eq.s32.totalorder %s18, 0
    %p181 = por %p179, %p180
    %p182 = scmp.ne.s32.totalorder %s168, %s169
    %p183 = scmp.eq.s32.totalorder %s19, 3
    %p184 = por %p182, %p183
    %p186 = scmp.ne.s32.totalorder %s169, %s185
    %p187 = scmp.eq.s32.totalorder %s19, 0
    %p188 = por %p186, %p187
    %s189 = ssub.s32 %s21, %s28
    %p190 = scmp.eq.s32.totalorder %s189, 0
    %s192 = sadd.s32 %s191, 1
    %s193 = scalar_select %p190, %s191, %s192
    %p196 = pneg %p190
    %p197 = scmp.eq.s32.totalorder %s13, 3
    %p198 = por %p196, %p197
    %p199 = scmp.ne.s32.totalorder %s191, %s194
    %p200 = scmp.eq.s32.totalorder %s13, 0
    %p201 = por %p199, %p200
    %p202 = scmp.ne.s32.totalorder %s191, %s194
    %p203 = scmp.eq.s32.totalorder %s18, 3
    %p204 = por %p202, %p203
    %p205 = scmp.ne.s32.totalorder %s194, %s195
    %p206 = scmp.eq.s32.totalorder %s18, 0
    %p207 = por %p205, %p206
    %p208 = scmp.ne.s32.totalorder %s194, %s195
    %p209 = scmp.eq.s32.totalorder %s19, 3
    %p210 = por %p208, %p209
    %p212 = scmp.ne.s32.totalorder %s195, %s211
    %p213 = scmp.eq.s32.totalorder %s19, 0
    %p214 = por %p212, %p213
    %s215 = ssub.s32 %s20, %s32
    %p216 = scmp.eq.s32.totalorder %s215, 0
    %s218 = sadd.s32 %s217, 1
    %s219 = scalar_select %p216, %s217, %s218
    %p222 = pneg %p216
    %p223 = scmp.eq.s32.totalorder %s13, 3
    %p224 = por %p222, %p223
    %p225 = scmp.ne.s32.totalorder %s217, %s220
    %p226 = scmp.eq.s32.totalorder %s13, 0
    %p227 = por %p225, %p226
    %p228 = scmp.ne.s32.totalorder %s217, %s220
    %p229 = scmp.eq.s32.totalorder %s18, 3
    %p230 = por %p228, %p229
    %p231 = scmp.ne.s32.totalorder %s220, %s221
    %p232 = scmp.eq.s32.totalorder %s18, 0
    %p233 = por %p231, %p232
    %p234 = scmp.ne.s32.totalorder %s220, %s221
    %p235 = scmp.eq.s32.totalorder %s19, 3
    %p236 = por %p234, %p235
    %p238 = scmp.ne.s32.totalorder %s221, %s237
    %p239 = scmp.eq.s32.totalorder %s19, 0
    %p240 = por %p238, %p239
    %p241 = scmp.le.s32.totalorder 1, %s13
    %p242 = scmp.lt.s32.totalorder %s13, 5
    %p243 = pnand %p241, %p242
    %p244 = pneg %p243
    // Predicated region
    $region9: #{forward.18} parent=5 // pred_check
      _
    $region10: #{forward.18} parent=5 // pred_check_branch
      %246 = sbr.rel (%p243) target = $region12
    $region11: #{forward.18} parent=5 // pred_region
      %s247 = ssub.s32 %s13, 1
      // Predicated region
      $region13: #{forward.18} parent=11 // pred_check
        %p248 = pneg %p51
      $region14: #{forward.18} parent=11 // pred_check_branch
        %250 = sbr.rel (%p248) target = $region16
      $region15: #{forward.18} parent=11 // pred_region
        %s251 = smul.u32 5, %s22
        %p252 = scmp.lt.s32.totalorder %s251, 4
        %s253 = scalar_select %p252, %s251, 4
        %s254 = smul.addr %s253, 8
        %s255 = scalar_lea.vmem %s0, %s254
        %s256 = smul.u32 5, %s22
      $region16: #{forward.18} parent=11 // pred_fallthru
        _
      // Predicated region
      $region17: #{forward.18} parent=11 // pred_check
        %p257 = pneg %p77
      $region18: #{forward.18} parent=11 // pred_check_branch
        %259 = sbr.rel (%p257) target = $region20
      $region19: #{forward.18} parent=11 // pred_region
        %s260 = smul.u32 5, %s22
        %p261 = scmp.lt.s32.totalorder %s260, 4
        %s262 = scalar_select %p261, %s260, 4
        %s263 = smul.addr %s262, 8
        %s264 = scalar_lea.vmem %s1, %s263
        %s265 = smul.u32 5, %s22
      $region20: #{forward.18} parent=11 // pred_fallthru
        _
      // Predicated region
      $region21: #{forward.18} parent=11 // pred_check
        %p266 = pneg %p103
      $region22: #{forward.18} parent=11 // pred_check_branch
        %268 = sbr.rel (%p266) target = $region24
      $region23: #{forward.18} parent=11 // pred_region
        %s269 = smul.u32 5, %s22
        %p270 = scmp.lt.s32.totalorder %s269, 4
        %s271 = scalar_select %p270, %s269, 4
        %s272 = smul.addr %s271, 8
        %s273 = scalar_lea.vmem %s2, %s272
        %s274 = smul.u32 5, %s22
      $region24: #{forward.18} parent=11 // pred_fallthru
        _
    $region12: #{forward.18} parent=5 // pred_fallthru
      _
    %p275 = scmp.lt.s32.totalorder %s13, 4
    // Predicated region
    $region25: #{forward.18} parent=5 // pred_check
      %p276 = pneg %p275
    $region26: #{forward.18} parent=5 // pred_check_branch
      %278 = sbr.rel (%p276) target = $region28
    $region27: #{forward.18} parent=5 // pred_region
      // Predicated region
      $region29: #{forward.18} parent=27 // pred_check
        %p279 = pneg %p123
      $region30: #{forward.18} parent=27 // pred_check_branch
        %281 = sbr.rel (%p279) target = $region32
      $region31: #{forward.18} parent=27 // pred_region
        %p282 = scmp.lt.s32.totalorder %s21, 3
        %s283 = scalar_select %p282, %s21, 3
        %s284 = smul.addr %s283, 4
        %s285 = smul.addr %s284, 4
        %s286 = scalar_lea.vmem %s3, %s285
      $region32: #{forward.18} parent=27 // pred_fallthru
        _
      // Predicated region
      $region33: #{forward.18} parent=27 // pred_check
        %p287 = pneg %p149
      $region34: #{forward.18} parent=27 // pred_check_branch
        %289 = sbr.rel (%p287) target = $region36
      $region35: #{forward.18} parent=27 // pred_region
        %p290 = scmp.lt.s32.totalorder %s21, 3
        %s291 = scalar_select %p290, %s21, 3
        %s292 = scalar_lea.vmem %s4, %s291
      $region36: #{forward.18} parent=27 // pred_fallthru
        _
      // Predicated region
      $region37: #{forward.18} parent=27 // pred_check
        %p293 = pneg %p175
      $region38: #{forward.18} parent=27 // pred_check_branch
        %295 = sbr.rel (%p293) target = $region40
      $region39: #{forward.18} parent=27 // pred_region
        %p296 = scmp.lt.s32.totalorder %s21, 3
        %s297 = scalar_select %p296, %s21, 3
        %s298 = smul.addr %s297, 16
        %s299 = smul.addr %s298, 4
        %s300 = scalar_lea.vmem %s5, %s299
      $region40: #{forward.18} parent=27 // pred_fallthru
        _
      // Predicated region
      $region41: #{forward.18} parent=27 // pred_check
        %p301 = pneg %p201
      $region42: #{forward.18} parent=27 // pred_check_branch
        %303 = sbr.rel (%p301) target = $region44
      $region43: #{forward.18} parent=27 // pred_region
        %p304 = scmp.lt.s32.totalorder %s21, 3
        %s305 = scalar_select %p304, %s21, 3
        %s306 = scalar_lea.vmem %s6, %s305
      $region44: #{forward.18} parent=27 // pred_fallthru
        _
    $region28: #{forward.18} parent=5 // pred_fallthru
      _
    %p307 = scmp.le.s32.totalorder 1, %s13
    %p308 = scmp.lt.s32.totalorder %s13, 5
    %p309 = pnand %p307, %p308
    %p310 = pneg %p309
    // Predicated region
    $region45: #{forward.18} parent=5 // pred_check
      _
    $region46: #{forward.18} parent=5 // pred_check_branch
      %312 = sbr.rel (%p309) target = $region48
    $region47: #{forward.18} parent=5 // pred_region
      %s313 = ssub.s32 %s13, 1
      %s314 = smul.u32 5, %s22
      %p315 = scmp.lt.s32.totalorder %s314, 4
      %s316 = scalar_select %p315, %s314, 4
      %s317 = smul.addr %s316, 8
      %s318 = scalar_lea.vmem %s0, %s317
      %p319 = pneg %p51
      %p320 = pneg %p48
      %s321 = smul.u32 5, %s22
      %p322 = scmp.lt.s32.totalorder %s321, 4
      %s323 = scalar_select %p322, %s321, 4
      %s324 = smul.addr %s323, 8
      %s325 = scalar_lea.vmem %s1, %s324
      %p326 = pneg %p77
      %p327 = pneg %p74
      %s328 = smul.u32 5, %s22
      %p329 = scmp.lt.s32.totalorder %s328, 4
      %s330 = scalar_select %p329, %s328, 4
      %s331 = smul.addr %s330, 8
      %s332 = scalar_lea.vmem %s2, %s331
      %p333 = pneg %p103
      %p334 = pneg %p100
      %p335 = scmp.lt.s32.totalorder %s23, 3
      %s336 = scalar_select %p335, %s23, 3
      %s337 = smul.addr %s336, 4
      %s338 = smul.addr %s337, 4
      %s339 = scalar_lea.vmem %s3, %s338
      %p340 = pneg %p129
      %p341 = pneg %p126
      %p342 = scmp.lt.s32.totalorder %s23, 3
      %s343 = scalar_select %p342, %s23, 3
      %s344 = scalar_lea.vmem %s4, %s343
      %p345 = pneg %p155
      %p346 = pneg %p152
      %p347 = scmp.lt.s32.totalorder %s23, 3
      %s348 = scalar_select %p347, %s23, 3
      %s349 = smul.addr %s348, 16
      %s350 = smul.addr %s349, 4
      %s351 = scalar_lea.vmem %s5, %s350
      %p352 = pneg %p181
      %p353 = pneg %p178
      %p354 = scmp.lt.s32.totalorder %s23, 3
      %s355 = scalar_select %p354, %s23, 3
      %s356 = scalar_lea.vmem %s6, %s355
      %p357 = pneg %p207
      %p358 = pneg %p204
      %p359 = pneg %p233
      %p360 = pneg %p230
      %s361 = smul.u32 5, %s22
      %p362 = scmp.lt.s32.totalorder %s361, 4
      %s363 = scalar_select %p362, %s361, 4
      %s364 = smul.addr %s363, 8
      %s365 = scalar_lea.vmem %s7, %s364
      %s366 = smul.u32 5, %s22
      %p367 = scmp.lt.s32.totalorder %s366, 4
      %s368 = scalar_select %p367, %s366, 4
      %s369 = smul.addr %s368, 8
      %s370 = scalar_lea.vmem %s0, %s369
      %s371 = smul.u32 5, %s22
      %s372 = smul.u32 5, %s22
      %p373 = scmp.lt.s32.totalorder %s372, 4
      %s374 = scalar_select %p373, %s372, 4
      %s375 = smul.addr %s374, 8
      %s376 = scalar_lea.vmem %s1, %s375
      %s377 = smul.u32 5, %s22
      %s378 = smul.u32 5, %s22
      %p379 = scmp.lt.s32.totalorder %s378, 4
      %s380 = scalar_select %p379, %s378, 4
      %s381 = smul.addr %s380, 8
      %s382 = scalar_lea.vmem %s2, %s381
      %s383 = smul.u32 5, %s22
      %p384 = scmp.lt.s32.totalorder %s23, 3
      %s385 = scalar_select %p384, %s23, 3
      %s386 = smul.addr %s385, 4
      %s387 = smul.addr %s386, 4
      %s388 = scalar_lea.vmem %s3, %s387
      %p389 = scmp.lt.s32.totalorder %s23, 3
      %s390 = scalar_select %p389, %s23, 3
      %s391 = scalar_lea.vmem %s4, %s390
      %p392 = scmp.lt.s32.totalorder %s23, 3
      %s393 = scalar_select %p392, %s23, 3
      %s394 = smul.addr %s393, 16
      %s395 = smul.addr %s394, 4
      %s396 = scalar_lea.vmem %s5, %s395
      %p397 = scmp.lt.s32.totalorder %s23, 3
      %s398 = scalar_select %p397, %s23, 3
      %s399 = scalar_lea.vmem %s6, %s398
      %s400 = smul.u32 5, %s22
      %p401 = scmp.lt.s32.totalorder %s400, 4
      %s402 = scalar_select %p401, %s400, 4
      %s403 = smul.addr %s402, 8
      %s404 = scalar_lea.vmem %s7, %s403
      %s405 = smul.u32 5, %s22
      %p407 = scmp.eq.s32.totalorder %s23, 0
      // Predicated region
      $region49: #{forward.18} parent=47 // pred_check
        %p408 = pneg %p407
      $region50: #{forward.18} parent=47 // pred_check_branch
        %410 = sbr.rel (%p408) target = $region52
      $region51: #{forward.18} parent=47 // pred_region
        %v411 = vld [vmem:[%s382] sm:$0xff]
        %v412 = vld [vmem:[%s382 + $0x8] sm:$0xff]
        %v413 = vld [vmem:[%s382 + $0x10] sm:$0xff]
        %v414 = vld [vmem:[%s382 + $0x18] sm:$0xff]
        %v415 = vld [vmem:[%s382 + $0x20] sm:$0xff]
        %vm416 = vcmask 261120
        %417 = vst.msk [vmem:[%s404] sm:$0xff] %vm416, %v411
        %418 = vst.msk [vmem:[%s404 + $0x8] sm:$0xff] %vm416, %v412
        %419 = vst.msk [vmem:[%s404 + $0x10] sm:$0xff] %vm416, %v413
        %420 = vst.msk [vmem:[%s404 + $0x18] sm:$0xff] %vm416, %v414
        %421 = vst.msk [vmem:[%s404 + $0x20] sm:$0xff] %vm416, %v415
      $region52: #{forward.18} parent=47 // pred_fallthru
        _
      %v422 = vld [vmem:[%s370] sm:$0xff]
      %v423 = vld [vmem:[%s370 + $0x8] sm:$0xff]
      %v424 = vld [vmem:[%s370 + $0x10] sm:$0xff]
      %v425 = vld [vmem:[%s370 + $0x18] sm:$0xff]
      %v426 = vld [vmem:[%s370 + $0x20] sm:$0xff]
      %v427 = vpack.c.bf16 %v423, %v422
      %v428 = vpack.c.bf16 %v425, %v424
      %v429 = vpack.c.bf16 %v426, %v426
      %v430 = vld [vmem:[%s388] sm:$0xf]
      %v431 = vld [vmem:[%s388 + $0x4] sm:$0xf]
      %v432 = vld [vmem:[%s388 + $0x8] sm:$0xf]
      %v433 = vld [vmem:[%s388 + $0xc] sm:$0xf]
      %v434 = vld [vmem:[%s391] sm:$0x1]
      %v436 = vlaneseq
      %v437 = vshrl.u32 %v436, 7
      %v438 = vsub.s32 0, %v437
      %v439 = vrot.slane %v434, %v438
      %v445 = vunpack.c.l.b16 %v430
      %v446 = vunpack.c.l.b16 %v431
      %v447 = vunpack.c.l.b16 %v432
      %v448 = vunpack.c.l.b16 %v433
      %v449 = vpack.c.b16 %v446, %v445
      %v450 = vpack.c.b16 %v448, %v447
      %vm453 = vcmask 261120
      %v455 = vsel %vm453, %v427, 0
      %v458 = vsel %vm453, %v428, 0
      %v461 = vsel %vm453, %v429, 0
      %463 = vmatprep.subr.bf16.mxu0 0
      %464 = vmatpush1.bf16.msra.mxu0 0
      %465 = vmatprep.subr.bf16.mxu0 0
      %466 = vmatpush1.bf16.msra.mxu0 0
      %467 = vmatprep.subr.bf16.mxu0 0
      %468 = vmatpush1.bf16.msra.mxu0 0
      %469 = vmatprep.subr.bf16.mxu0 0
      %470 = vmatpush1.bf16.msra.mxu0 0
      %471 = vmatprep.subr.bf16.mxu0 0
      %472 = vmatpush1.bf16.msra.mxu0 0
      %473 = vmatprep.subr.bf16.mxu0 0
      %474 = vmatpush1.bf16.msra.mxu0 0
      %475 = vmatprep.subr.bf16.mxu0 0
      %476 = vmatpush1.bf16.msra.mxu0 %v450
      %477 = vmatprep.subr.bf16.mxu0 0
      %478 = vmatpush1.bf16.msra.mxu0 %v449
      %479 = vmatprep.subr.bf16.mxu0 0
      %480 = vmatpush2.bf16.msra.mxu0 0
      %481 = vmatprep.subr.bf16.mxu0 0
      %482 = vmatpush2.bf16.msra.mxu0 0
      %483 = vmatprep.subr.bf16.mxu0 0
      %484 = vmatpush2.bf16.msra.mxu0 0
      %485 = vmatprep.subr.bf16.mxu0 0
      %486 = vmatpush2.bf16.msra.mxu0 0
      %487 = vmatprep.subr.bf16.mxu0 0
      %488 = vmatpush2.bf16.msra.mxu0 0
      %489 = vmatprep.subr.bf16.mxu0 0
      %490 = vmatpush2.bf16.msra.mxu0 0
      %491 = vmatprep.subr.bf16.mxu0 0
      %492 = vmatpush2.bf16.msra.mxu0 0
      %493 = vmatprep.subr.bf16.mxu0 0
      %494 = vmatpush2.bf16.msra.mxu0 0
      %495 = vmatprep.mubr.bf16.mxu0 0
      %496 = vmatmul.mubr.bf16.gmra.mxu0 %v455
      %v497 = vpop.f32.mrf.mxu0
      %v498 = vadd.f32 %v439, %v497
      %v499 = vpop.f32.mrf.mxu0
      %v500 = vpop.f32.mrf.mxu0
      %v501 = vadd.f32 %v439, %v500
      %v502 = vpop.f32.mrf.mxu0
      %503 = vmatprep.mubr.bf16.mxu0 0
      %504 = vmatmul.mubr.bf16.gmra.mxu0 %v458
      %v505 = vpop.f32.mrf.mxu0
      %v506 = vadd.f32 %v439, %v505
      %v507 = vpop.f32.mrf.mxu0
      %v508 = vpop.f32.mrf.mxu0
      %v509 = vadd.f32 %v439, %v508
      %v510 = vpop.f32.mrf.mxu0
      %511 = vmatprep.mubr.bf16.mxu0 0
      %512 = vmatmul.mubr.bf16.gmra.mxu0 %v461
      %v513 = vpop.f32.mrf.mxu0
      %v514 = vadd.f32 %v439, %v513
      %v515 = vpop.f32.mrf.mxu0
      %v516 = vpop.f32.mrf.mxu0
      %v517 = vpop.f32.mrf.mxu0
      %518 = vdwg.mxu0
      %v519 = vmul.f32 %v498, %v498
      %v520 = vmul.f32 %v501, %v501
      %v521 = vmul.f32 %v506, %v506
      %v522 = vmul.f32 %v509, %v509
      %v523 = vmul.f32 %v514, %v514
      %v524 = vmul.f32 %v498, %v519
      %v525 = vmul.f32 %v501, %v520
      %v526 = vmul.f32 %v506, %v521
      %v527 = vmul.f32 %v509, %v522
      %v528 = vmul.f32 %v514, %v523
      %v529 = vmul.f32 %v524, 0.044715
      %v530 = vmul.f32 %v525, 0.044715
      %v531 = vmul.f32 %v526, 0.044715
      %v532 = vmul.f32 %v527, 0.044715
      %v533 = vmul.f32 %v528, 0.044715
      %v534 = vadd.f32 %v498, %v529
      %v535 = vadd.f32 %v501, %v530
      %v536 = vadd.f32 %v506, %v531
      %v537 = vadd.f32 %v509, %v532
      %v538 = vadd.f32 %v514, %v533
      %v539 = vmul.f32 %v534, 0.7978846
      %v540 = vmul.f32 %v535, 0.7978846
      %v541 = vmul.f32 %v536, 0.7978846
      %v542 = vmul.f32 %v537, 0.7978846
      %v543 = vmul.f32 %v538, 0.7978846
      %v544 = vtanh.pop %v539
      %v545 = vtanh.pop %v540
      %v546 = vtanh.pop %v541
      %v547 = vtanh.pop %v542
      %v548 = vtanh.pop %v543
      %v549 = vadd.f32 %v544, 1.0
      %v550 = vadd.f32 %v545, 1.0
      %v551 = vadd.f32 %v546, 1.0
      %v552 = vadd.f32 %v547, 1.0
      %v553 = vadd.f32 %v548, 1.0
      %v554 = vmul.f32 %v549, 0.5
      %v555 = vmul.f32 %v550, 0.5
      %v556 = vmul.f32 %v551, 0.5
      %v557 = vmul.f32 %v552, 0.5
      %v558 = vmul.f32 %v553, 0.5
      %v559 = vmul.f32 %v498, %v554
      %v560 = vmul.f32 %v501, %v555
      %v561 = vmul.f32 %v506, %v556
      %v562 = vmul.f32 %v509, %v557
      %v563 = vmul.f32 %v514, %v558
      %v564 = vpack.c.bf16 %v560, %v559
      %v565 = vpack.c.bf16 %v562, %v561
      %v566 = vpack.c.bf16 %v563, %v563
      %v567 = vld [vmem:[%s396] sm:$0xf]
      %v568 = vld [vmem:[%s396 + $0x4] sm:$0xf]
      %v569 = vld [vmem:[%s396 + $0x8] sm:$0xf]
      %v570 = vld [vmem:[%s396 + $0xc] sm:$0xf]
      %v571 = vld [vmem:[%s396 + $0x10] sm:$0xf]
      %v572 = vld [vmem:[%s396 + $0x14] sm:$0xf]
      %v573 = vld [vmem:[%s396 + $0x18] sm:$0xf]
      %v574 = vld [vmem:[%s396 + $0x1c] sm:$0xf]
      %v575 = vld [vmem:[%s396 + $0x20] sm:$0xf]
      %v576 = vld [vmem:[%s396 + $0x24] sm:$0xf]
      %v577 = vld [vmem:[%s396 + $0x28] sm:$0xf]
      %v578 = vld [vmem:[%s396 + $0x2c] sm:$0xf]
      %v579 = vld [vmem:[%s396 + $0x30] sm:$0xf]
      %v580 = vld [vmem:[%s396 + $0x34] sm:$0xf]
      %v581 = vld [vmem:[%s396 + $0x38] sm:$0xf]
      %v582 = vld [vmem:[%s396 + $0x3c] sm:$0xf]
      %v583 = vld [vmem:[%s399] sm:$0x1]
      %v585 = vlaneseq
      %v586 = vshrl.u32 %v585, 7
      %v587 = vsub.s32 0, %v586
      %v588 = vrot.slane %v583, %v587
      %v606 = vunpack.c.l.b16 %v567
      %v607 = vunpack.c.l.b16 %v568
      %v608 = vunpack.c.l.b16 %v569
      %v609 = vunpack.c.l.b16 %v570
      %v610 = vunpack.c.l.b16 %v571
      %v611 = vunpack.c.l.b16 %v572
      %v612 = vunpack.c.l.b16 %v573
      %v613 = vunpack.c.l.b16 %v574
      %v614 = vunpack.c.l.b16 %v575
      %v615 = vunpack.c.l.b16 %v576
      %v616 = vunpack.c.l.b16 %v577
      %v617 = vunpack.c.l.b16 %v578
      %v618 = vunpack.c.l.b16 %v579
      %v619 = vunpack.c.l.b16 %v580
      %v620 = vunpack.c.l.b16 %v581
      %v621 = vunpack.c.l.b16 %v582
      %v622 = vpack.c.b16 %v607, %v606
      %v623 = vpack.c.b16 %v609, %v608
      %v624 = vpack.c.b16 %v611, %v610
      %v625 = vpack.c.b16 %v613, %v612
      %v626 = vpack.c.b16 %v615, %v614
      %v627 = vpack.c.b16 %v617, %v616
      %v628 = vpack.c.b16 %v619, %v618
      %v629 = vpack.c.b16 %v621, %v620
      %638 = vmatprep.subr.bf16.mxu0 0
      %639 = vmatpush1.bf16.msra.mxu0 %v629
      %640 = vmatprep.subr.bf16.mxu0 0
      %641 = vmatpush1.bf16.msra.mxu0 %v628
      %642 = vmatprep.subr.bf16.mxu0 0
      %643 = vmatpush1.bf16.msra.mxu0 %v627
      %644 = vmatprep.subr.bf16.mxu0 0
      %645 = vmatpush1.bf16.msra.mxu0 %v626
      %646 = vmatprep.subr.bf16.mxu0 0
      %647 = vmatpush1.bf16.msra.mxu0 %v625
      %648 = vmatprep.subr.bf16.mxu0 0
      %649 = vmatpush1.bf16.msra.mxu0 %v624
      %650 = vmatprep.subr.bf16.mxu0 0
      %651 = vmatpush1.bf16.msra.mxu0 %v623
      %652 = vmatprep.subr.bf16.mxu0 0
      %653 = vmatpush1.bf16.msra.mxu0 %v622
      %654 = vmatprep.subr.bf16.mxu0 0
      %655 = vmatpush2.bf16.msra.mxu0 0
      %656 = vmatprep.subr.bf16.mxu0 0
      %657 = vmatpush2.bf16.msra.mxu0 0
      %658 = vmatprep.subr.bf16.mxu0 0
      %659 = vmatpush2.bf16.msra.mxu0 0
      %660 = vmatprep.subr.bf16.mxu0 0
      %661 = vmatpush2.bf16.msra.mxu0 0
      %662 = vmatprep.subr.bf16.mxu0 0
      %663 = vmatpush2.bf16.msra.mxu0 0
      %664 = vmatprep.subr.bf16.mxu0 0
      %665 = vmatpush2.bf16.msra.mxu0 0
      %666 = vmatprep.subr.bf16.mxu0 0
      %667 = vmatpush2.bf16.msra.mxu0 0
      %668 = vmatprep.subr.bf16.mxu0 0
      %669 = vmatpush2.bf16.msra.mxu0 0
      %670 = vmatprep.mubr.bf16.mxu0 0
      %671 = vmatmul.mubr.bf16.gmra.mxu0 %v564
      %v672 = vpop.f32.mrf.mxu0
      %v673 = vadd.f32 %v588, %v672
      %v674 = vpop.f32.mrf.mxu0
      %v675 = vpop.f32.mrf.mxu0
      %v676 = vadd.f32 %v588, %v675
      %v677 = vpop.f32.mrf.mxu0
      %678 = vmatprep.mubr.bf16.mxu0 0
      %679 = vmatmul.mubr.bf16.gmra.mxu0 %v565
      %v680 = vpop.f32.mrf.mxu0
      %v681 = vadd.f32 %v588, %v680
      %v682 = vpop.f32.mrf.mxu0
      %v683 = vpop.f32.mrf.mxu0
      %v684 = vadd.f32 %v588, %v683
      %v685 = vpop.f32.mrf.mxu0
      %686 = vmatprep.mubr.bf16.mxu0 0
      %687 = vmatmul.mubr.bf16.gmra.mxu0 %v566
      %v688 = vpop.f32.mrf.mxu0
      %v689 = vadd.f32 %v588, %v688
      %v690 = vpop.f32.mrf.mxu0
      %v691 = vpop.f32.mrf.mxu0
      %v692 = vpop.f32.mrf.mxu0
      %693 = vdwg.mxu0
      %v694 = vld [vmem:[%s376] sm:$0xff]
      %v695 = vld [vmem:[%s376 + $0x8] sm:$0xff]
      %v696 = vld [vmem:[%s376 + $0x10] sm:$0xff]
      %v697 = vld [vmem:[%s376 + $0x18] sm:$0xff]
      %v698 = vld [vmem:[%s376 + $0x20] sm:$0xff]
      %v699 = vlaneseq
      %v700 = vand.u32 %v699, 127
      %v701 = vstv %s23
      %vm702 = vcmp.eq.s32.totalorder %v700, %v701
      %v703 = vsel %vm702, %v694, 0.0
      %v704 = vsel %vm702, %v695, 0.0
      %v705 = vsel %vm702, %v696, 0.0
      %v706 = vsel %vm702, %v697, 0.0
      %v707 = vsel %vm702, %v698, 0.0
      %vm708 = vcmask 31744
      %v709 = vsel %vm708, %v703, 0.0
      %710 = vadd.xlane.f32.xlu0 %v709
      %v711 = vpop.xlane.xlu0 %710
      %v712 = vsel %vm708, %v704, 0.0
      %713 = vadd.xlane.f32.xlu0 %v712
      %v714 = vpop.xlane.xlu0 %713
      %v715 = vsel %vm708, %v705, 0.0
      %716 = vadd.xlane.f32.xlu0 %v715
      %v717 = vpop.xlane.xlu0 %716
      %v718 = vsel %vm708, %v706, 0.0
      %719 = vadd.xlane.f32.xlu0 %v718
      %v720 = vpop.xlane.xlu0 %719
      %v721 = vsel %vm708, %v707, 0.0
      %722 = vadd.xlane.f32.xlu0 %v721
      %v723 = vpop.xlane.xlu0 %722
      %v724 = vld [vmem:[%s404] sm:$0xff]
      %v725 = vld [vmem:[%s404 + $0x8] sm:$0xff]
      %v726 = vld [vmem:[%s404 + $0x10] sm:$0xff]
      %v727 = vld [vmem:[%s404 + $0x18] sm:$0xff]
      %v728 = vld [vmem:[%s404 + $0x20] sm:$0xff]
      %v729 = vmul.f32 %v711, %v673
      %v730 = vmul.f32 %v714, %v676
      %v731 = vmul.f32 %v717, %v681
      %v732 = vmul.f32 %v720, %v684
      %v733 = vmul.f32 %v723, %v689
      %v734 = vadd.f32 %v724, %v729
      %v735 = vadd.f32 %v725, %v730
      %v736 = vadd.f32 %v726, %v731
      %v737 = vadd.f32 %v727, %v732
      %v738 = vadd.f32 %v728, %v733
      %739 = vst.msk [vmem:[%s404] sm:$0xff] %vm453, %v734
      %740 = vst.msk [vmem:[%s404 + $0x8] sm:$0xff] %vm453, %v735
      %741 = vst.msk [vmem:[%s404 + $0x10] sm:$0xff] %vm453, %v736
      %742 = vst.msk [vmem:[%s404 + $0x18] sm:$0xff] %vm453, %v737
      %743 = vst.msk [vmem:[%s404 + $0x20] sm:$0xff] %vm453, %v738
      %s744 = smul.u32 5, %s22
      %p745 = scmp.lt.s32.totalorder %s744, 4
      %s746 = scalar_select %p745, %s744, 4
      %s747 = smul.addr %s746, 8
      %s748 = scalar_lea.vmem %s7, %s747
      // Predicated region
      $region53: #{forward.18} parent=47 // pred_check
        %p749 = pneg %p230
      $region54: #{forward.18} parent=47 // pred_check_branch
        %751 = sbr.rel (%p749) target = $region56
      $region55: #{forward.18} parent=47 // pred_region
        %s752 = smul.u32 5, %s22
      $region56: #{forward.18} parent=47 // pred_fallthru
        _
      // Predicated region
      $region57: #{forward.18} parent=47 // pred_check
        %p753 = pneg %p230
      $region58: #{forward.18} parent=47 // pred_check_branch
        %755 = sbr.rel (%p753) target = $region60
      $region59: #{forward.18} parent=47 // pred_region
        %s756 = smul.u32 5, %s22
        %p757 = scmp.lt.s32.totalorder %s756, 4
        %s758 = scalar_select %p757, %s756, 4
        %s759 = smul.addr %s758, 8
        %s760 = scalar_lea.vmem %s7, %s759
      $region60: #{forward.18} parent=47 // pred_fallthru
        _
    $region48: #{forward.18} parent=5 // pred_fallthru
      _
    %p761 = scmp.le.s32.totalorder 2, %s13
    // Predicated region
    $region61: #{forward.18} parent=5 // pred_check
      %p762 = pneg %p761
    $region62: #{forward.18} parent=5 // pred_check_branch
      %764 = sbr.rel (%p762) target = $region64
    $region63: #{forward.18} parent=5 // pred_region
      %s765 = ssub.s32 %s13, 2
    $region64: #{forward.18} parent=5 // pred_fallthru
      _
  $region6: #{forward.18} parent=0 // loop_footer
    %s17 = sadd.s32 1, %s13
  $region7: #{forward.18} parent=0 // loop_footer_branch
    %12 = sbr.rel target = $region3
  $region8: #{forward.18} parent=0 // loop_exit
    _

</llo_original>
